<compile_context>
chip_gen: v7x
topology: tpu7x:2x2x1
jax: 0.10.0
libtpu: 0.0.40
codegen_flags: <defaults>
</compile_context>

<pallas_src>
import functools
import math

import jax
import jax.numpy as jnp
from jax.experimental import pallas as pl
from jax.experimental.pallas import tpu as pltpu


# -----------------------------------------------------------------------------
# Config.  The hard-coded Feed_Forward conv (15,16)/stride(15,16) forces
# H*W == 60 tokens and d_model == 128 (conv output 16 x 4 x 8 -> 512 features).
# -----------------------------------------------------------------------------
class cfg:
    H, W = 4, 15
    d_model = 128
    n_heads = 4
    hidden = 64
    p = 0.1                 # dropout prob (inference -> identity)


BATCH = 2
SEQ_V = cfg.H * cfg.W                 # 60   (v: query-side sequence)
SEQ_K = 2 * cfg.H * cfg.W             # 120  (q: key/value-side sequence, as used in model)
DIM_K = cfg.d_model // cfg.n_heads    # 32   (q/k/v projection width)
N_CHUNK = cfg.n_heads                 # 4    chunks produced by reshape(-1, B, S, 8)
DH = DIM_K // N_CHUNK                 # 8    per-chunk feature size
CONV_C, CONV_KH, CONV_KW = 16, 15, 16
SQRT_2_OVER_PI = 0.7978845608028654
LN_EPS = 1e-5


# TODO(synk): the repo's custom GELU class is not shown; BERT-style tanh approximation used.
def _gelu(x):
    return 0.5 * x * (1.0 + jnp.tanh(SQRT_2_OVER_PI * (x + 0.044715 * x * x * x)))


# =============================================================================
# Fused kernel: Q proj + K|V proj + chunked attention + o proj + Add_Norm + residual
# =============================================================================
def _cross_modal_kernel(v_ref, y_ref, wq_ref, bq_ref, wkv_ref, bkv_ref, wo_ref, bo_ref,
                        o_ref, q_sc, k_sc, u_sc, m_sc, *, scale):
    sv = v_ref.shape[1]            # 60
    sk = y_ref.shape[1]            # 120
    svc = sv // N_CHUNK            # 15  query rows per chunk
    skc = sk // N_CHUNK            # 30  key rows per chunk

    x_v = v_ref[0]                 # (60, 128)  query-side stream (also the residual)
    x_y = y_ref[0]                 # (120, 128) key/value-side stream

    # ---- Q and merged K|V projections (f32 MXU, f32 accumulation) -----------
    q2d = (jnp.dot(x_v, wq_ref[...], preferred_element_type=jnp.float32)
           + bq_ref[...]) * scale                                    # (60, 32); scale folded in
    kv2d = (jnp.dot(x_y, wkv_ref[...], preferred_element_type=jnp.float32)
            + bkv_ref[...])                                          # (120, 64) = [K | V]

    # ---- quirky torch reshape(-1, B, S, 8) chunk split -----------------------
    # chunk c, query  r = g*svc + i  <- q2d[c*svc + i, 8g:8g+8]
    # chunk c, key    t = g*skc + j  <- k2d[c*skc + j, 8g:8g+8]   (group-major key order;
    #   softmax + the V-weighted key sum are permutation invariant, K and V use the same
    #   permutation, so this matches the reference exactly)
    # Done as static sub-block copies into VMEM scratch -> no Mosaic reshapes, no 8-lane
    # HBM stores.
    for c in range(N_CHUNK):
        for g in range(N_CHUNK):
            q_sc[c, g * svc:(g + 1) * svc, :] = (
                q2d[c * svc:(c + 1) * svc, g * DH:(g + 1) * DH])
            k_sc[c, g * skc:(g + 1) * skc, :] = (
                kv2d[c * skc:(c + 1) * skc, g * DH:(g + 1) * DH])
            u_sc[c, g * skc:(g + 1) * skc, :] = (
                kv2d[c * skc:(c + 1) * skc, DIM_K + g * DH:DIM_K + (g + 1) * DH])

    qh = q_sc[...]                 # (4, 60, 8)
    kh = k_sc[...]                 # (4, 120, 8)
    vh = u_sc[...]                 # (4, 120, 8)

    # ---- chunk attention (reference's mask is a no-op -> plain softmax) ------
    s = jnp.einsum("gqd,gkd->gqk", qh, kh,
                   preferred_element_type=jnp.float32)               # (4, 60, 120)
    mx = jnp.max(s, axis=-1, keepdims=True)
    p = jnp.exp(s - mx)
    denom = jnp.sum(p, axis=-1, keepdims=True)
    o = jnp.einsum("gqk,gkd->gqd", p, vh,
                   preferred_element_type=jnp.float32) / denom       # exact divide

    # ---- chunk merge back to torch's (S, 32) layout (VMEM scratch) -----------
    for c in range(N_CHUNK):
        for g in range(N_CHUNK):
            m_sc[c * svc:(c + 1) * svc, g * DH:(g + 1) * DH] = (
                o[c, g * svc:(g + 1) * svc, :])

    # ---- o projection + Add_Norm (slab LayerNorm) + outer residual -----------
    proj = (jnp.dot(m_sc[...], wo_ref[...], preferred_element_type=jnp.float32)
            + bo_ref[...])                                           # (60, 128)
    res = x_v + proj                                 # Add_Norm residual (dropout = identity)
    inv_n = 1.0 / (res.shape[0] * res.shape[1])
    s1 = jnp.sum(res, axis=(0, 1), keepdims=True)    # single-pass LayerNorm over the slab
    s2 = jnp.sum(res * res, axis=(0, 1), keepdims=True)
    mean = s1 * inv_n
    var = s2 * inv_n - mean * mean                   # gamma=1, beta=0
    ln = (res - mean) * jax.lax.rsqrt(var + LN_EPS)
    o_ref[0] = ln + x_v                              # Cross_modalto: output = output + v


def cross_modal_attention(v, q, params):
    """v: (B, 60, 128) query stream, q: (B, 120, 128) key/value stream -> (B, 60, 128)."""
    b, sv, d = v.shape
    sk = q.shape[1]
    assert d == cfg.d_model and sv % N_CHUNK == 0 and sk % N_CHUNK == 0
    scale = 1.0 / math.sqrt(cfg.d_model)             # Mutihead_Attention.norm_fact

    flops = b * 2 * (sv * d * DIM_K                  # Q projection
                     + sk * d * 2 * DIM_K            # merged K|V projection
                     + 2 * N_CHUNK * sv * sk * DH    # QK^T and PV
                     + sv * DIM_K * d)               # o projection
    bytes_accessed = 4 * (b * (2 * sv * d + sk * d)
                          + d * DIM_K + DIM_K + d * 2 * DIM_K + 2 * DIM_K
                          + DIM_K * d + d)
    cost = pl.CostEstimate(flops=flops,
                           transcendentals=b * N_CHUNK * sv * sk,
                           bytes_accessed=bytes_accessed)

    kernel = functools.partial(_cross_modal_kernel, scale=scale)
    return pl.pallas_call(
        kernel,
        out_shape=jax.ShapeDtypeStruct((b, sv, d), jnp.float32),
        grid=(b,),
        in_specs=[
            pl.BlockSpec((1, sv, d), lambda i: (i, 0, 0)),        # v (query-side / residual)
            pl.BlockSpec((1, sk, d), lambda i: (i, 0, 0)),        # q (key/value-side)
            pl.BlockSpec((d, DIM_K), lambda i: (0, 0)),           # wq
            pl.BlockSpec((1, DIM_K), lambda i: (0, 0)),           # bq
            pl.BlockSpec((d, 2 * DIM_K), lambda i: (0, 0)),       # wkv (merged K|V)
            pl.BlockSpec((1, 2 * DIM_K), lambda i: (0, 0)),       # bkv
            pl.BlockSpec((DIM_K, d), lambda i: (0, 0)),           # wo
            pl.BlockSpec((1, d), lambda i: (0, 0)),               # bo
        ],
        out_specs=pl.BlockSpec((1, sv, d), lambda i: (i, 0, 0)),
        scratch_shapes=[
            pltpu.VMEM((N_CHUNK, sv, DH), jnp.float32),           # chunked Q
            pltpu.VMEM((N_CHUNK, sk, DH), jnp.float32),           # chunked K
            pltpu.VMEM((N_CHUNK, sk, DH), jnp.float32),           # chunked V
            pltpu.VMEM((sv, DIM_K), jnp.float32),                 # merged attention output
        ],
        compiler_params=pltpu.CompilerParams(
            dimension_semantics=("parallel",)),                   # 1 batch elem / TC on v7x
        cost_estimate=cost,
    )(v, q,
      params["q_w"], params["q_b"].reshape(1, DIM_K),
      params["kv_w"], params["kv_b"].reshape(1, 2 * DIM_K),
      params["o_w"], params["o_b"].reshape(1, d))


# =============================================================================
# Feed_Forward: Conv2d(1,16,(15,16),stride=(15,16),bias=False) + GELU + NCHW flatten.
# Left to XLA per the review (16-lane output; a dedicated Pallas kernel is slower).
# =============================================================================
def feed_forward(x, conv_w):
    b, s, d = x.shape
    h, w = s // CONV_KH, d // CONV_KW                              # 4, 8
    patches = x.reshape(b, h, CONV_KH, w, CONV_KW).transpose(0, 1, 3, 2, 4)
    patches = patches.reshape(b, h * w, CONV_KH * CONV_KW)         # (B, 32, 240)
    y = _gelu(jnp.einsum("bpk,kc->bpc", patches, conv_w))          # (B, 32, 16); dropout = id
    # Match torch's NCHW flatten order (c, h, w).
    return y.reshape(b, h, w, CONV_C).transpose(0, 3, 1, 2).reshape(b, CONV_C * h * w)


# =============================================================================
# Cross_modalto.forward(q, v)
# =============================================================================
def cross_modalto_forward(params, q, v):
    out = cross_modal_attention(v, q, params)        # (B, 60, 128): 1 fused pallas_call
    return feed_forward(out, params["conv_w"])       # (B, 512)


# =============================================================================
# Deterministic PyTorch-style parameter init
# =============================================================================
def _uniform(key, shape, bound):
    return jax.random.uniform(key, shape, jnp.float32, -bound, bound)


def init_params(key):
    ks = jax.random.split(key, 9)
    d, dk = cfg.d_model, DIM_K
    bd = 1.0 / math.sqrt(d)
    q_w, q_b = _uniform(ks[0], (d, dk), bd), _uniform(ks[1], (dk,), bd)
    k_w, k_b = _uniform(ks[2], (d, dk), bd), _uniform(ks[3], (dk,), bd)
    v_w, v_b = _uniform(ks[4], (d, dk), bd), _uniform(ks[5], (dk,), bd)
    bo = 1.0 / math.sqrt(dk)
    o_w, o_b = _uniform(ks[6], (dk, d), bo), _uniform(ks[7], (d,), bo)
    # Conv2d(1, 16, (15,16), bias=False): weight (16,1,15,16) -> matmul form (240, 16).
    bc = 1.0 / math.sqrt(CONV_KH * CONV_KW)
    conv_w = _uniform(ks[8], (CONV_KH * CONV_KW, CONV_C), bc)
    return dict(
        q_w=q_w, q_b=q_b,
        kv_w=jnp.concatenate([k_w, v_w], axis=1),    # merged K|V projection (128, 64)
        kv_b=jnp.concatenate([k_b, v_b], axis=0),
        o_w=o_w, o_b=o_b, conv_w=conv_w,
    )


# =============================================================================
if __name__ == "__main__":
    key = jax.random.PRNGKey(0)
    pkey, qkey, vkey = jax.random.split(key, 3)
    params = init_params(pkey)

    q = jax.random.normal(qkey, (BATCH, SEQ_K, cfg.d_model), jnp.float32)  # cross-modal stream
    v = jax.random.normal(vkey, (BATCH, SEQ_V, cfg.d_model), jnp.float32)  # query stream

    fwd = jax.jit(cross_modalto_forward)
    out = fwd(params, q, v)
    jax.block_until_ready(out)

    assert out.shape == (BATCH, CONV_C * (SEQ_V // CONV_KH) * (cfg.d_model // CONV_KW))
    print("KERNEL_OK")
</pallas_src>

<mosaic_0001>
module attributes {stable_mosaic.version = 11 : i64} {
  func.func @_cross_modal_kernel(%arg0: i32, %arg1: memref<1x60x128xf32, #tpu.memory_space<vmem>>, %arg2: memref<1x120x128xf32, #tpu.memory_space<vmem>>, %arg3: memref<128x32xf32, #tpu.memory_space<vmem>>, %arg4: memref<1x32xf32, #tpu.memory_space<vmem>>, %arg5: memref<128x64xf32, #tpu.memory_space<vmem>>, %arg6: memref<1x64xf32, #tpu.memory_space<vmem>>, %arg7: memref<32x128xf32, #tpu.memory_space<vmem>>, %arg8: memref<1x128xf32, #tpu.memory_space<vmem>>, %arg9: memref<1x60x128xf32, #tpu.memory_space<vmem>>, %arg10: memref<4x60x8xf32, #tpu.memory_space<vmem>>, %arg11: memref<4x120x8xf32, #tpu.memory_space<vmem>>, %arg12: memref<4x120x8xf32, #tpu.memory_space<vmem>>, %arg13: memref<60x32xf32, #tpu.memory_space<vmem>>) attributes {dimension_semantics = [#tpu.dimension_semantics<parallel>], iteration_bounds = array<i64: 2>, scalar_prefetch = 0 : i64, scratch_operands = 4 : i64, tpu.core_type = #tpu.core_type<tc>, window_params = [{transform_indices = @transform_0, window_bounds = array<i64: 1, 60, 128>}, {transform_indices = @transform_1, window_bounds = array<i64: 1, 120, 128>}, {pipeline_mode = #tpu.pipeline_mode<synchronous>, transform_indices = @transform_2, window_bounds = array<i64: 128, 32>}, {pipeline_mode = #tpu.pipeline_mode<synchronous>, transform_indices = @transform_3, window_bounds = array<i64: 1, 32>}, {pipeline_mode = #tpu.pipeline_mode<synchronous>, transform_indices = @transform_4, window_bounds = array<i64: 128, 64>}, {pipeline_mode = #tpu.pipeline_mode<synchronous>, transform_indices = @transform_5, window_bounds = array<i64: 1, 64>}, {pipeline_mode = #tpu.pipeline_mode<synchronous>, transform_indices = @transform_6, window_bounds = array<i64: 32, 128>}, {pipeline_mode = #tpu.pipeline_mode<synchronous>, transform_indices = @transform_7, window_bounds = array<i64: 1, 128>}, {transform_indices = @transform_8, window_bounds = array<i64: 1, 60, 128>}]} {
    %c0 = arith.constant 0 : index
    %c0_0 = arith.constant 0 : index
    %c0_1 = arith.constant 0 : index
    %0 = vector.load %arg1[%c0, %c0_0, %c0_1] : memref<1x60x128xf32, #tpu.memory_space<vmem>>, vector<1x60x128xf32>
    %1 = vector.shape_cast %0 : vector<1x60x128xf32> to vector<60x128xf32>
    %c0_2 = arith.constant 0 : index
    %c0_3 = arith.constant 0 : index
    %c0_4 = arith.constant 0 : index
    %2 = vector.load %arg2[%c0_2, %c0_3, %c0_4] : memref<1x120x128xf32, #tpu.memory_space<vmem>>, vector<1x120x128xf32>
    %3 = vector.shape_cast %2 : vector<1x120x128xf32> to vector<120x128xf32>
    %c0_5 = arith.constant 0 : index
    %c0_6 = arith.constant 0 : index
    %4 = vector.load %arg3[%c0_5, %c0_6] : memref<128x32xf32, #tpu.memory_space<vmem>>, vector<128x32xf32>
    %cst = arith.constant dense<0.000000e+00> : vector<60x32xf32>
    %5 = tpu.matmul %1, %4, %cst {dimension_numbers = #tpu.dot_dimension_numbers<[1], [0], [0], [1], [0, 0, 1, 1], [], []>} : vector<60x128xf32>, vector<128x32xf32>, vector<60x32xf32> -> vector<60x32xf32>
    %c0_7 = arith.constant 0 : index
    %c0_8 = arith.constant 0 : index
    %6 = vector.load %arg4[%c0_7, %c0_8] : memref<1x32xf32, #tpu.memory_space<vmem>>, vector<1x32xf32>
    %7 = vector.broadcast %6 : vector<1x32xf32> to vector<60x32xf32>
    %8 = arith.addf %5, %7 : vector<60x32xf32>
    %cst_9 = arith.constant 0.0883883461 : f32
    %9 = vector.broadcast %cst_9 : f32 to vector<60x32xf32>
    %10 = arith.mulf %8, %9 : vector<60x32xf32>
    %c0_10 = arith.constant 0 : index
    %c0_11 = arith.constant 0 : index
    %11 = vector.load %arg5[%c0_10, %c0_11] : memref<128x64xf32, #tpu.memory_space<vmem>>, vector<128x64xf32>
    %cst_12 = arith.constant dense<0.000000e+00> : vector<120x64xf32>
    %12 = tpu.matmul %3, %11, %cst_12 {dimension_numbers = #tpu.dot_dimension_numbers<[1], [0], [0], [1], [0, 0, 1, 1], [], []>} : vector<120x128xf32>, vector<128x64xf32>, vector<120x64xf32> -> vector<120x64xf32>
    %c0_13 = arith.constant 0 : index
    %c0_14 = arith.constant 0 : index
    %13 = vector.load %arg6[%c0_13, %c0_14] : memref<1x64xf32, #tpu.memory_space<vmem>>, vector<1x64xf32>
    %14 = vector.broadcast %13 : vector<1x64xf32> to vector<120x64xf32>
    %15 = arith.addf %12, %14 : vector<120x64xf32>
    %16 = vector.extract_strided_slice %10 {offsets = [0, 0], sizes = [15, 8], strides = [1, 1]} : vector<60x32xf32> to vector<15x8xf32>
    %c0_15 = arith.constant 0 : index
    %c0_16 = arith.constant 0 : index
    %c0_17 = arith.constant 0 : index
    %17 = vector.load %arg10[%c0_15, %c0_16, %c0_17] : memref<4x60x8xf32, #tpu.memory_space<vmem>>, vector<1x15x8xf32>
    %18 = vector.shape_cast %17 : vector<1x15x8xf32> to vector<15x8xf32>
    %19 = vector.shape_cast %16 : vector<15x8xf32> to vector<1x15x8xf32>
    tpu.vector_store %arg10[%c0_15, %c0_16, %c0_17], %19 {strides = array<i32>} : memref<4x60x8xf32, #tpu.memory_space<vmem>>, vector<1x15x8xf32>,
    %20 = vector.extract_strided_slice %15 {offsets = [0, 0], sizes = [30, 8], strides = [1, 1]} : vector<120x64xf32> to vector<30x8xf32>
    %c0_18 = arith.constant 0 : index
    %c0_19 = arith.constant 0 : index
    %c0_20 = arith.constant 0 : index
    %21 = vector.load %arg11[%c0_18, %c0_19, %c0_20] : memref<4x120x8xf32, #tpu.memory_space<vmem>>, vector<1x30x8xf32>
    %22 = vector.shape_cast %21 : vector<1x30x8xf32> to vector<30x8xf32>
    %23 = vector.shape_cast %20 : vector<30x8xf32> to vector<1x30x8xf32>
    tpu.vector_store %arg11[%c0_18, %c0_19, %c0_20], %23 {strides = array<i32>} : memref<4x120x8xf32, #tpu.memory_space<vmem>>, vector<1x30x8xf32>,
    %24 = vector.extract_strided_slice %15 {offsets = [0, 32], sizes = [30, 8], strides = [1, 1]} : vector<120x64xf32> to vector<30x8xf32>
    %c0_21 = arith.constant 0 : index
    %c0_22 = arith.constant 0 : index
    %c0_23 = arith.constant 0 : index
    %25 = vector.load %arg12[%c0_21, %c0_22, %c0_23] : memref<4x120x8xf32, #tpu.memory_space<vmem>>, vector<1x30x8xf32>
    %26 = vector.shape_cast %25 : vector<1x30x8xf32> to vector<30x8xf32>
    %27 = vector.shape_cast %24 : vector<30x8xf32> to vector<1x30x8xf32>
    tpu.vector_store %arg12[%c0_21, %c0_22, %c0_23], %27 {strides = array<i32>} : memref<4x120x8xf32, #tpu.memory_space<vmem>>, vector<1x30x8xf32>,
    %28 = vector.extract_strided_slice %10 {offsets = [0, 8], sizes = [15, 8], strides = [1, 1]} : vector<60x32xf32> to vector<15x8xf32>
    %c0_24 = arith.constant 0 : index
    %c15 = arith.constant 15 : index
    %c0_25 = arith.constant 0 : index
    %29 = vector.load %arg10[%c0_24, %c15, %c0_25] : memref<4x60x8xf32, #tpu.memory_space<vmem>>, vector<1x15x8xf32>
    %30 = vector.shape_cast %29 : vector<1x15x8xf32> to vector<15x8xf32>
    %31 = vector.shape_cast %28 : vector<15x8xf32> to vector<1x15x8xf32>
    tpu.vector_store %arg10[%c0_24, %c15, %c0_25], %31 {strides = array<i32>} : memref<4x60x8xf32, #tpu.memory_space<vmem>>, vector<1x15x8xf32>,
    %32 = vector.extract_strided_slice %15 {offsets = [0, 8], sizes = [30, 8], strides = [1, 1]} : vector<120x64xf32> to vector<30x8xf32>
    %c0_26 = arith.constant 0 : index
    %c30 = arith.constant 30 : index
    %c0_27 = arith.constant 0 : index
    %33 = vector.load %arg11[%c0_26, %c30, %c0_27] : memref<4x120x8xf32, #tpu.memory_space<vmem>>, vector<1x30x8xf32>
    %34 = vector.shape_cast %33 : vector<1x30x8xf32> to vector<30x8xf32>
    %35 = vector.shape_cast %32 : vector<30x8xf32> to vector<1x30x8xf32>
    tpu.vector_store %arg11[%c0_26, %c30, %c0_27], %35 {strides = array<i32>} : memref<4x120x8xf32, #tpu.memory_space<vmem>>, vector<1x30x8xf32>,
    %36 = vector.extract_strided_slice %15 {offsets = [0, 40], sizes = [30, 8], strides = [1, 1]} : vector<120x64xf32> to vector<30x8xf32>
    %c0_28 = arith.constant 0 : index
    %c30_29 = arith.constant 30 : index
    %c0_30 = arith.constant 0 : index
    %37 = vector.load %arg12[%c0_28, %c30_29, %c0_30] : memref<4x120x8xf32, #tpu.memory_space<vmem>>, vector<1x30x8xf32>
    %38 = vector.shape_cast %37 : vector<1x30x8xf32> to vector<30x8xf32>
    %39 = vector.shape_cast %36 : vector<30x8xf32> to vector<1x30x8xf32>
    tpu.vector_store %arg12[%c0_28, %c30_29, %c0_30], %39 {strides = array<i32>} : memref<4x120x8xf32, #tpu.memory_space<vmem>>, vector<1x30x8xf32>,
    %40 = vector.extract_strided_slice %10 {offsets = [0, 16], sizes = [15, 8], strides = [1, 1]} : vector<60x32xf32> to vector<15x8xf32>
    %c0_31 = arith.constant 0 : index
    %c30_32 = arith.constant 30 : index
    %c0_33 = arith.constant 0 : index
    %41 = vector.load %arg10[%c0_31, %c30_32, %c0_33] : memref<4x60x8xf32, #tpu.memory_space<vmem>>, vector<1x15x8xf32>
    %42 = vector.shape_cast %41 : vector<1x15x8xf32> to vector<15x8xf32>
    %43 = vector.shape_cast %40 : vector<15x8xf32> to vector<1x15x8xf32>
    tpu.vector_store %arg10[%c0_31, %c30_32, %c0_33], %43 {strides = array<i32>} : memref<4x60x8xf32, #tpu.memory_space<vmem>>, vector<1x15x8xf32>,
    %44 = vector.extract_strided_slice %15 {offsets = [0, 16], sizes = [30, 8], strides = [1, 1]} : vector<120x64xf32> to vector<30x8xf32>
    %c0_34 = arith.constant 0 : index
    %c60 = arith.constant 60 : index
    %c0_35 = arith.constant 0 : index
    %45 = vector.load %arg11[%c0_34, %c60, %c0_35] : memref<4x120x8xf32, #tpu.memory_space<vmem>>, vector<1x30x8xf32>
    %46 = vector.shape_cast %45 : vector<1x30x8xf32> to vector<30x8xf32>
    %47 = vector.shape_cast %44 : vector<30x8xf32> to vector<1x30x8xf32>
    tpu.vector_store %arg11[%c0_34, %c60, %c0_35], %47 {strides = array<i32>} : memref<4x120x8xf32, #tpu.memory_space<vmem>>, vector<1x30x8xf32>,
    %48 = vector.extract_strided_slice %15 {offsets = [0, 48], sizes = [30, 8], strides = [1, 1]} : vector<120x64xf32> to vector<30x8xf32>
    %c0_36 = arith.constant 0 : index
    %c60_37 = arith.constant 60 : index
    %c0_38 = arith.constant 0 : index
    %49 = vector.load %arg12[%c0_36, %c60_37, %c0_38] : memref<4x120x8xf32, #tpu.memory_space<vmem>>, vector<1x30x8xf32>
    %50 = vector.shape_cast %49 : vector<1x30x8xf32> to vector<30x8xf32>
    %51 = vector.shape_cast %48 : vector<30x8xf32> to vector<1x30x8xf32>
    tpu.vector_store %arg12[%c0_36, %c60_37, %c0_38], %51 {strides = array<i32>} : memref<4x120x8xf32, #tpu.memory_space<vmem>>, vector<1x30x8xf32>,
    %52 = vector.extract_strided_slice %10 {offsets = [0, 24], sizes = [15, 8], strides = [1, 1]} : vector<60x32xf32> to vector<15x8xf32>
    %c0_39 = arith.constant 0 : index
    %c45 = arith.constant 45 : index
    %c0_40 = arith.constant 0 : index
    %53 = vector.load %arg10[%c0_39, %c45, %c0_40] : memref<4x60x8xf32, #tpu.memory_space<vmem>>, vector<1x15x8xf32>
    %54 = vector.shape_cast %53 : vector<1x15x8xf32> to vector<15x8xf32>
    %55 = vector.shape_cast %52 : vector<15x8xf32> to vector<1x15x8xf32>
    tpu.vector_store %arg10[%c0_39, %c45, %c0_40], %55 {strides = array<i32>} : memref<4x60x8xf32, #tpu.memory_space<vmem>>, vector<1x15x8xf32>,
    %56 = vector.extract_strided_slice %15 {offsets = [0, 24], sizes = [30, 8], strides = [1, 1]} : vector<120x64xf32> to vector<30x8xf32>
    %c0_41 = arith.constant 0 : index
    %c90 = arith.constant 90 : index
    %c0_42 = arith.constant 0 : index
    %57 = vector.load %arg11[%c0_41, %c90, %c0_42] : memref<4x120x8xf32, #tpu.memory_space<vmem>>, vector<1x30x8xf32>
    %58 = vector.shape_cast %57 : vector<1x30x8xf32> to vector<30x8xf32>
    %59 = vector.shape_cast %56 : vector<30x8xf32> to vector<1x30x8xf32>
    tpu.vector_store %arg11[%c0_41, %c90, %c0_42], %59 {strides = array<i32>} : memref<4x120x8xf32, #tpu.memory_space<vmem>>, vector<1x30x8xf32>,
    %60 = vector.extract_strided_slice %15 {offsets = [0, 56], sizes = [30, 8], strides = [1, 1]} : vector<120x64xf32> to vector<30x8xf32>
    %c0_43 = arith.constant 0 : index
    %c90_44 = arith.constant 90 : index
    %c0_45 = arith.constant 0 : index
    %61 = vector.load %arg12[%c0_43, %c90_44, %c0_45] : memref<4x120x8xf32, #tpu.memory_space<vmem>>, vector<1x30x8xf32>
    %62 = vector.shape_cast %61 : vector<1x30x8xf32> to vector<30x8xf32>
    %63 = vector.shape_cast %60 : vector<30x8xf32> to vector<1x30x8xf32>
    tpu.vector_store %arg12[%c0_43, %c90_44, %c0_45], %63 {strides = array<i32>} : memref<4x120x8xf32, #tpu.memory_space<vmem>>, vector<1x30x8xf32>,
    %64 = vector.extract_strided_slice %10 {offsets = [15, 0], sizes = [15, 8], strides = [1, 1]} : vector<60x32xf32> to vector<15x8xf32>
    %c1 = arith.constant 1 : index
    %c0_46 = arith.constant 0 : index
    %c0_47 = arith.constant 0 : index
    %65 = vector.load %arg10[%c1, %c0_46, %c0_47] : memref<4x60x8xf32, #tpu.memory_space<vmem>>, vector<1x15x8xf32>
    %66 = vector.shape_cast %65 : vector<1x15x8xf32> to vector<15x8xf32>
    %67 = vector.shape_cast %64 : vector<15x8xf32> to vector<1x15x8xf32>
    tpu.vector_store %arg10[%c1, %c0_46, %c0_47], %67 {strides = array<i32>} : memref<4x60x8xf32, #tpu.memory_space<vmem>>, vector<1x15x8xf32>,
    %68 = vector.extract_strided_slice %15 {offsets = [30, 0], sizes = [30, 8], strides = [1, 1]} : vector<120x64xf32> to vector<30x8xf32>
    %c1_48 = arith.constant 1 : index
    %c0_49 = arith.constant 0 : index
    %c0_50 = arith.constant 0 : index
    %69 = vector.load %arg11[%c1_48, %c0_49, %c0_50] : memref<4x120x8xf32, #tpu.memory_space<vmem>>, vector<1x30x8xf32>
    %70 = vector.shape_cast %69 : vector<1x30x8xf32> to vector<30x8xf32>
    %71 = vector.shape_cast %68 : vector<30x8xf32> to vector<1x30x8xf32>
    tpu.vector_store %arg11[%c1_48, %c0_49, %c0_50], %71 {strides = array<i32>} : memref<4x120x8xf32, #tpu.memory_space<vmem>>, vector<1x30x8xf32>,
    %72 = vector.extract_strided_slice %15 {offsets = [30, 32], sizes = [30, 8], strides = [1, 1]} : vector<120x64xf32> to vector<30x8xf32>
    %c1_51 = arith.constant 1 : index
    %c0_52 = arith.constant 0 : index
    %c0_53 = arith.constant 0 : index
    %73 = vector.load %arg12[%c1_51, %c0_52, %c0_53] : memref<4x120x8xf32, #tpu.memory_space<vmem>>, vector<1x30x8xf32>
    %74 = vector.shape_cast %73 : vector<1x30x8xf32> to vector<30x8xf32>
    %75 = vector.shape_cast %72 : vector<30x8xf32> to vector<1x30x8xf32>
    tpu.vector_store %arg12[%c1_51, %c0_52, %c0_53], %75 {strides = array<i32>} : memref<4x120x8xf32, #tpu.memory_space<vmem>>, vector<1x30x8xf32>,
    %76 = vector.extract_strided_slice %10 {offsets = [15, 8], sizes = [15, 8], strides = [1, 1]} : vector<60x32xf32> to vector<15x8xf32>
    %c1_54 = arith.constant 1 : index
    %c15_55 = arith.constant 15 : index
    %c0_56 = arith.constant 0 : index
    %77 = vector.load %arg10[%c1_54, %c15_55, %c0_56] : memref<4x60x8xf32, #tpu.memory_space<vmem>>, vector<1x15x8xf32>
    %78 = vector.shape_cast %77 : vector<1x15x8xf32> to vector<15x8xf32>
    %79 = vector.shape_cast %76 : vector<15x8xf32> to vector<1x15x8xf32>
    tpu.vector_store %arg10[%c1_54, %c15_55, %c0_56], %79 {strides = array<i32>} : memref<4x60x8xf32, #tpu.memory_space<vmem>>, vector<1x15x8xf32>,
    %80 = vector.extract_strided_slice %15 {offsets = [30, 8], sizes = [30, 8], strides = [1, 1]} : vector<120x64xf32> to vector<30x8xf32>
    %c1_57 = arith.constant 1 : index
    %c30_58 = arith.constant 30 : index
    %c0_59 = arith.constant 0 : index
    %81 = vector.load %arg11[%c1_57, %c30_58, %c0_59] : memref<4x120x8xf32, #tpu.memory_space<vmem>>, vector<1x30x8xf32>
    %82 = vector.shape_cast %81 : vector<1x30x8xf32> to vector<30x8xf32>
    %83 = vector.shape_cast %80 : vector<30x8xf32> to vector<1x30x8xf32>
    tpu.vector_store %arg11[%c1_57, %c30_58, %c0_59], %83 {strides = array<i32>} : memref<4x120x8xf32, #tpu.memory_space<vmem>>, vector<1x30x8xf32>,
    %84 = vector.extract_strided_slice %15 {offsets = [30, 40], sizes = [30, 8], strides = [1, 1]} : vector<120x64xf32> to vector<30x8xf32>
    %c1_60 = arith.constant 1 : index
    %c30_61 = arith.constant 30 : index
    %c0_62 = arith.constant 0 : index
    %85 = vector.load %arg12[%c1_60, %c30_61, %c0_62] : memref<4x120x8xf32, #tpu.memory_space<vmem>>, vector<1x30x8xf32>
    %86 = vector.shape_cast %85 : vector<1x30x8xf32> to vector<30x8xf32>
    %87 = vector.shape_cast %84 : vector<30x8xf32> to vector<1x30x8xf32>
    tpu.vector_store %arg12[%c1_60, %c30_61, %c0_62], %87 {strides = array<i32>} : memref<4x120x8xf32, #tpu.memory_space<vmem>>, vector<1x30x8xf32>,
    %88 = vector.extract_strided_slice %10 {offsets = [15, 16], sizes = [15, 8], strides = [1, 1]} : vector<60x32xf32> to vector<15x8xf32>
    %c1_63 = arith.constant 1 : index
    %c30_64 = arith.constant 30 : index
    %c0_65 = arith.constant 0 : index
    %89 = vector.load %arg10[%c1_63, %c30_64, %c0_65] : memref<4x60x8xf32, #tpu.memory_space<vmem>>, vector<1x15x8xf32>
    %90 = vector.shape_cast %89 : vector<1x15x8xf32> to vector<15x8xf32>
    %91 = vector.shape_cast %88 : vector<15x8xf32> to vector<1x15x8xf32>
    tpu.vector_store %arg10[%c1_63, %c30_64, %c0_65], %91 {strides = array<i32>} : memref<4x60x8xf32, #tpu.memory_space<vmem>>, vector<1x15x8xf32>,
    %92 = vector.extract_strided_slice %15 {offsets = [30, 16], sizes = [30, 8], strides = [1, 1]} : vector<120x64xf32> to vector<30x8xf32>
    %c1_66 = arith.constant 1 : index
    %c60_67 = arith.constant 60 : index
    %c0_68 = arith.constant 0 : index
    %93 = vector.load %arg11[%c1_66, %c60_67, %c0_68] : memref<4x120x8xf32, #tpu.memory_space<vmem>>, vector<1x30x8xf32>
    %94 = vector.shape_cast %93 : vector<1x30x8xf32> to vector<30x8xf32>
    %95 = vector.shape_cast %92 : vector<30x8xf32> to vector<1x30x8xf32>
    tpu.vector_store %arg11[%c1_66, %c60_67, %c0_68], %95 {strides = array<i32>} : memref<4x120x8xf32, #tpu.memory_space<vmem>>, vector<1x30x8xf32>,
    %96 = vector.extract_strided_slice %15 {offsets = [30, 48], sizes = [30, 8], strides = [1, 1]} : vector<120x64xf32> to vector<30x8xf32>
    %c1_69 = arith.constant 1 : index
    %c60_70 = arith.constant 60 : index
    %c0_71 = arith.constant 0 : index
    %97 = vector.load %arg12[%c1_69, %c60_70, %c0_71] : memref<4x120x8xf32, #tpu.memory_space<vmem>>, vector<1x30x8xf32>
    %98 = vector.shape_cast %97 : vector<1x30x8xf32> to vector<30x8xf32>
    %99 = vector.shape_cast %96 : vector<30x8xf32> to vector<1x30x8xf32>
    tpu.vector_store %arg12[%c1_69, %c60_70, %c0_71], %99 {strides = array<i32>} : memref<4x120x8xf32, #tpu.memory_space<vmem>>, vector<1x30x8xf32>,
    %100 = vector.extract_strided_slice %10 {offsets = [15, 24], sizes = [15, 8], strides = [1, 1]} : vector<60x32xf32> to vector<15x8xf32>
    %c1_72 = arith.constant 1 : index
    %c45_73 = arith.constant 45 : index
    %c0_74 = arith.constant 0 : index
    %101 = vector.load %arg10[%c1_72, %c45_73, %c0_74] : memref<4x60x8xf32, #tpu.memory_space<vmem>>, vector<1x15x8xf32>
    %102 = vector.shape_cast %101 : vector<1x15x8xf32> to vector<15x8xf32>
    %103 = vector.shape_cast %100 : vector<15x8xf32> to vector<1x15x8xf32>
    tpu.vector_store %arg10[%c1_72, %c45_73, %c0_74], %103 {strides = array<i32>} : memref<4x60x8xf32, #tpu.memory_space<vmem>>, vector<1x15x8xf32>,
    %104 = vector.extract_strided_slice %15 {offsets = [30, 24], sizes = [30, 8], strides = [1, 1]} : vector<120x64xf32> to vector<30x8xf32>
    %c1_75 = arith.constant 1 : index
    %c90_76 = arith.constant 90 : index
    %c0_77 = arith.constant 0 : index
    %105 = vector.load %arg11[%c1_75, %c90_76, %c0_77] : memref<4x120x8xf32, #tpu.memory_space<vmem>>, vector<1x30x8xf32>
    %106 = vector.shape_cast %105 : vector<1x30x8xf32> to vector<30x8xf32>
    %107 = vector.shape_cast %104 : vector<30x8xf32> to vector<1x30x8xf32>
    tpu.vector_store %arg11[%c1_75, %c90_76, %c0_77], %107 {strides = array<i32>} : memref<4x120x8xf32, #tpu.memory_space<vmem>>, vector<1x30x8xf32>,
    %108 = vector.extract_strided_slice %15 {offsets = [30, 56], sizes = [30, 8], strides = [1, 1]} : vector<120x64xf32> to vector<30x8xf32>
    %c1_78 = arith.constant 1 : index
    %c90_79 = arith.constant 90 : index
    %c0_80 = arith.constant 0 : index
    %109 = vector.load %arg12[%c1_78, %c90_79, %c0_80] : memref<4x120x8xf32, #tpu.memory_space<vmem>>, vector<1x30x8xf32>
    %110 = vector.shape_cast %109 : vector<1x30x8xf32> to vector<30x8xf32>
    %111 = vector.shape_cast %108 : vector<30x8xf32> to vector<1x30x8xf32>
    tpu.vector_store %arg12[%c1_78, %c90_79, %c0_80], %111 {strides = array<i32>} : memref<4x120x8xf32, #tpu.memory_space<vmem>>, vector<1x30x8xf32>,
    %112 = vector.extract_strided_slice %10 {offsets = [30, 0], sizes = [15, 8], strides = [1, 1]} : vector<60x32xf32> to vector<15x8xf32>
    %c2 = arith.constant 2 : index
    %c0_81 = arith.constant 0 : index
    %c0_82 = arith.constant 0 : index
    %113 = vector.load %arg10[%c2, %c0_81, %c0_82] : memref<4x60x8xf32, #tpu.memory_space<vmem>>, vector<1x15x8xf32>
    %114 = vector.shape_cast %113 : vector<1x15x8xf32> to vector<15x8xf32>
    %115 = vector.shape_cast %112 : vector<15x8xf32> to vector<1x15x8xf32>
    tpu.vector_store %arg10[%c2, %c0_81, %c0_82], %115 {strides = array<i32>} : memref<4x60x8xf32, #tpu.memory_space<vmem>>, vector<1x15x8xf32>,
    %116 = vector.extract_strided_slice %15 {offsets = [60, 0], sizes = [30, 8], strides = [1, 1]} : vector<120x64xf32> to vector<30x8xf32>
    %c2_83 = arith.constant 2 : index
    %c0_84 = arith.constant 0 : index
    %c0_85 = arith.constant 0 : index
    %117 = vector.load %arg11[%c2_83, %c0_84, %c0_85] : memref<4x120x8xf32, #tpu.memory_space<vmem>>, vector<1x30x8xf32>
    %118 = vector.shape_cast %117 : vector<1x30x8xf32> to vector<30x8xf32>
    %119 = vector.shape_cast %116 : vector<30x8xf32> to vector<1x30x8xf32>
    tpu.vector_store %arg11[%c2_83, %c0_84, %c0_85], %119 {strides = array<i32>} : memref<4x120x8xf32, #tpu.memory_space<vmem>>, vector<1x30x8xf32>,
    %120 = vector.extract_strided_slice %15 {offsets = [60, 32], sizes = [30, 8], strides = [1, 1]} : vector<120x64xf32> to vector<30x8xf32>
    %c2_86 = arith.constant 2 : index
    %c0_87 = arith.constant 0 : index
    %c0_88 = arith.constant 0 : index
    %121 = vector.load %arg12[%c2_86, %c0_87, %c0_88] : memref<4x120x8xf32, #tpu.memory_space<vmem>>, vector<1x30x8xf32>
    %122 = vector.shape_cast %121 : vector<1x30x8xf32> to vector<30x8xf32>
    %123 = vector.shape_cast %120 : vector<30x8xf32> to vector<1x30x8xf32>
    tpu.vector_store %arg12[%c2_86, %c0_87, %c0_88], %123 {strides = array<i32>} : memref<4x120x8xf32, #tpu.memory_space<vmem>>, vector<1x30x8xf32>,
    %124 = vector.extract_strided_slice %10 {offsets = [30, 8], sizes = [15, 8], strides = [1, 1]} : vector<60x32xf32> to vector<15x8xf32>
    %c2_89 = arith.constant 2 : index
    %c15_90 = arith.constant 15 : index
    %c0_91 = arith.constant 0 : index
    %125 = vector.load %arg10[%c2_89, %c15_90, %c0_91] : memref<4x60x8xf32, #tpu.memory_space<vmem>>, vector<1x15x8xf32>
    %126 = vector.shape_cast %125 : vector<1x15x8xf32> to vector<15x8xf32>
    %127 = vector.shape_cast %124 : vector<15x8xf32> to vector<1x15x8xf32>
    tpu.vector_store %arg10[%c2_89, %c15_90, %c0_91], %127 {strides = array<i32>} : memref<4x60x8xf32, #tpu.memory_space<vmem>>, vector<1x15x8xf32>,
    %128 = vector.extract_strided_slice %15 {offsets = [60, 8], sizes = [30, 8], strides = [1, 1]} : vector<120x64xf32> to vector<30x8xf32>
    %c2_92 = arith.constant 2 : index
    %c30_93 = arith.constant 30 : index
    %c0_94 = arith.constant 0 : index
    %129 = vector.load %arg11[%c2_92, %c30_93, %c0_94] : memref<4x120x8xf32, #tpu.memory_space<vmem>>, vector<1x30x8xf32>
    %130 = vector.shape_cast %129 : vector<1x30x8xf32> to vector<30x8xf32>
    %131 = vector.shape_cast %128 : vector<30x8xf32> to vector<1x30x8xf32>
    tpu.vector_store %arg11[%c2_92, %c30_93, %c0_94], %131 {strides = array<i32>} : memref<4x120x8xf32, #tpu.memory_space<vmem>>, vector<1x30x8xf32>,
    %132 = vector.extract_strided_slice %15 {offsets = [60, 40], sizes = [30, 8], strides = [1, 1]} : vector<120x64xf32> to vector<30x8xf32>
    %c2_95 = arith.constant 2 : index
    %c30_96 = arith.constant 30 : index
    %c0_97 = arith.constant 0 : index
    %133 = vector.load %arg12[%c2_95, %c30_96, %c0_97] : memref<4x120x8xf32, #tpu.memory_space<vmem>>, vector<1x30x8xf32>
    %134 = vector.shape_cast %133 : vector<1x30x8xf32> to vector<30x8xf32>
    %135 = vector.shape_cast %132 : vector<30x8xf32> to vector<1x30x8xf32>
    tpu.vector_store %arg12[%c2_95, %c30_96, %c0_97], %135 {strides = array<i32>} : memref<4x120x8xf32, #tpu.memory_space<vmem>>, vector<1x30x8xf32>,
    %136 = vector.extract_strided_slice %10 {offsets = [30, 16], sizes = [15, 8], strides = [1, 1]} : vector<60x32xf32> to vector<15x8xf32>
    %c2_98 = arith.constant 2 : index
    %c30_99 = arith.constant 30 : index
    %c0_100 = arith.constant 0 : index
    %137 = vector.load %arg10[%c2_98, %c30_99, %c0_100] : memref<4x60x8xf32, #tpu.memory_space<vmem>>, vector<1x15x8xf32>
    %138 = vector.shape_cast %137 : vector<1x15x8xf32> to vector<15x8xf32>
    %139 = vector.shape_cast %136 : vector<15x8xf32> to vector<1x15x8xf32>
    tpu.vector_store %arg10[%c2_98, %c30_99, %c0_100], %139 {strides = array<i32>} : memref<4x60x8xf32, #tpu.memory_space<vmem>>, vector<1x15x8xf32>,
    %140 = vector.extract_strided_slice %15 {offsets = [60, 16], sizes = [30, 8], strides = [1, 1]} : vector<120x64xf32> to vector<30x8xf32>
    %c2_101 = arith.constant 2 : index
    %c60_102 = arith.constant 60 : index
    %c0_103 = arith.constant 0 : index
    %141 = vector.load %arg11[%c2_101, %c60_102, %c0_103] : memref<4x120x8xf32, #tpu.memory_space<vmem>>, vector<1x30x8xf32>
    %142 = vector.shape_cast %141 : vector<1x30x8xf32> to vector<30x8xf32>
    %143 = vector.shape_cast %140 : vector<30x8xf32> to vector<1x30x8xf32>
    tpu.vector_store %arg11[%c2_101, %c60_102, %c0_103], %143 {strides = array<i32>} : memref<4x120x8xf32, #tpu.memory_space<vmem>>, vector<1x30x8xf32>,
    %144 = vector.extract_strided_slice %15 {offsets = [60, 48], sizes = [30, 8], strides = [1, 1]} : vector<120x64xf32> to vector<30x8xf32>
    %c2_104 = arith.constant 2 : index
    %c60_105 = arith.constant 60 : index
    %c0_106 = arith.constant 0 : index
    %145 = vector.load %arg12[%c2_104, %c60_105, %c0_106] : memref<4x120x8xf32, #tpu.memory_space<vmem>>, vector<1x30x8xf32>
    %146 = vector.shape_cast %145 : vector<1x30x8xf32> to vector<30x8xf32>
    %147 = vector.shape_cast %144 : vector<30x8xf32> to vector<1x30x8xf32>
    tpu.vector_store %arg12[%c2_104, %c60_105, %c0_106], %147 {strides = array<i32>} : memref<4x120x8xf32, #tpu.memory_space<vmem>>, vector<1x30x8xf32>,
    %148 = vector.extract_strided_slice %10 {offsets = [30, 24], sizes = [15, 8], strides = [1, 1]} : vector<60x32xf32> to vector<15x8xf32>
    %c2_107 = arith.constant 2 : index
    %c45_108 = arith.constant 45 : index
    %c0_109 = arith.constant 0 : index
    %149 = vector.load %arg10[%c2_107, %c45_108, %c0_109] : memref<4x60x8xf32, #tpu.memory_space<vmem>>, vector<1x15x8xf32>
    %150 = vector.shape_cast %149 : vector<1x15x8xf32> to vector<15x8xf32>
    %151 = vector.shape_cast %148 : vector<15x8xf32> to vector<1x15x8xf32>
    tpu.vector_store %arg10[%c2_107, %c45_108, %c0_109], %151 {strides = array<i32>} : memref<4x60x8xf32, #tpu.memory_space<vmem>>, vector<1x15x8xf32>,
    %152 = vector.extract_strided_slice %15 {offsets = [60, 24], sizes = [30, 8], strides = [1, 1]} : vector<120x64xf32> to vector<30x8xf32>
    %c2_110 = arith.constant 2 : index
    %c90_111 = arith.constant 90 : index
    %c0_112 = arith.constant 0 : index
    %153 = vector.load %arg11[%c2_110, %c90_111, %c0_112] : memref<4x120x8xf32, #tpu.memory_space<vmem>>, vector<1x30x8xf32>
    %154 = vector.shape_cast %153 : vector<1x30x8xf32> to vector<30x8xf32>
    %155 = vector.shape_cast %152 : vector<30x8xf32> to vector<1x30x8xf32>
    tpu.vector_store %arg11[%c2_110, %c90_111, %c0_112], %155 {strides = array<i32>} : memref<4x120x8xf32, #tpu.memory_space<vmem>>, vector<1x30x8xf32>,
    %156 = vector.extract_strided_slice %15 {offsets = [60, 56], sizes = [30, 8], strides = [1, 1]} : vector<120x64xf32> to vector<30x8xf32>
    %c2_113 = arith.constant 2 : index
    %c90_114 = arith.constant 90 : index
    %c0_115 = arith.constant 0 : index
    %157 = vector.load %arg12[%c2_113, %c90_114, %c0_115] : memref<4x120x8xf32, #tpu.memory_space<vmem>>, vector<1x30x8xf32>
    %158 = vector.shape_cast %157 : vector<1x30x8xf32> to vector<30x8xf32>
    %159 = vector.shape_cast %156 : vector<30x8xf32> to vector<1x30x8xf32>
    tpu.vector_store %arg12[%c2_113, %c90_114, %c0_115], %159 {strides = array<i32>} : memref<4x120x8xf32, #tpu.memory_space<vmem>>, vector<1x30x8xf32>,
    %160 = vector.extract_strided_slice %10 {offsets = [45, 0], sizes = [15, 8], strides = [1, 1]} : vector<60x32xf32> to vector<15x8xf32>
    %c3 = arith.constant 3 : index
    %c0_116 = arith.constant 0 : index
    %c0_117 = arith.constant 0 : index
    %161 = vector.load %arg10[%c3, %c0_116, %c0_117] : memref<4x60x8xf32, #tpu.memory_space<vmem>>, vector<1x15x8xf32>
    %162 = vector.shape_cast %161 : vector<1x15x8xf32> to vector<15x8xf32>
    %163 = vector.shape_cast %160 : vector<15x8xf32> to vector<1x15x8xf32>
    tpu.vector_store %arg10[%c3, %c0_116, %c0_117], %163 {strides = array<i32>} : memref<4x60x8xf32, #tpu.memory_space<vmem>>, vector<1x15x8xf32>,
    %164 = vector.extract_strided_slice %15 {offsets = [90, 0], sizes = [30, 8], strides = [1, 1]} : vector<120x64xf32> to vector<30x8xf32>
    %c3_118 = arith.constant 3 : index
    %c0_119 = arith.constant 0 : index
    %c0_120 = arith.constant 0 : index
    %165 = vector.load %arg11[%c3_118, %c0_119, %c0_120] : memref<4x120x8xf32, #tpu.memory_space<vmem>>, vector<1x30x8xf32>
    %166 = vector.shape_cast %165 : vector<1x30x8xf32> to vector<30x8xf32>
    %167 = vector.shape_cast %164 : vector<30x8xf32> to vector<1x30x8xf32>
    tpu.vector_store %arg11[%c3_118, %c0_119, %c0_120], %167 {strides = array<i32>} : memref<4x120x8xf32, #tpu.memory_space<vmem>>, vector<1x30x8xf32>,
    %168 = vector.extract_strided_slice %15 {offsets = [90, 32], sizes = [30, 8], strides = [1, 1]} : vector<120x64xf32> to vector<30x8xf32>
    %c3_121 = arith.constant 3 : index
    %c0_122 = arith.constant 0 : index
    %c0_123 = arith.constant 0 : index
    %169 = vector.load %arg12[%c3_121, %c0_122, %c0_123] : memref<4x120x8xf32, #tpu.memory_space<vmem>>, vector<1x30x8xf32>
    %170 = vector.shape_cast %169 : vector<1x30x8xf32> to vector<30x8xf32>
    %171 = vector.shape_cast %168 : vector<30x8xf32> to vector<1x30x8xf32>
    tpu.vector_store %arg12[%c3_121, %c0_122, %c0_123], %171 {strides = array<i32>} : memref<4x120x8xf32, #tpu.memory_space<vmem>>, vector<1x30x8xf32>,
    %172 = vector.extract_strided_slice %10 {offsets = [45, 8], sizes = [15, 8], strides = [1, 1]} : vector<60x32xf32> to vector<15x8xf32>
    %c3_124 = arith.constant 3 : index
    %c15_125 = arith.constant 15 : index
    %c0_126 = arith.constant 0 : index
    %173 = vector.load %arg10[%c3_124, %c15_125, %c0_126] : memref<4x60x8xf32, #tpu.memory_space<vmem>>, vector<1x15x8xf32>
    %174 = vector.shape_cast %173 : vector<1x15x8xf32> to vector<15x8xf32>
    %175 = vector.shape_cast %172 : vector<15x8xf32> to vector<1x15x8xf32>
    tpu.vector_store %arg10[%c3_124, %c15_125, %c0_126], %175 {strides = array<i32>} : memref<4x60x8xf32, #tpu.memory_space<vmem>>, vector<1x15x8xf32>,
    %176 = vector.extract_strided_slice %15 {offsets = [90, 8], sizes = [30, 8], strides = [1, 1]} : vector<120x64xf32> to vector<30x8xf32>
    %c3_127 = arith.constant 3 : index
    %c30_128 = arith.constant 30 : index
    %c0_129 = arith.constant 0 : index
    %177 = vector.load %arg11[%c3_127, %c30_128, %c0_129] : memref<4x120x8xf32, #tpu.memory_space<vmem>>, vector<1x30x8xf32>
    %178 = vector.shape_cast %177 : vector<1x30x8xf32> to vector<30x8xf32>
    %179 = vector.shape_cast %176 : vector<30x8xf32> to vector<1x30x8xf32>
    tpu.vector_store %arg11[%c3_127, %c30_128, %c0_129], %179 {strides = array<i32>} : memref<4x120x8xf32, #tpu.memory_space<vmem>>, vector<1x30x8xf32>,
    %180 = vector.extract_strided_slice %15 {offsets = [90, 40], sizes = [30, 8], strides = [1, 1]} : vector<120x64xf32> to vector<30x8xf32>
    %c3_130 = arith.constant 3 : index
    %c30_131 = arith.constant 30 : index
    %c0_132 = arith.constant 0 : index
    %181 = vector.load %arg12[%c3_130, %c30_131, %c0_132] : memref<4x120x8xf32, #tpu.memory_space<vmem>>, vector<1x30x8xf32>
    %182 = vector.shape_cast %181 : vector<1x30x8xf32> to vector<30x8xf32>
    %183 = vector.shape_cast %180 : vector<30x8xf32> to vector<1x30x8xf32>
    tpu.vector_store %arg12[%c3_130, %c30_131, %c0_132], %183 {strides = array<i32>} : memref<4x120x8xf32, #tpu.memory_space<vmem>>, vector<1x30x8xf32>,
    %184 = vector.extract_strided_slice %10 {offsets = [45, 16], sizes = [15, 8], strides = [1, 1]} : vector<60x32xf32> to vector<15x8xf32>
    %c3_133 = arith.constant 3 : index
    %c30_134 = arith.constant 30 : index
    %c0_135 = arith.constant 0 : index
    %185 = vector.load %arg10[%c3_133, %c30_134, %c0_135] : memref<4x60x8xf32, #tpu.memory_space<vmem>>, vector<1x15x8xf32>
    %186 = vector.shape_cast %185 : vector<1x15x8xf32> to vector<15x8xf32>
    %187 = vector.shape_cast %184 : vector<15x8xf32> to vector<1x15x8xf32>
    tpu.vector_store %arg10[%c3_133, %c30_134, %c0_135], %187 {strides = array<i32>} : memref<4x60x8xf32, #tpu.memory_space<vmem>>, vector<1x15x8xf32>,
    %188 = vector.extract_strided_slice %15 {offsets = [90, 16], sizes = [30, 8], strides = [1, 1]} : vector<120x64xf32> to vector<30x8xf32>
    %c3_136 = arith.constant 3 : index
    %c60_137 = arith.constant 60 : index
    %c0_138 = arith.constant 0 : index
    %189 = vector.load %arg11[%c3_136, %c60_137, %c0_138] : memref<4x120x8xf32, #tpu.memory_space<vmem>>, vector<1x30x8xf32>
    %190 = vector.shape_cast %189 : vector<1x30x8xf32> to vector<30x8xf32>
    %191 = vector.shape_cast %188 : vector<30x8xf32> to vector<1x30x8xf32>
    tpu.vector_store %arg11[%c3_136, %c60_137, %c0_138], %191 {strides = array<i32>} : memref<4x120x8xf32, #tpu.memory_space<vmem>>, vector<1x30x8xf32>,
    %192 = vector.extract_strided_slice %15 {offsets = [90, 48], sizes = [30, 8], strides = [1, 1]} : vector<120x64xf32> to vector<30x8xf32>
    %c3_139 = arith.constant 3 : index
    %c60_140 = arith.constant 60 : index
    %c0_141 = arith.constant 0 : index
    %193 = vector.load %arg12[%c3_139, %c60_140, %c0_141] : memref<4x120x8xf32, #tpu.memory_space<vmem>>, vector<1x30x8xf32>
    %194 = vector.shape_cast %193 : vector<1x30x8xf32> to vector<30x8xf32>
    %195 = vector.shape_cast %192 : vector<30x8xf32> to vector<1x30x8xf32>
    tpu.vector_store %arg12[%c3_139, %c60_140, %c0_141], %195 {strides = array<i32>} : memref<4x120x8xf32, #tpu.memory_space<vmem>>, vector<1x30x8xf32>,
    %196 = vector.extract_strided_slice %10 {offsets = [45, 24], sizes = [15, 8], strides = [1, 1]} : vector<60x32xf32> to vector<15x8xf32>
    %c3_142 = arith.constant 3 : index
    %c45_143 = arith.constant 45 : index
    %c0_144 = arith.constant 0 : index
    %197 = vector.load %arg10[%c3_142, %c45_143, %c0_144] : memref<4x60x8xf32, #tpu.memory_space<vmem>>, vector<1x15x8xf32>
    %198 = vector.shape_cast %197 : vector<1x15x8xf32> to vector<15x8xf32>
    %199 = vector.shape_cast %196 : vector<15x8xf32> to vector<1x15x8xf32>
    tpu.vector_store %arg10[%c3_142, %c45_143, %c0_144], %199 {strides = array<i32>} : memref<4x60x8xf32, #tpu.memory_space<vmem>>, vector<1x15x8xf32>,
    %200 = vector.extract_strided_slice %15 {offsets = [90, 24], sizes = [30, 8], strides = [1, 1]} : vector<120x64xf32> to vector<30x8xf32>
    %c3_145 = arith.constant 3 : index
    %c90_146 = arith.constant 90 : index
    %c0_147 = arith.constant 0 : index
    %201 = vector.load %arg11[%c3_145, %c90_146, %c0_147] : memref<4x120x8xf32, #tpu.memory_space<vmem>>, vector<1x30x8xf32>
    %202 = vector.shape_cast %201 : vector<1x30x8xf32> to vector<30x8xf32>
    %203 = vector.shape_cast %200 : vector<30x8xf32> to vector<1x30x8xf32>
    tpu.vector_store %arg11[%c3_145, %c90_146, %c0_147], %203 {strides = array<i32>} : memref<4x120x8xf32, #tpu.memory_space<vmem>>, vector<1x30x8xf32>,
    %204 = vector.extract_strided_slice %15 {offsets = [90, 56], sizes = [30, 8], strides = [1, 1]} : vector<120x64xf32> to vector<30x8xf32>
    %c3_148 = arith.constant 3 : index
    %c90_149 = arith.constant 90 : index
    %c0_150 = arith.constant 0 : index
    %205 = vector.load %arg12[%c3_148, %c90_149, %c0_150] : memref<4x120x8xf32, #tpu.memory_space<vmem>>, vector<1x30x8xf32>
    %206 = vector.shape_cast %205 : vector<1x30x8xf32> to vector<30x8xf32>
    %207 = vector.shape_cast %204 : vector<30x8xf32> to vector<1x30x8xf32>
    tpu.vector_store %arg12[%c3_148, %c90_149, %c0_150], %207 {strides = array<i32>} : memref<4x120x8xf32, #tpu.memory_space<vmem>>, vector<1x30x8xf32>,
    %c0_151 = arith.constant 0 : index
    %c0_152 = arith.constant 0 : index
    %c0_153 = arith.constant 0 : index
    %208 = vector.load %arg10[%c0_151, %c0_152, %c0_153] : memref<4x60x8xf32, #tpu.memory_space<vmem>>, vector<4x60x8xf32>
    %c0_154 = arith.constant 0 : index
    %c0_155 = arith.constant 0 : index
    %c0_156 = arith.constant 0 : index
    %209 = vector.load %arg11[%c0_154, %c0_155, %c0_156] : memref<4x120x8xf32, #tpu.memory_space<vmem>>, vector<4x120x8xf32>
    %c0_157 = arith.constant 0 : index
    %c0_158 = arith.constant 0 : index
    %c0_159 = arith.constant 0 : index
    %210 = vector.load %arg12[%c0_157, %c0_158, %c0_159] : memref<4x120x8xf32, #tpu.memory_space<vmem>>, vector<4x120x8xf32>
    "tpu.trace_start"() <{level = 10 : i32, message = "gqd,gkd->gqk"}> : () -> ()
    %cst_160 = arith.constant dense<0.000000e+00> : vector<4x60x120xf32>
    %211 = tpu.matmul %208, %209, %cst_160 {dimension_numbers = #tpu.dot_dimension_numbers<[2], [2], [1], [1], [0, 0, 0, 1, 1, 1], [0], [0]>} : vector<4x60x8xf32>, vector<4x120x8xf32>, vector<4x60x120xf32> -> vector<4x60x120xf32>
    "tpu.trace_stop"() : () -> ()
    %cst_161 = arith.constant dense<0xFF800000> : vector<4x60xf32>
    %212 = vector.multi_reduction <maximumf>, %211, %cst_161 [2] : vector<4x60x120xf32> to vector<4x60xf32>
    %213 = vector.shape_cast %212 : vector<4x60xf32> to vector<4x60x1xf32>
    %214 = vector.broadcast %213 : vector<4x60x1xf32> to vector<4x60x120xf32>
    %215 = arith.subf %211, %214 : vector<4x60x120xf32>
    %216 = math.exp %215 : vector<4x60x120xf32>
    %cst_162 = arith.constant dense<0.000000e+00> : vector<4x60xf32>
    %217 = vector.multi_reduction <add>, %216, %cst_162 [2] : vector<4x60x120xf32> to vector<4x60xf32>
    %218 = vector.shape_cast %217 : vector<4x60xf32> to vector<4x60x1xf32>
    "tpu.trace_start"() <{level = 10 : i32, message = "gqk,gkd->gqd"}> : () -> ()
    %cst_163 = arith.constant dense<0.000000e+00> : vector<4x60x8xf32>
    %219 = tpu.matmul %216, %210, %cst_163 {dimension_numbers = #tpu.dot_dimension_numbers<[2], [1], [1], [2], [0, 0, 0, 1, 1, 2], [0], [0]>} : vector<4x60x120xf32>, vector<4x120x8xf32>, vector<4x60x8xf32> -> vector<4x60x8xf32>
    "tpu.trace_stop"() : () -> ()
    %220 = vector.broadcast %218 : vector<4x60x1xf32> to vector<4x60x8xf32>
    %221 = arith.divf %219, %220 : vector<4x60x8xf32>
    %222 = vector.extract_strided_slice %221 {offsets = [0, 0, 0], sizes = [1, 15, 8], strides = [1, 1, 1]} : vector<4x60x8xf32> to vector<1x15x8xf32>
    %223 = vector.shape_cast %222 : vector<1x15x8xf32> to vector<15x8xf32>
    %c0_164 = arith.constant 0 : index
    %c0_165 = arith.constant 0 : index
    %224 = vector.load %arg13[%c0_164, %c0_165] : memref<60x32xf32, #tpu.memory_space<vmem>>, vector<15x8xf32>
    tpu.vector_store %arg13[%c0_164, %c0_165], %223 {strides = array<i32>} : memref<60x32xf32, #tpu.memory_space<vmem>>, vector<15x8xf32>,
    %225 = vector.extract_strided_slice %221 {offsets = [0, 15, 0], sizes = [1, 15, 8], strides = [1, 1, 1]} : vector<4x60x8xf32> to vector<1x15x8xf32>
    %226 = vector.shape_cast %225 : vector<1x15x8xf32> to vector<15x8xf32>
    %c0_166 = arith.constant 0 : index
    %c8 = arith.constant 8 : index
    %227 = vector.load %arg13[%c0_166, %c8] : memref<60x32xf32, #tpu.memory_space<vmem>>, vector<15x8xf32>
    tpu.vector_store %arg13[%c0_166, %c8], %226 {strides = array<i32>} : memref<60x32xf32, #tpu.memory_space<vmem>>, vector<15x8xf32>,
    %228 = vector.extract_strided_slice %221 {offsets = [0, 30, 0], sizes = [1, 15, 8], strides = [1, 1, 1]} : vector<4x60x8xf32> to vector<1x15x8xf32>
    %229 = vector.shape_cast %228 : vector<1x15x8xf32> to vector<15x8xf32>
    %c0_167 = arith.constant 0 : index
    %c16 = arith.constant 16 : index
    %230 = vector.load %arg13[%c0_167, %c16] : memref<60x32xf32, #tpu.memory_space<vmem>>, vector<15x8xf32>
    tpu.vector_store %arg13[%c0_167, %c16], %229 {strides = array<i32>} : memref<60x32xf32, #tpu.memory_space<vmem>>, vector<15x8xf32>,
    %231 = vector.extract_strided_slice %221 {offsets = [0, 45, 0], sizes = [1, 15, 8], strides = [1, 1, 1]} : vector<4x60x8xf32> to vector<1x15x8xf32>
    %232 = vector.shape_cast %231 : vector<1x15x8xf32> to vector<15x8xf32>
    %c0_168 = arith.constant 0 : index
    %c24 = arith.constant 24 : index
    %233 = vector.load %arg13[%c0_168, %c24] : memref<60x32xf32, #tpu.memory_space<vmem>>, vector<15x8xf32>
    tpu.vector_store %arg13[%c0_168, %c24], %232 {strides = array<i32>} : memref<60x32xf32, #tpu.memory_space<vmem>>, vector<15x8xf32>,
    %234 = vector.extract_strided_slice %221 {offsets = [1, 0, 0], sizes = [1, 15, 8], strides = [1, 1, 1]} : vector<4x60x8xf32> to vector<1x15x8xf32>
    %235 = vector.shape_cast %234 : vector<1x15x8xf32> to vector<15x8xf32>
    %c15_169 = arith.constant 15 : index
    %c0_170 = arith.constant 0 : index
    %236 = vector.load %arg13[%c15_169, %c0_170] : memref<60x32xf32, #tpu.memory_space<vmem>>, vector<15x8xf32>
    tpu.vector_store %arg13[%c15_169, %c0_170], %235 {strides = array<i32>} : memref<60x32xf32, #tpu.memory_space<vmem>>, vector<15x8xf32>,
    %237 = vector.extract_strided_slice %221 {offsets = [1, 15, 0], sizes = [1, 15, 8], strides = [1, 1, 1]} : vector<4x60x8xf32> to vector<1x15x8xf32>
    %238 = vector.shape_cast %237 : vector<1x15x8xf32> to vector<15x8xf32>
    %c15_171 = arith.constant 15 : index
    %c8_172 = arith.constant 8 : index
    %239 = vector.load %arg13[%c15_171, %c8_172] : memref<60x32xf32, #tpu.memory_space<vmem>>, vector<15x8xf32>
    tpu.vector_store %arg13[%c15_171, %c8_172], %238 {strides = array<i32>} : memref<60x32xf32, #tpu.memory_space<vmem>>, vector<15x8xf32>,
    %240 = vector.extract_strided_slice %221 {offsets = [1, 30, 0], sizes = [1, 15, 8], strides = [1, 1, 1]} : vector<4x60x8xf32> to vector<1x15x8xf32>
    %241 = vector.shape_cast %240 : vector<1x15x8xf32> to vector<15x8xf32>
    %c15_173 = arith.constant 15 : index
    %c16_174 = arith.constant 16 : index
    %242 = vector.load %arg13[%c15_173, %c16_174] : memref<60x32xf32, #tpu.memory_space<vmem>>, vector<15x8xf32>
    tpu.vector_store %arg13[%c15_173, %c16_174], %241 {strides = array<i32>} : memref<60x32xf32, #tpu.memory_space<vmem>>, vector<15x8xf32>,
    %243 = vector.extract_strided_slice %221 {offsets = [1, 45, 0], sizes = [1, 15, 8], strides = [1, 1, 1]} : vector<4x60x8xf32> to vector<1x15x8xf32>
    %244 = vector.shape_cast %243 : vector<1x15x8xf32> to vector<15x8xf32>
    %c15_175 = arith.constant 15 : index
    %c24_176 = arith.constant 24 : index
    %245 = vector.load %arg13[%c15_175, %c24_176] : memref<60x32xf32, #tpu.memory_space<vmem>>, vector<15x8xf32>
    tpu.vector_store %arg13[%c15_175, %c24_176], %244 {strides = array<i32>} : memref<60x32xf32, #tpu.memory_space<vmem>>, vector<15x8xf32>,
    %246 = vector.extract_strided_slice %221 {offsets = [2, 0, 0], sizes = [1, 15, 8], strides = [1, 1, 1]} : vector<4x60x8xf32> to vector<1x15x8xf32>
    %247 = vector.shape_cast %246 : vector<1x15x8xf32> to vector<15x8xf32>
    %c30_177 = arith.constant 30 : index
    %c0_178 = arith.constant 0 : index
    %248 = vector.load %arg13[%c30_177, %c0_178] : memref<60x32xf32, #tpu.memory_space<vmem>>, vector<15x8xf32>
    tpu.vector_store %arg13[%c30_177, %c0_178], %247 {strides = array<i32>} : memref<60x32xf32, #tpu.memory_space<vmem>>, vector<15x8xf32>,
    %249 = vector.extract_strided_slice %221 {offsets = [2, 15, 0], sizes = [1, 15, 8], strides = [1, 1, 1]} : vector<4x60x8xf32> to vector<1x15x8xf32>
    %250 = vector.shape_cast %249 : vector<1x15x8xf32> to vector<15x8xf32>
    %c30_179 = arith.constant 30 : index
    %c8_180 = arith.constant 8 : index
    %251 = vector.load %arg13[%c30_179, %c8_180] : memref<60x32xf32, #tpu.memory_space<vmem>>, vector<15x8xf32>
    tpu.vector_store %arg13[%c30_179, %c8_180], %250 {strides = array<i32>} : memref<60x32xf32, #tpu.memory_space<vmem>>, vector<15x8xf32>,
    %252 = vector.extract_strided_slice %221 {offsets = [2, 30, 0], sizes = [1, 15, 8], strides = [1, 1, 1]} : vector<4x60x8xf32> to vector<1x15x8xf32>
    %253 = vector.shape_cast %252 : vector<1x15x8xf32> to vector<15x8xf32>
    %c30_181 = arith.constant 30 : index
    %c16_182 = arith.constant 16 : index
    %254 = vector.load %arg13[%c30_181, %c16_182] : memref<60x32xf32, #tpu.memory_space<vmem>>, vector<15x8xf32>
    tpu.vector_store %arg13[%c30_181, %c16_182], %253 {strides = array<i32>} : memref<60x32xf32, #tpu.memory_space<vmem>>, vector<15x8xf32>,
    %255 = vector.extract_strided_slice %221 {offsets = [2, 45, 0], sizes = [1, 15, 8], strides = [1, 1, 1]} : vector<4x60x8xf32> to vector<1x15x8xf32>
    %256 = vector.shape_cast %255 : vector<1x15x8xf32> to vector<15x8xf32>
    %c30_183 = arith.constant 30 : index
    %c24_184 = arith.constant 24 : index
    %257 = vector.load %arg13[%c30_183, %c24_184] : memref<60x32xf32, #tpu.memory_space<vmem>>, vector<15x8xf32>
    tpu.vector_store %arg13[%c30_183, %c24_184], %256 {strides = array<i32>} : memref<60x32xf32, #tpu.memory_space<vmem>>, vector<15x8xf32>,
    %258 = vector.extract_strided_slice %221 {offsets = [3, 0, 0], sizes = [1, 15, 8], strides = [1, 1, 1]} : vector<4x60x8xf32> to vector<1x15x8xf32>
    %259 = vector.shape_cast %258 : vector<1x15x8xf32> to vector<15x8xf32>
    %c45_185 = arith.constant 45 : index
    %c0_186 = arith.constant 0 : index
    %260 = vector.load %arg13[%c45_185, %c0_186] : memref<60x32xf32, #tpu.memory_space<vmem>>, vector<15x8xf32>
    tpu.vector_store %arg13[%c45_185, %c0_186], %259 {strides = array<i32>} : memref<60x32xf32, #tpu.memory_space<vmem>>, vector<15x8xf32>,
    %261 = vector.extract_strided_slice %221 {offsets = [3, 15, 0], sizes = [1, 15, 8], strides = [1, 1, 1]} : vector<4x60x8xf32> to vector<1x15x8xf32>
    %262 = vector.shape_cast %261 : vector<1x15x8xf32> to vector<15x8xf32>
    %c45_187 = arith.constant 45 : index
    %c8_188 = arith.constant 8 : index
    %263 = vector.load %arg13[%c45_187, %c8_188] : memref<60x32xf32, #tpu.memory_space<vmem>>, vector<15x8xf32>
    tpu.vector_store %arg13[%c45_187, %c8_188], %262 {strides = array<i32>} : memref<60x32xf32, #tpu.memory_space<vmem>>, vector<15x8xf32>,
    %264 = vector.extract_strided_slice %221 {offsets = [3, 30, 0], sizes = [1, 15, 8], strides = [1, 1, 1]} : vector<4x60x8xf32> to vector<1x15x8xf32>
    %265 = vector.shape_cast %264 : vector<1x15x8xf32> to vector<15x8xf32>
    %c45_189 = arith.constant 45 : index
    %c16_190 = arith.constant 16 : index
    %266 = vector.load %arg13[%c45_189, %c16_190] : memref<60x32xf32, #tpu.memory_space<vmem>>, vector<15x8xf32>
    tpu.vector_store %arg13[%c45_189, %c16_190], %265 {strides = array<i32>} : memref<60x32xf32, #tpu.memory_space<vmem>>, vector<15x8xf32>,
    %267 = vector.extract_strided_slice %221 {offsets = [3, 45, 0], sizes = [1, 15, 8], strides = [1, 1, 1]} : vector<4x60x8xf32> to vector<1x15x8xf32>
    %268 = vector.shape_cast %267 : vector<1x15x8xf32> to vector<15x8xf32>
    %c45_191 = arith.constant 45 : index
    %c24_192 = arith.constant 24 : index
    %269 = vector.load %arg13[%c45_191, %c24_192] : memref<60x32xf32, #tpu.memory_space<vmem>>, vector<15x8xf32>
    tpu.vector_store %arg13[%c45_191, %c24_192], %268 {strides = array<i32>} : memref<60x32xf32, #tpu.memory_space<vmem>>, vector<15x8xf32>,
    %c0_193 = arith.constant 0 : index
    %c0_194 = arith.constant 0 : index
    %270 = vector.load %arg13[%c0_193, %c0_194] : memref<60x32xf32, #tpu.memory_space<vmem>>, vector<60x32xf32>
    %c0_195 = arith.constant 0 : index
    %c0_196 = arith.constant 0 : index
    %271 = vector.load %arg7[%c0_195, %c0_196] : memref<32x128xf32, #tpu.memory_space<vmem>>, vector<32x128xf32>
    %cst_197 = arith.constant dense<0.000000e+00> : vector<60x128xf32>
    %272 = tpu.matmul %270, %271, %cst_197 {dimension_numbers = #tpu.dot_dimension_numbers<[1], [0], [0], [1], [0, 0, 1, 1], [], []>} : vector<60x32xf32>, vector<32x128xf32>, vector<60x128xf32> -> vector<60x128xf32>
    %c0_198 = arith.constant 0 : index
    %c0_199 = arith.constant 0 : index
    %273 = vector.load %arg8[%c0_198, %c0_199] : memref<1x128xf32, #tpu.memory_space<vmem>>, vector<1x128xf32>
    %274 = vector.broadcast %273 : vector<1x128xf32> to vector<60x128xf32>
    %275 = arith.addf %272, %274 : vector<60x128xf32>
    %276 = arith.addf %1, %275 : vector<60x128xf32>
    %277 = vector.shape_cast %276 : vector<60x128xf32> to vector<1x60x128xf32>
    %cst_200 = arith.constant dense<0.000000e+00> : vector<1xf32>
    %278 = vector.multi_reduction <add>, %277, %cst_200 [1, 2] : vector<1x60x128xf32> to vector<1xf32>
    %279 = vector.shape_cast %278 : vector<1xf32> to vector<1x1x1xf32>
    %280 = vector.extract %279[0, 0, 0] : f32 from vector<1x1x1xf32>
    %281 = vector.broadcast %280 : f32 to vector<1x1xf32>
    %282 = arith.mulf %276, %276 : vector<60x128xf32>
    %283 = vector.shape_cast %282 : vector<60x128xf32> to vector<1x60x128xf32>
    %cst_201 = arith.constant dense<0.000000e+00> : vector<1xf32>
    %284 = vector.multi_reduction <add>, %283, %cst_201 [1, 2] : vector<1x60x128xf32> to vector<1xf32>
    %285 = vector.shape_cast %284 : vector<1xf32> to vector<1x1x1xf32>
    %286 = vector.extract %285[0, 0, 0] : f32 from vector<1x1x1xf32>
    %287 = vector.broadcast %286 : f32 to vector<1x1xf32>
    %cst_202 = arith.constant 1.3020834E-4 : f32
    %288 = vector.broadcast %cst_202 : f32 to vector<1x1xf32>
    %289 = arith.mulf %281, %288 : vector<1x1xf32>
    %cst_203 = arith.constant 1.3020834E-4 : f32
    %290 = vector.broadcast %cst_203 : f32 to vector<1x1xf32>
    %291 = arith.mulf %287, %290 : vector<1x1xf32>
    %292 = arith.mulf %289, %289 : vector<1x1xf32>
    %293 = arith.subf %291, %292 : vector<1x1xf32>
    %294 = vector.broadcast %289 : vector<1x1xf32> to vector<60x128xf32>
    %295 = arith.subf %276, %294 : vector<60x128xf32>
    %cst_204 = arith.constant 9.99999974E-6 : f32
    %296 = vector.broadcast %cst_204 : f32 to vector<1x1xf32>
    %297 = arith.addf %293, %296 : vector<1x1xf32>
    %298 = math.rsqrt %297 : vector<1x1xf32>
    %299 = vector.broadcast %298 : vector<1x1xf32> to vector<60x128xf32>
    %300 = arith.mulf %295, %299 : vector<60x128xf32>
    %301 = arith.addf %300, %1 : vector<60x128xf32>
    %c0_205 = arith.constant 0 : index
    %c0_206 = arith.constant 0 : index
    %c0_207 = arith.constant 0 : index
    %302 = vector.load %arg9[%c0_205, %c0_206, %c0_207] : memref<1x60x128xf32, #tpu.memory_space<vmem>>, vector<1x60x128xf32>
    %303 = vector.shape_cast %302 : vector<1x60x128xf32> to vector<60x128xf32>
    %304 = vector.shape_cast %301 : vector<60x128xf32> to vector<1x60x128xf32>
    tpu.vector_store %arg9[%c0_205, %c0_206, %c0_207], %304 {strides = array<i32>} : memref<1x60x128xf32, #tpu.memory_space<vmem>>, vector<1x60x128xf32>,
    return
  }
  func.func @transform_0(%arg0: i32) -> (i32, i32, i32) {
    %c0_i32 = arith.constant 0 : i32
    %c0_i32_0 = arith.constant 0 : i32
    %c0_i32_1 = arith.constant 0 : i32
    return %arg0, %c0_i32, %c0_i32_0 : i32, i32, i32
  }
  func.func @transform_1(%arg0: i32) -> (i32, i32, i32) {
    %c0_i32 = arith.constant 0 : i32
    %c0_i32_0 = arith.constant 0 : i32
    %c0_i32_1 = arith.constant 0 : i32
    return %arg0, %c0_i32, %c0_i32_0 : i32, i32, i32
  }
  func.func @transform_2(%arg0: i32) -> (i32, i32) {
    %c0_i32 = arith.constant 0 : i32
    %c0_i32_0 = arith.constant 0 : i32
    %c0_i32_1 = arith.constant 0 : i32
    return %c0_i32, %c0_i32_0 : i32, i32
  }
  func.func @transform_3(%arg0: i32) -> (i32, i32) {
    %c0_i32 = arith.constant 0 : i32
    %c0_i32_0 = arith.constant 0 : i32
    %c0_i32_1 = arith.constant 0 : i32
    return %c0_i32, %c0_i32_0 : i32, i32
  }
  func.func @transform_4(%arg0: i32) -> (i32, i32) {
    %c0_i32 = arith.constant 0 : i32
    %c0_i32_0 = arith.constant 0 : i32
    %c0_i32_1 = arith.constant 0 : i32
    return %c0_i32, %c0_i32_0 : i32, i32
  }
  func.func @transform_5(%arg0: i32) -> (i32, i32) {
    %c0_i32 = arith.constant 0 : i32
    %c0_i32_0 = arith.constant 0 : i32
    %c0_i32_1 = arith.constant 0 : i32
    return %c0_i32, %c0_i32_0 : i32, i32
  }
  func.func @transform_6(%arg0: i32) -> (i32, i32) {
    %c0_i32 = arith.constant 0 : i32
    %c0_i32_0 = arith.constant 0 : i32
    %c0_i32_1 = arith.constant 0 : i32
    return %c0_i32, %c0_i32_0 : i32, i32
  }
  func.func @transform_7(%arg0: i32) -> (i32, i32) {
    %c0_i32 = arith.constant 0 : i32
    %c0_i32_0 = arith.constant 0 : i32
    %c0_i32_1 = arith.constant 0 : i32
    return %c0_i32, %c0_i32_0 : i32, i32
  }
  func.func @transform_8(%arg0: i32) -> (i32, i32, i32) {
    %c0_i32 = arith.constant 0 : i32
    %c0_i32_0 = arith.constant 0 : i32
    %c0_i32_1 = arith.constant 0 : i32
    return %arg0, %c0_i32, %c0_i32_0 : i32, i32, i32
  }
}

</mosaic_0001>

<llo_original>
// kernel: cross_modalto_forward.1
$region0: #{cross_modalto_forward.1}
  #allocation0 [shape = 'u32[]', space=smem, size = 0x4, offset = 0x4, fixed_abs, tag = 'smem constant byte address 0x4 - core index']
  #allocation1 [shape = 'u32[144,128]{1,0:T(1,128)}', space=vmem, size = 0x12000, scoped, tag = 'internal scratch']
  #allocation2 [shape = 'f32[4,60,8]{2,1,0:T(8,128)}', space=vmem, size = 0x20000, scoped, tag = 'scratch operand']
  #allocation3 [shape = 'f32[4,120,8]{2,1,0:T(8,128)}', space=vmem, size = 0x3c000, scoped, tag = 'scratch operand']
  #allocation4 [shape = 'f32[4,120,8]{2,1,0:T(8,128)}', space=vmem, size = 0x3c000, scoped, tag = 'scratch operand']
  #allocation5 [shape = 'f32[60,32]{1,0:T(8,128)}', space=vmem, size = 0x8000, scoped, tag = 'scratch operand']
  %s0 = inlined_call_operand.vmem [shape: f32[2,60,128], index: 0, kind: input, shape index: {}]
  %s1 = inlined_call_operand.vmem [shape: f32[2,120,128], index: 1, kind: input, shape index: {}]
  %s2 = inlined_call_operand.vmem [shape: f32[128,32], index: 2, kind: input, shape index: {}]
  %s3 = inlined_call_operand.vmem [shape: f32[1,32], index: 3, kind: input, shape index: {}]
  %s4 = inlined_call_operand.vmem [shape: f32[128,64], index: 4, kind: input, shape index: {}]
  %s5 = inlined_call_operand.vmem [shape: f32[1,64], index: 5, kind: input, shape index: {}]
  %s6 = inlined_call_operand.vmem [shape: f32[32,128], index: 6, kind: input, shape index: {}]
  %s7 = inlined_call_operand.vmem [shape: f32[1,128], index: 7, kind: input, shape index: {}]
  %s8 = inlined_call_operand.vmem [shape: f32[2,60,128], index: 8, kind: output, shape index: {}]
  %s9 = sld [smem:[#allocation0]]
  $region65: #{cross_modalto_forward.1} parent=0
    _
  %s11 = ssub.s32 1, %s9
  %s12 = scalar_select 0, %s11, %s9
  loop: start=0, step=1, limit=4
  $region2: #{cross_modalto_forward.1} parent=0 // loop_pre_header
    _
  $region3: #{cross_modalto_forward.1} parent=0 // loop_header
    %s14 = sphi 0, %s18
    %p15 = scmp.ge.s32.totalorder %s14, 4
    %s24 = sphi 0, %s26
    %s27 = sphi 0, %s24
    %s28 = sphi 0, %s27
    %s44 = sphi 0, %s28
    %s50 = sphi 0, %s52
    %s53 = sphi 0, %s50
    %s54 = sphi 0, %s53
    %s70 = sphi 0, %s54
    %s74 = sphi 0, %s74
    %s76 = sphi 0, %s74
    %s77 = sphi 0, %s76
    %s91 = sphi 0, %s77
    %s95 = sphi 0, %s95
    %s97 = sphi 0, %s95
    %s98 = sphi 0, %s97
    %s112 = sphi 0, %s98
    %s116 = sphi 0, %s116
    %s118 = sphi 0, %s116
    %s119 = sphi 0, %s118
    %s133 = sphi 0, %s119
    %s137 = sphi 0, %s137
    %s139 = sphi 0, %s137
    %s140 = sphi 0, %s139
    %s154 = sphi 0, %s140
    %s158 = sphi 0, %s158
    %s160 = sphi 0, %s158
    %s161 = sphi 0, %s160
    %s175 = sphi 0, %s161
    %s179 = sphi 0, %s179
    %s181 = sphi 0, %s179
    %s182 = sphi 0, %s181
    %s196 = sphi 0, %s182
    %s202 = sphi 0, %s204
    %s205 = sphi 0, %s202
    %s206 = sphi 0, %s205
    %s222 = sphi 0, %s206
  $region4: #{cross_modalto_forward.1} parent=0 // loop_header_branch
    %17 = sbr.rel (%p15) target = $region8
  $region5: #{cross_modalto_forward.1} parent=0 // loop_body
    %s19 = ssub.s32 %s14, 1
    %s20 = ssub.s32 %s14, 2
    %s21 = sadd.s32 %s14, 1
    %s22 = ssub.s32 %s14, %s21
    %p23 = scmp.eq.s32.totalorder %s22, 0
    %s25 = sadd.s32 %s24, 1
    %s26 = scalar_select %p23, %s24, %s25
    %p29 = pneg %p23
    %p30 = scmp.eq.s32.totalorder %s14, 1
    %p31 = por %p29, %p30
    %p32 = scmp.ne.s32.totalorder %s24, %s27
    %p33 = scmp.eq.s32.totalorder %s14, 0
    %p34 = por %p32, %p33
    %p35 = scmp.ne.s32.totalorder %s24, %s27
    %p36 = scmp.eq.s32.totalorder %s19, 1
    %p37 = por %p35, %p36
    %p38 = scmp.ne.s32.totalorder %s27, %s28
    %p39 = scmp.eq.s32.totalorder %s19, 0
    %p40 = por %p38, %p39
    %p41 = scmp.ne.s32.totalorder %s27, %s28
    %p42 = scmp.eq.s32.totalorder %s20, 1
    %p43 = por %p41, %p42
    %p45 = scmp.ne.s32.totalorder %s28, %s44
    %p46 = scmp.eq.s32.totalorder %s20, 0
    %p47 = por %p45, %p46
    %s48 = ssub.s32 %s14, %s21
    %p49 = scmp.eq.s32.totalorder %s48, 0
    %s51 = sadd.s32 %s50, 1
    %s52 = scalar_select %p49, %s50, %s51
    %p55 = pneg %p49
    %p56 = scmp.eq.s32.totalorder %s14, 1
    %p57 = por %p55, %p56
    %p58 = scmp.ne.s32.totalorder %s50, %s53
    %p59 = scmp.eq.s32.totalorder %s14, 0
    %p60 = por %p58, %p59
    %p61 = scmp.ne.s32.totalorder %s50, %s53
    %p62 = scmp.eq.s32.totalorder %s19, 1
    %p63 = por %p61, %p62
    %p64 = scmp.ne.s32.totalorder %s53, %s54
    %p65 = scmp.eq.s32.totalorder %s19, 0
    %p66 = por %p64, %p65
    %p67 = scmp.ne.s32.totalorder %s53, %s54
    %p68 = scmp.eq.s32.totalorder %s20, 1
    %p69 = por %p67, %p68
    %p71 = scmp.ne.s32.totalorder %s54, %s70
    %p72 = scmp.eq.s32.totalorder %s20, 0
    %p73 = por %p71, %p72
    %s75 = sadd.s32 %s74, 1
    %p78 = scmp.eq.s32.totalorder %s14, 1
    %p79 = scmp.ne.s32.totalorder %s74, %s76
    %p80 = scmp.eq.s32.totalorder %s14, 0
    %p81 = por %p79, %p80
    %p82 = scmp.ne.s32.totalorder %s74, %s76
    %p83 = scmp.eq.s32.totalorder %s19, 1
    %p84 = por %p82, %p83
    %p85 = scmp.ne.s32.totalorder %s76, %s77
    %p86 = scmp.eq.s32.totalorder %s19, 0
    %p87 = por %p85, %p86
    %p88 = scmp.ne.s32.totalorder %s76, %s77
    %p89 = scmp.eq.s32.totalorder %s20, 1
    %p90 = por %p88, %p89
    %p92 = scmp.ne.s32.totalorder %s77, %s91
    %p93 = scmp.eq.s32.totalorder %s20, 0
    %p94 = por %p92, %p93
    %s96 = sadd.s32 %s95, 1
    %p99 = scmp.eq.s32.totalorder %s14, 1
    %p100 = scmp.ne.s32.totalorder %s95, %s97
    %p101 = scmp.eq.s32.totalorder %s14, 0
    %p102 = por %p100, %p101
    %p103 = scmp.ne.s32.totalorder %s95, %s97
    %p104 = scmp.eq.s32.totalorder %s19, 1
    %p105 = por %p103, %p104
    %p106 = scmp.ne.s32.totalorder %s97, %s98
    %p107 = scmp.eq.s32.totalorder %s19, 0
    %p108 = por %p106, %p107
    %p109 = scmp.ne.s32.totalorder %s97, %s98
    %p110 = scmp.eq.s32.totalorder %s20, 1
    %p111 = por %p109, %p110
    %p113 = scmp.ne.s32.totalorder %s98, %s112
    %p114 = scmp.eq.s32.totalorder %s20, 0
    %p115 = por %p113, %p114
    %s117 = sadd.s32 %s116, 1
    %p120 = scmp.eq.s32.totalorder %s14, 1
    %p121 = scmp.ne.s32.totalorder %s116, %s118
    %p122 = scmp.eq.s32.totalorder %s14, 0
    %p123 = por %p121, %p122
    %p124 = scmp.ne.s32.totalorder %s116, %s118
    %p125 = scmp.eq.s32.totalorder %s19, 1
    %p126 = por %p124, %p125
    %p127 = scmp.ne.s32.totalorder %s118, %s119
    %p128 = scmp.eq.s32.totalorder %s19, 0
    %p129 = por %p127, %p128
    %p130 = scmp.ne.s32.totalorder %s118, %s119
    %p131 = scmp.eq.s32.totalorder %s20, 1
    %p132 = por %p130, %p131
    %p134 = scmp.ne.s32.totalorder %s119, %s133
    %p135 = scmp.eq.s32.totalorder %s20, 0
    %p136 = por %p134, %p135
    %s138 = sadd.s32 %s137, 1
    %p141 = scmp.eq.s32.totalorder %s14, 1
    %p142 = scmp.ne.s32.totalorder %s137, %s139
    %p143 = scmp.eq.s32.totalorder %s14, 0
    %p144 = por %p142, %p143
    %p145 = scmp.ne.s32.totalorder %s137, %s139
    %p146 = scmp.eq.s32.totalorder %s19, 1
    %p147 = por %p145, %p146
    %p148 = scmp.ne.s32.totalorder %s139, %s140
    %p149 = scmp.eq.s32.totalorder %s19, 0
    %p150 = por %p148, %p149
    %p151 = scmp.ne.s32.totalorder %s139, %s140
    %p152 = scmp.eq.s32.totalorder %s20, 1
    %p153 = por %p151, %p152
    %p155 = scmp.ne.s32.totalorder %s140, %s154
    %p156 = scmp.eq.s32.totalorder %s20, 0
    %p157 = por %p155, %p156
    %s159 = sadd.s32 %s158, 1
    %p162 = scmp.eq.s32.totalorder %s14, 1
    %p163 = scmp.ne.s32.totalorder %s158, %s160
    %p164 = scmp.eq.s32.totalorder %s14, 0
    %p165 = por %p163, %p164
    %p166 = scmp.ne.s32.totalorder %s158, %s160
    %p167 = scmp.eq.s32.totalorder %s19, 1
    %p168 = por %p166, %p167
    %p169 = scmp.ne.s32.totalorder %s160, %s161
    %p170 = scmp.eq.s32.totalorder %s19, 0
    %p171 = por %p169, %p170
    %p172 = scmp.ne.s32.totalorder %s160, %s161
    %p173 = scmp.eq.s32.totalorder %s20, 1
    %p174 = por %p172, %p173
    %p176 = scmp.ne.s32.totalorder %s161, %s175
    %p177 = scmp.eq.s32.totalorder %s20, 0
    %p178 = por %p176, %p177
    %s180 = sadd.s32 %s179, 1
    %p183 = scmp.eq.s32.totalorder %s14, 1
    %p184 = scmp.ne.s32.totalorder %s179, %s181
    %p185 = scmp.eq.s32.totalorder %s14, 0
    %p186 = por %p184, %p185
    %p187 = scmp.ne.s32.totalorder %s179, %s181
    %p188 = scmp.eq.s32.totalorder %s19, 1
    %p189 = por %p187, %p188
    %p190 = scmp.ne.s32.totalorder %s181, %s182
    %p191 = scmp.eq.s32.totalorder %s19, 0
    %p192 = por %p190, %p191
    %p193 = scmp.ne.s32.totalorder %s181, %s182
    %p194 = scmp.eq.s32.totalorder %s20, 1
    %p195 = por %p193, %p194
    %p197 = scmp.ne.s32.totalorder %s182, %s196
    %p198 = scmp.eq.s32.totalorder %s20, 0
    %p199 = por %p197, %p198
    %s200 = ssub.s32 %s14, %s21
    %p201 = scmp.eq.s32.totalorder %s200, 0
    %s203 = sadd.s32 %s202, 1
    %s204 = scalar_select %p201, %s202, %s203
    %p207 = pneg %p201
    %p208 = scmp.eq.s32.totalorder %s14, 1
    %p209 = por %p207, %p208
    %p210 = scmp.ne.s32.totalorder %s202, %s205
    %p211 = scmp.eq.s32.totalorder %s14, 0
    %p212 = por %p210, %p211
    %p213 = scmp.ne.s32.totalorder %s202, %s205
    %p214 = scmp.eq.s32.totalorder %s19, 1
    %p215 = por %p213, %p214
    %p216 = scmp.ne.s32.totalorder %s205, %s206
    %p217 = scmp.eq.s32.totalorder %s19, 0
    %p218 = por %p216, %p217
    %p219 = scmp.ne.s32.totalorder %s205, %s206
    %p220 = scmp.eq.s32.totalorder %s20, 1
    %p221 = por %p219, %p220
    %p223 = scmp.ne.s32.totalorder %s206, %s222
    %p224 = scmp.eq.s32.totalorder %s20, 0
    %p225 = por %p223, %p224
    %p226 = scmp.le.s32.totalorder 1, %s14
    %p227 = scmp.lt.s32.totalorder %s14, 3
    %p228 = pnand %p226, %p227
    %p229 = pneg %p228
    // Predicated region
    $region9: #{cross_modalto_forward.1} parent=5 // pred_check
      _
    $region10: #{cross_modalto_forward.1} parent=5 // pred_check_branch
      %231 = sbr.rel (%p228) target = $region12
    $region11: #{cross_modalto_forward.1} parent=5 // pred_region
      %s232 = ssub.s32 %s14, 1
      // Predicated region
      $region13: #{cross_modalto_forward.1} parent=11 // pred_check
        %p233 = pneg %p87
      $region14: #{cross_modalto_forward.1} parent=11 // pred_check_branch
        %235 = sbr.rel (%p233) target = $region16
      $region15: #{cross_modalto_forward.1} parent=11 // pred_region
        _
      $region16: #{cross_modalto_forward.1} parent=11 // pred_fallthru
        _
      // Predicated region
      $region17: #{cross_modalto_forward.1} parent=11 // pred_check
        %p236 = pneg %p108
      $region18: #{cross_modalto_forward.1} parent=11 // pred_check_branch
        %238 = sbr.rel (%p236) target = $region20
      $region19: #{cross_modalto_forward.1} parent=11 // pred_region
        _
      $region20: #{cross_modalto_forward.1} parent=11 // pred_fallthru
        _
      // Predicated region
      $region21: #{cross_modalto_forward.1} parent=11 // pred_check
        %p239 = pneg %p129
      $region22: #{cross_modalto_forward.1} parent=11 // pred_check_branch
        %241 = sbr.rel (%p239) target = $region24
      $region23: #{cross_modalto_forward.1} parent=11 // pred_region
        _
      $region24: #{cross_modalto_forward.1} parent=11 // pred_fallthru
        _
      // Predicated region
      $region25: #{cross_modalto_forward.1} parent=11 // pred_check
        %p242 = pneg %p150
      $region26: #{cross_modalto_forward.1} parent=11 // pred_check_branch
        %244 = sbr.rel (%p242) target = $region28
      $region27: #{cross_modalto_forward.1} parent=11 // pred_region
        _
      $region28: #{cross_modalto_forward.1} parent=11 // pred_fallthru
        _
      // Predicated region
      $region29: #{cross_modalto_forward.1} parent=11 // pred_check
        %p245 = pneg %p171
      $region30: #{cross_modalto_forward.1} parent=11 // pred_check_branch
        %247 = sbr.rel (%p245) target = $region32
      $region31: #{cross_modalto_forward.1} parent=11 // pred_region
        _
      $region32: #{cross_modalto_forward.1} parent=11 // pred_fallthru
        _
      // Predicated region
      $region33: #{cross_modalto_forward.1} parent=11 // pred_check
        %p248 = pneg %p192
      $region34: #{cross_modalto_forward.1} parent=11 // pred_check_branch
        %250 = sbr.rel (%p248) target = $region36
      $region35: #{cross_modalto_forward.1} parent=11 // pred_region
        _
      $region36: #{cross_modalto_forward.1} parent=11 // pred_fallthru
        _
    $region12: #{cross_modalto_forward.1} parent=5 // pred_fallthru
      _
    %p251 = scmp.lt.s32.totalorder %s14, 2
    // Predicated region
    $region37: #{cross_modalto_forward.1} parent=5 // pred_check
      %p252 = pneg %p251
    $region38: #{cross_modalto_forward.1} parent=5 // pred_check_branch
      %254 = sbr.rel (%p252) target = $region40
    $region39: #{cross_modalto_forward.1} parent=5 // pred_region
      // Predicated region
      $region41: #{cross_modalto_forward.1} parent=39 // pred_check
        %p255 = pneg %p34
      $region42: #{cross_modalto_forward.1} parent=39 // pred_check_branch
        %257 = sbr.rel (%p255) target = $region44
      $region43: #{cross_modalto_forward.1} parent=39 // pred_region
        %p258 = scmp.lt.s32.totalorder %s14, 1
        %s259 = scalar_select %p258, %s14, 1
        %s260 = smul.addr %s259, 8
        %s261 = smul.addr %s260, 8
        %s262 = scalar_lea.vmem %s0, %s261
      $region44: #{cross_modalto_forward.1} parent=39 // pred_fallthru
        _
      // Predicated region
      $region45: #{cross_modalto_forward.1} parent=39 // pred_check
        %p263 = pneg %p60
      $region46: #{cross_modalto_forward.1} parent=39 // pred_check_branch
        %265 = sbr.rel (%p263) target = $region48
      $region47: #{cross_modalto_forward.1} parent=39 // pred_region
        %p266 = scmp.lt.s32.totalorder %s14, 1
        %s267 = scalar_select %p266, %s14, 1
        %s268 = smul.addr %s267, 15
        %s269 = smul.addr %s268, 8
        %s270 = scalar_lea.vmem %s1, %s269
      $region48: #{cross_modalto_forward.1} parent=39 // pred_fallthru
        _
    $region40: #{cross_modalto_forward.1} parent=5 // pred_fallthru
      _
    %p271 = scmp.le.s32.totalorder 1, %s14
    %p272 = scmp.lt.s32.totalorder %s14, 3
    %p273 = pnand %p271, %p272
    %p274 = pneg %p273
    // Predicated region
    $region49: #{cross_modalto_forward.1} parent=5 // pred_check
      _
    $region50: #{cross_modalto_forward.1} parent=5 // pred_check_branch
      %276 = sbr.rel (%p273) target = $region52
    $region51: #{cross_modalto_forward.1} parent=5 // pred_region
      %s277 = ssub.s32 %s14, 1
      %p278 = scmp.lt.s32.totalorder %s19, 1
      %s279 = scalar_select %p278, %s19, 1
      %s280 = smul.addr %s279, 8
      %s281 = smul.addr %s280, 8
      %s282 = scalar_lea.vmem %s0, %s281
      %p283 = pneg %p40
      %p284 = pneg %p37
      %p285 = scmp.lt.s32.totalorder %s19, 1
      %s286 = scalar_select %p285, %s19, 1
      %s287 = smul.addr %s286, 15
      %s288 = smul.addr %s287, 8
      %s289 = scalar_lea.vmem %s1, %s288
      %p290 = pneg %p66
      %p291 = pneg %p63
      %p292 = pneg %p87
      %p293 = pneg %p84
      %p294 = pneg %p108
      %p295 = pneg %p105
      %p296 = pneg %p129
      %p297 = pneg %p126
      %p298 = pneg %p150
      %p299 = pneg %p147
      %p300 = pneg %p171
      %p301 = pneg %p168
      %p302 = pneg %p192
      %p303 = pneg %p189
      %p304 = pneg %p218
      %p305 = pneg %p215
      %p306 = scmp.lt.s32.totalorder %s19, 1
      %s307 = scalar_select %p306, %s19, 1
      %s308 = smul.addr %s307, 8
      %s309 = smul.addr %s308, 8
      %s310 = scalar_lea.vmem %s8, %s309
      %p311 = scmp.lt.s32.totalorder %s19, 1
      %s312 = scalar_select %p311, %s19, 1
      %s313 = smul.addr %s312, 8
      %s314 = smul.addr %s313, 8
      %s315 = scalar_lea.vmem %s0, %s314
      %p316 = scmp.lt.s32.totalorder %s19, 1
      %s317 = scalar_select %p316, %s19, 1
      %s318 = smul.addr %s317, 15
      %s319 = smul.addr %s318, 8
      %s320 = scalar_lea.vmem %s1, %s319
      %p321 = scmp.lt.s32.totalorder %s19, 1
      %s322 = scalar_select %p321, %s19, 1
      %s323 = smul.addr %s322, 8
      %s324 = smul.addr %s323, 8
      %s325 = scalar_lea.vmem %s8, %s324
      %v326 = vld [vmem:[%s315] sm:$0xff]
      %v327 = vld [vmem:[%s315 + $0x8] sm:$0xff]
      %v328 = vld [vmem:[%s315 + $0x10] sm:$0xff]
      %v329 = vld [vmem:[%s315 + $0x18] sm:$0xff]
      %v330 = vld [vmem:[%s315 + $0x20] sm:$0xff]
      %v331 = vld [vmem:[%s315 + $0x28] sm:$0xff]
      %v332 = vld [vmem:[%s315 + $0x30] sm:$0xff]
      %v333 = vld [vmem:[%s315 + $0x38] sm:$0xf]
      %v334 = vld [vmem:[%s320] sm:$0xff]
      %v335 = vld [vmem:[%s320 + $0x8] sm:$0xff]
      %v336 = vld [vmem:[%s320 + $0x10] sm:$0xff]
      %v337 = vld [vmem:[%s320 + $0x18] sm:$0xff]
      %v338 = vld [vmem:[%s320 + $0x20] sm:$0xff]
      %v339 = vld [vmem:[%s320 + $0x28] sm:$0xff]
      %v340 = vld [vmem:[%s320 + $0x30] sm:$0xff]
      %v341 = vld [vmem:[%s320 + $0x38] sm:$0xff]
      %v342 = vld [vmem:[%s320 + $0x40] sm:$0xff]
      %v343 = vld [vmem:[%s320 + $0x48] sm:$0xff]
      %v344 = vld [vmem:[%s320 + $0x50] sm:$0xff]
      %v345 = vld [vmem:[%s320 + $0x58] sm:$0xff]
      %v346 = vld [vmem:[%s320 + $0x60] sm:$0xff]
      %v347 = vld [vmem:[%s320 + $0x68] sm:$0xff]
      %v348 = vld [vmem:[%s320 + $0x70] sm:$0xff]
      %v349 = vld [vmem:[%s2] sm:$0xff]
      %v350 = vld [vmem:[%s2 + $0x8] sm:$0xff]
      %v351 = vld [vmem:[%s2 + $0x10] sm:$0xff]
      %v352 = vld [vmem:[%s2 + $0x18] sm:$0xff]
      %v353 = vld [vmem:[%s2 + $0x20] sm:$0xff]
      %v354 = vld [vmem:[%s2 + $0x28] sm:$0xff]
      %v355 = vld [vmem:[%s2 + $0x30] sm:$0xff]
      %v356 = vld [vmem:[%s2 + $0x38] sm:$0xff]
      %v357 = vld [vmem:[%s2 + $0x40] sm:$0xff]
      %v358 = vld [vmem:[%s2 + $0x48] sm:$0xff]
      %v359 = vld [vmem:[%s2 + $0x50] sm:$0xff]
      %v360 = vld [vmem:[%s2 + $0x58] sm:$0xff]
      %v361 = vld [vmem:[%s2 + $0x60] sm:$0xff]
      %v362 = vld [vmem:[%s2 + $0x68] sm:$0xff]
      %v363 = vld [vmem:[%s2 + $0x70] sm:$0xff]
      %v364 = vld [vmem:[%s2 + $0x78] sm:$0xff]
      %v365 = vld [vmem:[%s3] sm:$0x1]
      %v367 = vlaneseq
      %v368 = vshrl.u32 %v367, 7
      %v369 = vsub.s32 0, %v368
      %v370 = vrot.slane %v365, %v369
      %372 = vmatprep.subr.mxu0 0.0
      %373 = vmatpush1.msra.mxu0 %v349
      %374 = vmatprep.subr.mxu0 0.0
      %375 = vmatpush1.msra.mxu0 %v350
      %376 = vmatprep.subr.mxu0 0.0
      %377 = vmatpush1.msra.mxu0 %v351
      %378 = vmatprep.subr.mxu0 0.0
      %379 = vmatpush1.msra.mxu0 %v352
      %380 = vmatprep.subr.mxu0 0.0
      %381 = vmatpush1.msra.mxu0 %v353
      %382 = vmatprep.subr.mxu0 0.0
      %383 = vmatpush1.msra.mxu0 %v354
      %384 = vmatprep.subr.mxu0 0.0
      %385 = vmatpush1.msra.mxu0 %v355
      %386 = vmatprep.subr.mxu0 0.0
      %387 = vmatpush1.msra.mxu0 %v356
      %388 = vmatprep.subr.mxu0 0.0
      %389 = vmatpush1.msra.mxu0 %v357
      %390 = vmatprep.subr.mxu0 0.0
      %391 = vmatpush1.msra.mxu0 %v358
      %392 = vmatprep.subr.mxu0 0.0
      %393 = vmatpush1.msra.mxu0 %v359
      %394 = vmatprep.subr.mxu0 0.0
      %395 = vmatpush1.msra.mxu0 %v360
      %396 = vmatprep.subr.mxu0 0.0
      %397 = vmatpush1.msra.mxu0 %v361
      %398 = vmatprep.subr.mxu0 0.0
      %399 = vmatpush1.msra.mxu0 %v362
      %400 = vmatprep.subr.mxu0 0.0
      %401 = vmatpush1.msra.mxu0 %v363
      %402 = vmatprep.subr.mxu0 0.0
      %403 = vmatpush1.msra.mxu0 %v364
      %404 = vmatprep.subr.mxu0 0.0
      %405 = vmatpush1.msra.mxu0 0.0
      %406 = vmatprep.subr.mxu0 0.0
      %407 = vmatpush1.msra.mxu0 0.0
      %408 = vmatprep.subr.mxu0 0.0
      %409 = vmatpush1.msra.mxu0 0.0
      %410 = vmatprep.subr.mxu0 0.0
      %411 = vmatpush1.msra.mxu0 0.0
      %412 = vmatprep.subr.mxu0 0.0
      %413 = vmatpush1.msra.mxu0 0.0
      %414 = vmatprep.subr.mxu0 0.0
      %415 = vmatpush1.msra.mxu0 0.0
      %416 = vmatprep.subr.mxu0 0.0
      %417 = vmatpush1.msra.mxu0 0.0
      %418 = vmatprep.subr.mxu0 0.0
      %419 = vmatpush1.msra.mxu0 0.0
      %420 = vmatprep.subr.mxu0 0.0
      %421 = vmatpush1.msra.mxu0 0.0
      %422 = vmatprep.subr.mxu0 0.0
      %423 = vmatpush1.msra.mxu0 0.0
      %424 = vmatprep.subr.mxu0 0.0
      %425 = vmatpush1.msra.mxu0 0.0
      %426 = vmatprep.subr.mxu0 0.0
      %427 = vmatpush1.msra.mxu0 0.0
      %428 = vmatprep.subr.mxu0 0.0
      %429 = vmatpush1.msra.mxu0 0.0
      %430 = vmatprep.subr.mxu0 0.0
      %431 = vmatpush1.msra.mxu0 0.0
      %432 = vmatprep.subr.mxu0 0.0
      %433 = vmatpush1.msra.mxu0 0.0
      %434 = vmatprep.subr.mxu0 0.0
      %435 = vmatpush1.msra.mxu0 0.0
      %436 = vmatprep.mubr.f32.mxu0 0.0
      %437 = vmatmul.mubr.f32.gmra.mrb[0].mxu0 %v326
      %v438 = vpop.f32.mrb[0].mxu0
      %v439 = vadd.f32 %v370, %v438
      %v440 = vpop.f32.mrb[0].mxu0
      %441 = vmatprep.mubr.f32.mxu0 0.0
      %442 = vmatmul.mubr.f32.gmra.mrb[0].mxu0 %v327
      %v443 = vpop.f32.mrb[0].mxu0
      %v444 = vadd.f32 %v370, %v443
      %v445 = vpop.f32.mrb[0].mxu0
      %446 = vmatprep.mubr.f32.mxu0 0.0
      %447 = vmatmul.mubr.f32.gmra.mrb[0].mxu0 %v328
      %v448 = vpop.f32.mrb[0].mxu0
      %v449 = vadd.f32 %v370, %v448
      %v450 = vpop.f32.mrb[0].mxu0
      %451 = vmatprep.mubr.f32.mxu0 0.0
      %452 = vmatmul.mubr.f32.gmra.mrb[0].mxu0 %v329
      %v453 = vpop.f32.mrb[0].mxu0
      %v454 = vadd.f32 %v370, %v453
      %v455 = vpop.f32.mrb[0].mxu0
      %456 = vmatprep.mubr.f32.mxu0 0.0
      %457 = vmatmul.mubr.f32.gmra.mrb[0].mxu0 %v330
      %v458 = vpop.f32.mrb[0].mxu0
      %v459 = vadd.f32 %v370, %v458
      %v460 = vpop.f32.mrb[0].mxu0
      %461 = vmatprep.mubr.f32.mxu0 0.0
      %462 = vmatmul.mubr.f32.gmra.mrb[0].mxu0 %v331
      %v463 = vpop.f32.mrb[0].mxu0
      %v464 = vadd.f32 %v370, %v463
      %v465 = vpop.f32.mrb[0].mxu0
      %466 = vmatprep.mubr.f32.mxu0 0.0
      %467 = vmatmul.mubr.f32.gmra.mrb[0].mxu0 %v332
      %v468 = vpop.f32.mrb[0].mxu0
      %v469 = vadd.f32 %v370, %v468
      %v470 = vpop.f32.mrb[0].mxu0
      %471 = vmatprep.mubr.f32.mxu0 0.0
      %472 = vmatmul.mubr.f32.gmra.mrb[0].mxu0 %v333
      %v473 = vpop.f32.mrb[0].mxu0
      %v474 = vadd.f32 %v370, %v473
      %v475 = vpop.f32.mrb[0].mxu0
      %476 = vdwg.mxu0
      %v477 = vmul.f32 %v439, 0.088388346
      %v478 = vmul.f32 %v444, 0.088388346
      %v479 = vmul.f32 %v449, 0.088388346
      %v480 = vmul.f32 %v454, 0.088388346
      %v481 = vmul.f32 %v459, 0.088388346
      %v482 = vmul.f32 %v464, 0.088388346
      %v483 = vmul.f32 %v469, 0.088388346
      %v484 = vmul.f32 %v474, 0.088388346
      %v485 = vld [vmem:[%s4] sm:$0xff]
      %v486 = vld [vmem:[%s4 + $0x8] sm:$0xff]
      %v487 = vld [vmem:[%s4 + $0x10] sm:$0xff]
      %v488 = vld [vmem:[%s4 + $0x18] sm:$0xff]
      %v489 = vld [vmem:[%s4 + $0x20] sm:$0xff]
      %v490 = vld [vmem:[%s4 + $0x28] sm:$0xff]
      %v491 = vld [vmem:[%s4 + $0x30] sm:$0xff]
      %v492 = vld [vmem:[%s4 + $0x38] sm:$0xff]
      %v493 = vld [vmem:[%s4 + $0x40] sm:$0xff]
      %v494 = vld [vmem:[%s4 + $0x48] sm:$0xff]
      %v495 = vld [vmem:[%s4 + $0x50] sm:$0xff]
      %v496 = vld [vmem:[%s4 + $0x58] sm:$0xff]
      %v497 = vld [vmem:[%s4 + $0x60] sm:$0xff]
      %v498 = vld [vmem:[%s4 + $0x68] sm:$0xff]
      %v499 = vld [vmem:[%s4 + $0x70] sm:$0xff]
      %v500 = vld [vmem:[%s4 + $0x78] sm:$0xff]
      %v501 = vld [vmem:[%s5] sm:$0x1]
      %v503 = vlaneseq
      %v504 = vshrl.u32 %v503, 7
      %v505 = vsub.s32 0, %v504
      %v506 = vrot.slane %v501, %v505
      %508 = vmatprep.subr.mxu0 0.0
      %509 = vmatpush1.msra.mxu0 %v485
      %510 = vmatprep.subr.mxu0 0.0
      %511 = vmatpush1.msra.mxu0 %v486
      %512 = vmatprep.subr.mxu0 0.0
      %513 = vmatpush1.msra.mxu0 %v487
      %514 = vmatprep.subr.mxu0 0.0
      %515 = vmatpush1.msra.mxu0 %v488
      %516 = vmatprep.subr.mxu0 0.0
      %517 = vmatpush1.msra.mxu0 %v489
      %518 = vmatprep.subr.mxu0 0.0
      %519 = vmatpush1.msra.mxu0 %v490
      %520 = vmatprep.subr.mxu0 0.0
      %521 = vmatpush1.msra.mxu0 %v491
      %522 = vmatprep.subr.mxu0 0.0
      %523 = vmatpush1.msra.mxu0 %v492
      %524 = vmatprep.subr.mxu0 0.0
      %525 = vmatpush1.msra.mxu0 %v493
      %526 = vmatprep.subr.mxu0 0.0
      %527 = vmatpush1.msra.mxu0 %v494
      %528 = vmatprep.subr.mxu0 0.0
      %529 = vmatpush1.msra.mxu0 %v495
      %530 = vmatprep.subr.mxu0 0.0
      %531 = vmatpush1.msra.mxu0 %v496
      %532 = vmatprep.subr.mxu0 0.0
      %533 = vmatpush1.msra.mxu0 %v497
      %534 = vmatprep.subr.mxu0 0.0
      %535 = vmatpush1.msra.mxu0 %v498
      %536 = vmatprep.subr.mxu0 0.0
      %537 = vmatpush1.msra.mxu0 %v499
      %538 = vmatprep.subr.mxu0 0.0
      %539 = vmatpush1.msra.mxu0 %v500
      %540 = vmatprep.subr.mxu0 0.0
      %541 = vmatpush1.msra.mxu0 0.0
      %542 = vmatprep.subr.mxu0 0.0
      %543 = vmatpush1.msra.mxu0 0.0
      %544 = vmatprep.subr.mxu0 0.0
      %545 = vmatpush1.msra.mxu0 0.0
      %546 = vmatprep.subr.mxu0 0.0
      %547 = vmatpush1.msra.mxu0 0.0
      %548 = vmatprep.subr.mxu0 0.0
      %549 = vmatpush1.msra.mxu0 0.0
      %550 = vmatprep.subr.mxu0 0.0
      %551 = vmatpush1.msra.mxu0 0.0
      %552 = vmatprep.subr.mxu0 0.0
      %553 = vmatpush1.msra.mxu0 0.0
      %554 = vmatprep.subr.mxu0 0.0
      %555 = vmatpush1.msra.mxu0 0.0
      %556 = vmatprep.subr.mxu0 0.0
      %557 = vmatpush1.msra.mxu0 0.0
      %558 = vmatprep.subr.mxu0 0.0
      %559 = vmatpush1.msra.mxu0 0.0
      %560 = vmatprep.subr.mxu0 0.0
      %561 = vmatpush1.msra.mxu0 0.0
      %562 = vmatprep.subr.mxu0 0.0
      %563 = vmatpush1.msra.mxu0 0.0
      %564 = vmatprep.subr.mxu0 0.0
      %565 = vmatpush1.msra.mxu0 0.0
      %566 = vmatprep.subr.mxu0 0.0
      %567 = vmatpush1.msra.mxu0 0.0
      %568 = vmatprep.subr.mxu0 0.0
      %569 = vmatpush1.msra.mxu0 0.0
      %570 = vmatprep.subr.mxu0 0.0
      %571 = vmatpush1.msra.mxu0 0.0
      %572 = vmatprep.mubr.f32.mxu0 0.0
      %573 = vmatmul.mubr.f32.gmra.mrb[0].mxu0 %v334
      %v574 = vpop.f32.mrb[0].mxu0
      %v575 = vadd.f32 %v506, %v574
      %v576 = vpop.f32.mrb[0].mxu0
      %577 = vmatprep.mubr.f32.mxu0 0.0
      %578 = vmatmul.mubr.f32.gmra.mrb[0].mxu0 %v335
      %v579 = vpop.f32.mrb[0].mxu0
      %v580 = vadd.f32 %v506, %v579
      %v581 = vpop.f32.mrb[0].mxu0
      %582 = vmatprep.mubr.f32.mxu0 0.0
      %583 = vmatmul.mubr.f32.gmra.mrb[0].mxu0 %v336
      %v584 = vpop.f32.mrb[0].mxu0
      %v585 = vadd.f32 %v506, %v584
      %v586 = vpop.f32.mrb[0].mxu0
      %587 = vmatprep.mubr.f32.mxu0 0.0
      %588 = vmatmul.mubr.f32.gmra.mrb[0].mxu0 %v337
      %v589 = vpop.f32.mrb[0].mxu0
      %v590 = vadd.f32 %v506, %v589
      %v591 = vpop.f32.mrb[0].mxu0
      %592 = vmatprep.mubr.f32.mxu0 0.0
      %593 = vmatmul.mubr.f32.gmra.mrb[0].mxu0 %v338
      %v594 = vpop.f32.mrb[0].mxu0
      %v595 = vadd.f32 %v506, %v594
      %v596 = vpop.f32.mrb[0].mxu0
      %597 = vmatprep.mubr.f32.mxu0 0.0
      %598 = vmatmul.mubr.f32.gmra.mrb[0].mxu0 %v339
      %v599 = vpop.f32.mrb[0].mxu0
      %v600 = vadd.f32 %v506, %v599
      %v601 = vpop.f32.mrb[0].mxu0
      %602 = vmatprep.mubr.f32.mxu0 0.0
      %603 = vmatmul.mubr.f32.gmra.mrb[0].mxu0 %v340
      %v604 = vpop.f32.mrb[0].mxu0
      %v605 = vadd.f32 %v506, %v604
      %v606 = vpop.f32.mrb[0].mxu0
      %607 = vmatprep.mubr.f32.mxu0 0.0
      %608 = vmatmul.mubr.f32.gmra.mrb[0].mxu0 %v341
      %v609 = vpop.f32.mrb[0].mxu0
      %v610 = vadd.f32 %v506, %v609
      %v611 = vpop.f32.mrb[0].mxu0
      %612 = vmatprep.mubr.f32.mxu0 0.0
      %613 = vmatmul.mubr.f32.gmra.mrb[0].mxu0 %v342
      %v614 = vpop.f32.mrb[0].mxu0
      %v615 = vadd.f32 %v506, %v614
      %v616 = vpop.f32.mrb[0].mxu0
      %617 = vmatprep.mubr.f32.mxu0 0.0
      %618 = vmatmul.mubr.f32.gmra.mrb[0].mxu0 %v343
      %v619 = vpop.f32.mrb[0].mxu0
      %v620 = vadd.f32 %v506, %v619
      %v621 = vpop.f32.mrb[0].mxu0
      %622 = vmatprep.mubr.f32.mxu0 0.0
      %623 = vmatmul.mubr.f32.gmra.mrb[0].mxu0 %v344
      %v624 = vpop.f32.mrb[0].mxu0
      %v625 = vadd.f32 %v506, %v624
      %v626 = vpop.f32.mrb[0].mxu0
      %627 = vmatprep.mubr.f32.mxu0 0.0
      %628 = vmatmul.mubr.f32.gmra.mrb[0].mxu0 %v345
      %v629 = vpop.f32.mrb[0].mxu0
      %v630 = vadd.f32 %v506, %v629
      %v631 = vpop.f32.mrb[0].mxu0
      %632 = vmatprep.mubr.f32.mxu0 0.0
      %633 = vmatmul.mubr.f32.gmra.mrb[0].mxu0 %v346
      %v634 = vpop.f32.mrb[0].mxu0
      %v635 = vadd.f32 %v506, %v634
      %v636 = vpop.f32.mrb[0].mxu0
      %637 = vmatprep.mubr.f32.mxu0 0.0
      %638 = vmatmul.mubr.f32.gmra.mrb[0].mxu0 %v347
      %v639 = vpop.f32.mrb[0].mxu0
      %v640 = vadd.f32 %v506, %v639
      %v641 = vpop.f32.mrb[0].mxu0
      %642 = vmatprep.mubr.f32.mxu0 0.0
      %643 = vmatmul.mubr.f32.gmra.mrb[0].mxu0 %v348
      %v644 = vpop.f32.mrb[0].mxu0
      %v645 = vadd.f32 %v506, %v644
      %v646 = vpop.f32.mrb[0].mxu0
      %647 = vdwg.mxu0
      %vm648 = vcmask 64512
      %649 = vst.msk [vmem:[#allocation2] sm:$0xff] %vm648, %v477
      %vm650 = vcmask 63488
      %651 = vst.msk [vmem:[#allocation2 + $0x8] sm:$0x7f] %vm650, %v478
      %652 = vst.msk [vmem:[#allocation3] sm:$0xff] %vm648, %v575
      %653 = vst.msk [vmem:[#allocation3 + $0x8] sm:$0xff] %vm648, %v580
      %654 = vst.msk [vmem:[#allocation3 + $0x10] sm:$0xff] %vm648, %v585
      %vm655 = vcmask 62464
      %656 = vst.msk [vmem:[#allocation3 + $0x18] sm:$0x3f] %vm655, %v590
      %661 = vrot.lane.b32.xlu0 %v575, 96
      %v662 = vpop.permute.xlu0 %661
      %663 = vrot.lane.b32.xlu0 %v580, 96
      %v664 = vpop.permute.xlu0 %663
      %665 = vrot.lane.b32.xlu0 %v585, 96
      %v666 = vpop.permute.xlu0 %665
      %667 = vrot.lane.b32.xlu0 %v590, 96
      %v668 = vpop.permute.xlu0 %667
      %673 = vst.msk [vmem:[#allocation4] sm:$0xff] %vm648, %v662
      %674 = vst.msk [vmem:[#allocation4 + $0x8] sm:$0xff] %vm648, %v664
      %675 = vst.msk [vmem:[#allocation4 + $0x10] sm:$0xff] %vm648, %v666
      %676 = vst.msk [vmem:[#allocation4 + $0x18] sm:$0x3f] %vm655, %v668
      %679 = vrot.lane.b32.xlu0 %v477, 120
      %v680 = vpop.permute.xlu0 %679
      %681 = vrot.lane.b32.xlu0 %v478, 120
      %v682 = vpop.permute.xlu0 %681
      %685 = vst.msk [vmem:[#allocation2 + $0xf] sm:$0xff] %vm648, %v680
      %686 = vst.msk [vmem:[#allocation2 + $0x17] sm:$0x7f] %vm650, %v682
      %687 = vrot.lane.b32.xlu0 %v575, 120
      %v688 = vpop.permute.xlu0 %687
      %689 = vrot.lane.b32.xlu0 %v580, 120
      %v690 = vpop.permute.xlu0 %689
      %691 = vrot.lane.b32.xlu0 %v585, 120
      %v692 = vpop.permute.xlu0 %691
      %693 = vrot.lane.b32.xlu0 %v590, 120
      %v694 = vpop.permute.xlu0 %693
      %699 = vst.msk [vmem:[#allocation3 + $0x1e] sm:$0xff] %vm648, %v688
      %700 = vst.msk [vmem:[#allocation3 + $0x26] sm:$0xff] %vm648, %v690
      %701 = vst.msk [vmem:[#allocation3 + $0x2e] sm:$0xff] %vm648, %v692
      %702 = vst.msk [vmem:[#allocation3 + $0x36] sm:$0x3f] %vm655, %v694
      %703 = vrot.lane.b32.xlu0 %v575, 88
      %v704 = vpop.permute.xlu0 %703
      %705 = vrot.lane.b32.xlu0 %v580, 88
      %v706 = vpop.permute.xlu0 %705
      %707 = vrot.lane.b32.xlu0 %v585, 88
      %v708 = vpop.permute.xlu0 %707
      %709 = vrot.lane.b32.xlu0 %v590, 88
      %v710 = vpop.permute.xlu0 %709
      %715 = vst.msk [vmem:[#allocation4 + $0x1e] sm:$0xff] %vm648, %v704
      %716 = vst.msk [vmem:[#allocation4 + $0x26] sm:$0xff] %vm648, %v706
      %717 = vst.msk [vmem:[#allocation4 + $0x2e] sm:$0xff] %vm648, %v708
      %718 = vst.msk [vmem:[#allocation4 + $0x36] sm:$0x3f] %vm655, %v710
      %719 = vrot.lane.b32.xlu0 %v477, 112
      %v720 = vpop.permute.xlu0 %719
      %721 = vrot.lane.b32.xlu0 %v478, 112
      %v722 = vpop.permute.xlu0 %721
      %725 = vst.msk [vmem:[#allocation2 + $0x1e] sm:$0xff] %vm648, %v720
      %726 = vst.msk [vmem:[#allocation2 + $0x26] sm:$0x7f] %vm650, %v722
      %727 = vrot.lane.b32.xlu0 %v575, 112
      %v728 = vpop.permute.xlu0 %727
      %729 = vrot.lane.b32.xlu0 %v580, 112
      %v730 = vpop.permute.xlu0 %729
      %731 = vrot.lane.b32.xlu0 %v585, 112
      %v732 = vpop.permute.xlu0 %731
      %733 = vrot.lane.b32.xlu0 %v590, 112
      %v734 = vpop.permute.xlu0 %733
      %739 = vst.msk [vmem:[#allocation3 + $0x3c] sm:$0xff] %vm648, %v728
      %740 = vst.msk [vmem:[#allocation3 + $0x44] sm:$0xff] %vm648, %v730
      %741 = vst.msk [vmem:[#allocation3 + $0x4c] sm:$0xff] %vm648, %v732
      %742 = vst.msk [vmem:[#allocation3 + $0x54] sm:$0x3f] %vm655, %v734
      %743 = vrot.lane.b32.xlu0 %v575, 80
      %v744 = vpop.permute.xlu0 %743
      %745 = vrot.lane.b32.xlu0 %v580, 80
      %v746 = vpop.permute.xlu0 %745
      %747 = vrot.lane.b32.xlu0 %v585, 80
      %v748 = vpop.permute.xlu0 %747
      %749 = vrot.lane.b32.xlu0 %v590, 80
      %v750 = vpop.permute.xlu0 %749
      %755 = vst.msk [vmem:[#allocation4 + $0x3c] sm:$0xff] %vm648, %v744
      %756 = vst.msk [vmem:[#allocation4 + $0x44] sm:$0xff] %vm648, %v746
      %757 = vst.msk [vmem:[#allocation4 + $0x4c] sm:$0xff] %vm648, %v748
      %758 = vst.msk [vmem:[#allocation4 + $0x54] sm:$0x3f] %vm655, %v750
      %759 = vrot.lane.b32.xlu0 %v477, 104
      %v760 = vpop.permute.xlu0 %759
      %761 = vrot.lane.b32.xlu0 %v478, 104
      %v762 = vpop.permute.xlu0 %761
      %765 = vst.msk [vmem:[#allocation2 + $0x2d] sm:$0xff] %vm648, %v760
      %766 = vst.msk [vmem:[#allocation2 + $0x35] sm:$0x7f] %vm650, %v762
      %767 = vrot.lane.b32.xlu0 %v575, 104
      %v768 = vpop.permute.xlu0 %767
      %769 = vrot.lane.b32.xlu0 %v580, 104
      %v770 = vpop.permute.xlu0 %769
      %771 = vrot.lane.b32.xlu0 %v585, 104
      %v772 = vpop.permute.xlu0 %771
      %773 = vrot.lane.b32.xlu0 %v590, 104
      %v774 = vpop.permute.xlu0 %773
      %779 = vst.msk [vmem:[#allocation3 + $0x5a] sm:$0xff] %vm648, %v768
      %780 = vst.msk [vmem:[#allocation3 + $0x62] sm:$0xff] %vm648, %v770
      %781 = vst.msk [vmem:[#allocation3 + $0x6a] sm:$0xff] %vm648, %v772
      %782 = vst.msk [vmem:[#allocation3 + $0x72] sm:$0x3f] %vm655, %v774
      %783 = vrot.lane.b32.xlu0 %v575, 72
      %v784 = vpop.permute.xlu0 %783
      %785 = vrot.lane.b32.xlu0 %v580, 72
      %v786 = vpop.permute.xlu0 %785
      %787 = vrot.lane.b32.xlu0 %v585, 72
      %v788 = vpop.permute.xlu0 %787
      %789 = vrot.lane.b32.xlu0 %v590, 72
      %v790 = vpop.permute.xlu0 %789
      %795 = vst.msk [vmem:[#allocation4 + $0x5a] sm:$0xff] %vm648, %v784
      %796 = vst.msk [vmem:[#allocation4 + $0x62] sm:$0xff] %vm648, %v786
      %797 = vst.msk [vmem:[#allocation4 + $0x6a] sm:$0xff] %vm648, %v788
      %798 = vst.msk [vmem:[#allocation4 + $0x72] sm:$0x3f] %vm655, %v790
      %s799 = scalar_lea.vmem [#allocation2], 64
      %vm800 = vcmask 64519
      %801 = vst.msk [vmem:[%s799 - $0x7] sm:$0x80] %vm800, %v478
      %802 = vst.msk [vmem:[%s799 + $0x1] sm:$0xff] %vm648, %v479
      %803 = vst.msk [vmem:[%s799 + $0x9] sm:$0x3f] %vm655, %v480
      %s804 = scalar_lea.vmem [#allocation3], 120
      %vm805 = vcmask 64518
      %806 = vst.msk [vmem:[%s804 - $0x6] sm:$0xc0] %vm805, %v590
      %807 = vst.msk [vmem:[%s804 + $0x2] sm:$0xff] %vm648, %v595
      %808 = vst.msk [vmem:[%s804 + $0xa] sm:$0xff] %vm648, %v600
      %809 = vst.msk [vmem:[%s804 + $0x12] sm:$0xff] %vm648, %v605
      %vm810 = vcmask 60416
      %811 = vst.msk [vmem:[%s804 + $0x1a] sm:$0xf] %vm810, %v610
      %816 = vrot.lane.b32.xlu0 %v595, 96
      %v817 = vpop.permute.xlu0 %816
      %818 = vrot.lane.b32.xlu0 %v600, 96
      %v819 = vpop.permute.xlu0 %818
      %820 = vrot.lane.b32.xlu0 %v605, 96
      %v821 = vpop.permute.xlu0 %820
      %822 = vrot.lane.b32.xlu0 %v610, 96
      %v823 = vpop.permute.xlu0 %822
      %s828 = scalar_lea.vmem [#allocation4], 120
      %829 = vst.msk [vmem:[%s828 - $0x6] sm:$0xc0] %vm805, %v668
      %830 = vst.msk [vmem:[%s828 + $0x2] sm:$0xff] %vm648, %v817
      %831 = vst.msk [vmem:[%s828 + $0xa] sm:$0xff] %vm648, %v819
      %832 = vst.msk [vmem:[%s828 + $0x12] sm:$0xff] %vm648, %v821
      %833 = vst.msk [vmem:[%s828 + $0x1a] sm:$0xf] %vm810, %v823
      %836 = vrot.lane.b32.xlu0 %v479, 120
      %v837 = vpop.permute.xlu0 %836
      %838 = vrot.lane.b32.xlu0 %v480, 120
      %v839 = vpop.permute.xlu0 %838
      %842 = vst.msk [vmem:[%s799 + $0x8] sm:$0x80] %vm800, %v682
      %843 = vst.msk [vmem:[%s799 + $0x10] sm:$0xff] %vm648, %v837
      %844 = vst.msk [vmem:[%s799 + $0x18] sm:$0x3f] %vm655, %v839
      %845 = vrot.lane.b32.xlu0 %v595, 120
      %v846 = vpop.permute.xlu0 %845
      %847 = vrot.lane.b32.xlu0 %v600, 120
      %v848 = vpop.permute.xlu0 %847
      %849 = vrot.lane.b32.xlu0 %v605, 120
      %v850 = vpop.permute.xlu0 %849
      %851 = vrot.lane.b32.xlu0 %v610, 120
      %v852 = vpop.permute.xlu0 %851
      %857 = vst.msk [vmem:[%s804 + $0x18] sm:$0xc0] %vm805, %v694
      %858 = vst.msk [vmem:[%s804 + $0x20] sm:$0xff] %vm648, %v846
      %859 = vst.msk [vmem:[%s804 + $0x28] sm:$0xff] %vm648, %v848
      %860 = vst.msk [vmem:[%s804 + $0x30] sm:$0xff] %vm648, %v850
      %861 = vst.msk [vmem:[%s804 + $0x38] sm:$0xf] %vm810, %v852
      %862 = vrot.lane.b32.xlu0 %v595, 88
      %v863 = vpop.permute.xlu0 %862
      %864 = vrot.lane.b32.xlu0 %v600, 88
      %v865 = vpop.permute.xlu0 %864
      %866 = vrot.lane.b32.xlu0 %v605, 88
      %v867 = vpop.permute.xlu0 %866
      %868 = vrot.lane.b32.xlu0 %v610, 88
      %v869 = vpop.permute.xlu0 %868
      %874 = vst.msk [vmem:[%s828 + $0x18] sm:$0xc0] %vm805, %v710
      %875 = vst.msk [vmem:[%s828 + $0x20] sm:$0xff] %vm648, %v863
      %876 = vst.msk [vmem:[%s828 + $0x28] sm:$0xff] %vm648, %v865
      %877 = vst.msk [vmem:[%s828 + $0x30] sm:$0xff] %vm648, %v867
      %878 = vst.msk [vmem:[%s828 + $0x38] sm:$0xf] %vm810, %v869
      %879 = vrot.lane.b32.xlu0 %v479, 112
      %v880 = vpop.permute.xlu0 %879
      %881 = vrot.lane.b32.xlu0 %v480, 112
      %v882 = vpop.permute.xlu0 %881
      %885 = vst.msk [vmem:[%s799 + $0x17] sm:$0x80] %vm800, %v722
      %886 = vst.msk [vmem:[%s799 + $0x1f] sm:$0xff] %vm648, %v880
      %887 = vst.msk [vmem:[%s799 + $0x27] sm:$0x3f] %vm655, %v882
      %888 = vrot.lane.b32.xlu0 %v595, 112
      %v889 = vpop.permute.xlu0 %888
      %890 = vrot.lane.b32.xlu0 %v600, 112
      %v891 = vpop.permute.xlu0 %890
      %892 = vrot.lane.b32.xlu0 %v605, 112
      %v893 = vpop.permute.xlu0 %892
      %894 = vrot.lane.b32.xlu0 %v610, 112
      %v895 = vpop.permute.xlu0 %894
      %900 = vst.msk [vmem:[%s804 + $0x36] sm:$0xc0] %vm805, %v734
      %901 = vst.msk [vmem:[%s804 + $0x3e] sm:$0xff] %vm648, %v889
      %902 = vst.msk [vmem:[%s804 + $0x46] sm:$0xff] %vm648, %v891
      %903 = vst.msk [vmem:[%s804 + $0x4e] sm:$0xff] %vm648, %v893
      %904 = vst.msk [vmem:[%s804 + $0x56] sm:$0xf] %vm810, %v895
      %905 = vrot.lane.b32.xlu0 %v595, 80
      %v906 = vpop.permute.xlu0 %905
      %907 = vrot.lane.b32.xlu0 %v600, 80
      %v908 = vpop.permute.xlu0 %907
      %909 = vrot.lane.b32.xlu0 %v605, 80
      %v910 = vpop.permute.xlu0 %909
      %911 = vrot.lane.b32.xlu0 %v610, 80
      %v912 = vpop.permute.xlu0 %911
      %917 = vst.msk [vmem:[%s828 + $0x36] sm:$0xc0] %vm805, %v750
      %918 = vst.msk [vmem:[%s828 + $0x3e] sm:$0xff] %vm648, %v906
      %919 = vst.msk [vmem:[%s828 + $0x46] sm:$0xff] %vm648, %v908
      %920 = vst.msk [vmem:[%s828 + $0x4e] sm:$0xff] %vm648, %v910
      %921 = vst.msk [vmem:[%s828 + $0x56] sm:$0xf] %vm810, %v912
      %922 = vrot.lane.b32.xlu0 %v479, 104
      %v923 = vpop.permute.xlu0 %922
      %924 = vrot.lane.b32.xlu0 %v480, 104
      %v925 = vpop.permute.xlu0 %924
      %928 = vst.msk [vmem:[%s799 + $0x26] sm:$0x80] %vm800, %v762
      %929 = vst.msk [vmem:[%s799 + $0x2e] sm:$0xff] %vm648, %v923
      %930 = vst.msk [vmem:[%s799 + $0x36] sm:$0x3f] %vm655, %v925
      %931 = vrot.lane.b32.xlu0 %v595, 104
      %v932 = vpop.permute.xlu0 %931
      %933 = vrot.lane.b32.xlu0 %v600, 104
      %v934 = vpop.permute.xlu0 %933
      %935 = vrot.lane.b32.xlu0 %v605, 104
      %v936 = vpop.permute.xlu0 %935
      %937 = vrot.lane.b32.xlu0 %v610, 104
      %v938 = vpop.permute.xlu0 %937
      %943 = vst.msk [vmem:[%s804 + $0x54] sm:$0xc0] %vm805, %v774
      %944 = vst.msk [vmem:[%s804 + $0x5c] sm:$0xff] %vm648, %v932
      %945 = vst.msk [vmem:[%s804 + $0x64] sm:$0xff] %vm648, %v934
      %946 = vst.msk [vmem:[%s804 + $0x6c] sm:$0xff] %vm648, %v936
      %947 = vst.msk [vmem:[%s804 + $0x74] sm:$0xf] %vm810, %v938
      %948 = vrot.lane.b32.xlu0 %v595, 72
      %v949 = vpop.permute.xlu0 %948
      %950 = vrot.lane.b32.xlu0 %v600, 72
      %v951 = vpop.permute.xlu0 %950
      %952 = vrot.lane.b32.xlu0 %v605, 72
      %v953 = vpop.permute.xlu0 %952
      %954 = vrot.lane.b32.xlu0 %v610, 72
      %v955 = vpop.permute.xlu0 %954
      %960 = vst.msk [vmem:[%s828 + $0x54] sm:$0xc0] %vm805, %v790
      %961 = vst.msk [vmem:[%s828 + $0x5c] sm:$0xff] %vm648, %v949
      %962 = vst.msk [vmem:[%s828 + $0x64] sm:$0xff] %vm648, %v951
      %963 = vst.msk [vmem:[%s828 + $0x6c] sm:$0xff] %vm648, %v953
      %964 = vst.msk [vmem:[%s828 + $0x74] sm:$0xf] %vm810, %v955
      %s965 = scalar_lea.vmem [#allocation2], 128
      %966 = vst.msk [vmem:[%s965 - $0x6] sm:$0xc0] %vm805, %v480
      %967 = vst.msk [vmem:[%s965 + $0x2] sm:$0xff] %vm648, %v481
      %vm968 = vcmask 61440
      %969 = vst.msk [vmem:[%s965 + $0xa] sm:$0x1f] %vm968, %v482
      %s970 = scalar_lea.vmem [#allocation3], 240
      %vm971 = vcmask 64516
      %972 = vst.msk [vmem:[%s970 - $0x4] sm:$0xf0] %vm971, %v610
      %973 = vst.msk [vmem:[%s970 + $0x4] sm:$0xff] %vm648, %v615
      %974 = vst.msk [vmem:[%s970 + $0xc] sm:$0xff] %vm648, %v620
      %975 = vst.msk [vmem:[%s970 + $0x14] sm:$0xff] %vm648, %v625
      %vm976 = vcmask 58368
      %977 = vst.msk [vmem:[%s970 + $0x1c] sm:$0x3] %vm976, %v630
      %982 = vrot.lane.b32.xlu0 %v615, 96
      %v983 = vpop.permute.xlu0 %982
      %984 = vrot.lane.b32.xlu0 %v620, 96
      %v985 = vpop.permute.xlu0 %984
      %986 = vrot.lane.b32.xlu0 %v625, 96
      %v987 = vpop.permute.xlu0 %986
      %988 = vrot.lane.b32.xlu0 %v630, 96
      %v989 = vpop.permute.xlu0 %988
      %s994 = scalar_lea.vmem [#allocation4], 240
      %995 = vst.msk [vmem:[%s994 - $0x4] sm:$0xf0] %vm971, %v823
      %996 = vst.msk [vmem:[%s994 + $0x4] sm:$0xff] %vm648, %v983
      %997 = vst.msk [vmem:[%s994 + $0xc] sm:$0xff] %vm648, %v985
      %998 = vst.msk [vmem:[%s994 + $0x14] sm:$0xff] %vm648, %v987
      %999 = vst.msk [vmem:[%s994 + $0x1c] sm:$0x3] %vm976, %v989
      %1002 = vrot.lane.b32.xlu0 %v481, 120
      %v1003 = vpop.permute.xlu0 %1002
      %1004 = vrot.lane.b32.xlu0 %v482, 120
      %v1005 = vpop.permute.xlu0 %1004
      %1008 = vst.msk [vmem:[%s965 + $0x9] sm:$0xc0] %vm805, %v839
      %1009 = vst.msk [vmem:[%s965 + $0x11] sm:$0xff] %vm648, %v1003
      %1010 = vst.msk [vmem:[%s965 + $0x19] sm:$0x1f] %vm968, %v1005
      %1011 = vrot.lane.b32.xlu0 %v615, 120
      %v1012 = vpop.permute.xlu0 %1011
      %1013 = vrot.lane.b32.xlu0 %v620, 120
      %v1014 = vpop.permute.xlu0 %1013
      %1015 = vrot.lane.b32.xlu0 %v625, 120
      %v1016 = vpop.permute.xlu0 %1015
      %1017 = vrot.lane.b32.xlu0 %v630, 120
      %v1018 = vpop.permute.xlu0 %1017
      %1023 = vst.msk [vmem:[%s970 + $0x1a] sm:$0xf0] %vm971, %v852
      %1024 = vst.msk [vmem:[%s970 + $0x22] sm:$0xff] %vm648, %v1012
      %1025 = vst.msk [vmem:[%s970 + $0x2a] sm:$0xff] %vm648, %v1014
      %1026 = vst.msk [vmem:[%s970 + $0x32] sm:$0xff] %vm648, %v1016
      %1027 = vst.msk [vmem:[%s970 + $0x3a] sm:$0x3] %vm976, %v1018
      %1028 = vrot.lane.b32.xlu0 %v615, 88
      %v1029 = vpop.permute.xlu0 %1028
      %1030 = vrot.lane.b32.xlu0 %v620, 88
      %v1031 = vpop.permute.xlu0 %1030
      %1032 = vrot.lane.b32.xlu0 %v625, 88
      %v1033 = vpop.permute.xlu0 %1032
      %1034 = vrot.lane.b32.xlu0 %v630, 88
      %v1035 = vpop.permute.xlu0 %1034
      %1040 = vst.msk [vmem:[%s994 + $0x1a] sm:$0xf0] %vm971, %v869
      %1041 = vst.msk [vmem:[%s994 + $0x22] sm:$0xff] %vm648, %v1029
      %1042 = vst.msk [vmem:[%s994 + $0x2a] sm:$0xff] %vm648, %v1031
      %1043 = vst.msk [vmem:[%s994 + $0x32] sm:$0xff] %vm648, %v1033
      %1044 = vst.msk [vmem:[%s994 + $0x3a] sm:$0x3] %vm976, %v1035
      %1045 = vrot.lane.b32.xlu0 %v481, 112
      %v1046 = vpop.permute.xlu0 %1045
      %1047 = vrot.lane.b32.xlu0 %v482, 112
      %v1048 = vpop.permute.xlu0 %1047
      %1051 = vst.msk [vmem:[%s965 + $0x18] sm:$0xc0] %vm805, %v882
      %1052 = vst.msk [vmem:[%s965 + $0x20] sm:$0xff] %vm648, %v1046
      %1053 = vst.msk [vmem:[%s965 + $0x28] sm:$0x1f] %vm968, %v1048
      %1054 = vrot.lane.b32.xlu0 %v615, 112
      %v1055 = vpop.permute.xlu0 %1054
      %1056 = vrot.lane.b32.xlu0 %v620, 112
      %v1057 = vpop.permute.xlu0 %1056
      %1058 = vrot.lane.b32.xlu0 %v625, 112
      %v1059 = vpop.permute.xlu0 %1058
      %1060 = vrot.lane.b32.xlu0 %v630, 112
      %v1061 = vpop.permute.xlu0 %1060
      %1066 = vst.msk [vmem:[%s970 + $0x38] sm:$0xf0] %vm971, %v895
      %1067 = vst.msk [vmem:[%s970 + $0x40] sm:$0xff] %vm648, %v1055
      %1068 = vst.msk [vmem:[%s970 + $0x48] sm:$0xff] %vm648, %v1057
      %1069 = vst.msk [vmem:[%s970 + $0x50] sm:$0xff] %vm648, %v1059
      %1070 = vst.msk [vmem:[%s970 + $0x58] sm:$0x3] %vm976, %v1061
      %1071 = vrot.lane.b32.xlu0 %v615, 80
      %v1072 = vpop.permute.xlu0 %1071
      %1073 = vrot.lane.b32.xlu0 %v620, 80
      %v1074 = vpop.permute.xlu0 %1073
      %1075 = vrot.lane.b32.xlu0 %v625, 80
      %v1076 = vpop.permute.xlu0 %1075
      %1077 = vrot.lane.b32.xlu0 %v630, 80
      %v1078 = vpop.permute.xlu0 %1077
      %1083 = vst.msk [vmem:[%s994 + $0x38] sm:$0xf0] %vm971, %v912
      %1084 = vst.msk [vmem:[%s994 + $0x40] sm:$0xff] %vm648, %v1072
      %1085 = vst.msk [vmem:[%s994 + $0x48] sm:$0xff] %vm648, %v1074
      %1086 = vst.msk [vmem:[%s994 + $0x50] sm:$0xff] %vm648, %v1076
      %1087 = vst.msk [vmem:[%s994 + $0x58] sm:$0x3] %vm976, %v1078
      %1088 = vrot.lane.b32.xlu0 %v481, 104
      %v1089 = vpop.permute.xlu0 %1088
      %1090 = vrot.lane.b32.xlu0 %v482, 104
      %v1091 = vpop.permute.xlu0 %1090
      %1094 = vst.msk [vmem:[%s965 + $0x27] sm:$0xc0] %vm805, %v925
      %1095 = vst.msk [vmem:[%s965 + $0x2f] sm:$0xff] %vm648, %v1089
      %1096 = vst.msk [vmem:[%s965 + $0x37] sm:$0x1f] %vm968, %v1091
      %1097 = vrot.lane.b32.xlu0 %v615, 104
      %v1098 = vpop.permute.xlu0 %1097
      %1099 = vrot.lane.b32.xlu0 %v620, 104
      %v1100 = vpop.permute.xlu0 %1099
      %1101 = vrot.lane.b32.xlu0 %v625, 104
      %v1102 = vpop.permute.xlu0 %1101
      %1103 = vrot.lane.b32.xlu0 %v630, 104
      %v1104 = vpop.permute.xlu0 %1103
      %1109 = vst.msk [vmem:[%s970 + $0x56] sm:$0xf0] %vm971, %v938
      %1110 = vst.msk [vmem:[%s970 + $0x5e] sm:$0xff] %vm648, %v1098
      %1111 = vst.msk [vmem:[%s970 + $0x66] sm:$0xff] %vm648, %v1100
      %1112 = vst.msk [vmem:[%s970 + $0x6e] sm:$0xff] %vm648, %v1102
      %1113 = vst.msk [vmem:[%s970 + $0x76] sm:$0x3] %vm976, %v1104
      %1114 = vrot.lane.b32.xlu0 %v615, 72
      %v1115 = vpop.permute.xlu0 %1114
      %1116 = vrot.lane.b32.xlu0 %v620, 72
      %v1117 = vpop.permute.xlu0 %1116
      %1118 = vrot.lane.b32.xlu0 %v625, 72
      %v1119 = vpop.permute.xlu0 %1118
      %1120 = vrot.lane.b32.xlu0 %v630, 72
      %v1121 = vpop.permute.xlu0 %1120
      %1126 = vst.msk [vmem:[%s994 + $0x56] sm:$0xf0] %vm971, %v955
      %1127 = vst.msk [vmem:[%s994 + $0x5e] sm:$0xff] %vm648, %v1115
      %1128 = vst.msk [vmem:[%s994 + $0x66] sm:$0xff] %vm648, %v1117
      %1129 = vst.msk [vmem:[%s994 + $0x6e] sm:$0xff] %vm648, %v1119
      %1130 = vst.msk [vmem:[%s994 + $0x76] sm:$0x3] %vm976, %v1121
      %s1131 = scalar_lea.vmem [#allocation2], 192
      %vm1132 = vcmask 64517
      %1133 = vst.msk [vmem:[%s1131 - $0x5] sm:$0xe0] %vm1132, %v482
      %1134 = vst.msk [vmem:[%s1131 + $0x3] sm:$0xff] %vm648, %v483
      %1135 = vst.msk [vmem:[%s1131 + $0xb] sm:$0xf] %vm810, %v484
      %s1136 = scalar_lea.vmem [#allocation3], 360
      %vm1137 = vcmask 64514
      %1138 = vst.msk [vmem:[%s1136 - $0x2] sm:$0xfc] %vm1137, %v630
      %1139 = vst.msk [vmem:[%s1136 + $0x6] sm:$0xff] %vm648, %v635
      %1140 = vst.msk [vmem:[%s1136 + $0xe] sm:$0xff] %vm648, %v640
      %1141 = vst.msk [vmem:[%s1136 + $0x16] sm:$0xff] %vm648, %v645
      %1145 = vrot.lane.b32.xlu0 %v635, 96
      %v1146 = vpop.permute.xlu0 %1145
      %1147 = vrot.lane.b32.xlu0 %v640, 96
      %v1148 = vpop.permute.xlu0 %1147
      %1149 = vrot.lane.b32.xlu0 %v645, 96
      %v1150 = vpop.permute.xlu0 %1149
      %s1154 = scalar_lea.vmem [#allocation4], 360
      %1155 = vst.msk [vmem:[%s1154 - $0x2] sm:$0xfc] %vm1137, %v989
      %1156 = vst.msk [vmem:[%s1154 + $0x6] sm:$0xff] %vm648, %v1146
      %1157 = vst.msk [vmem:[%s1154 + $0xe] sm:$0xff] %vm648, %v1148
      %1158 = vst.msk [vmem:[%s1154 + $0x16] sm:$0xff] %vm648, %v1150
      %1161 = vrot.lane.b32.xlu0 %v483, 120
      %v1162 = vpop.permute.xlu0 %1161
      %1163 = vrot.lane.b32.xlu0 %v484, 120
      %v1164 = vpop.permute.xlu0 %1163
      %1167 = vst.msk [vmem:[%s1131 + $0xa] sm:$0xe0] %vm1132, %v1005
      %1168 = vst.msk [vmem:[%s1131 + $0x12] sm:$0xff] %vm648, %v1162
      %1169 = vst.msk [vmem:[%s1131 + $0x1a] sm:$0xf] %vm810, %v1164
      %1170 = vrot.lane.b32.xlu0 %v635, 120
      %v1171 = vpop.permute.xlu0 %1170
      %1172 = vrot.lane.b32.xlu0 %v640, 120
      %v1173 = vpop.permute.xlu0 %1172
      %1174 = vrot.lane.b32.xlu0 %v645, 120
      %v1175 = vpop.permute.xlu0 %1174
      %1179 = vst.msk [vmem:[%s1136 + $0x1c] sm:$0xfc] %vm1137, %v1018
      %1180 = vst.msk [vmem:[%s1136 + $0x24] sm:$0xff] %vm648, %v1171
      %1181 = vst.msk [vmem:[%s1136 + $0x2c] sm:$0xff] %vm648, %v1173
      %1182 = vst.msk [vmem:[%s1136 + $0x34] sm:$0xff] %vm648, %v1175
      %1183 = vrot.lane.b32.xlu0 %v635, 88
      %v1184 = vpop.permute.xlu0 %1183
      %1185 = vrot.lane.b32.xlu0 %v640, 88
      %v1186 = vpop.permute.xlu0 %1185
      %1187 = vrot.lane.b32.xlu0 %v645, 88
      %v1188 = vpop.permute.xlu0 %1187
      %1192 = vst.msk [vmem:[%s1154 + $0x1c] sm:$0xfc] %vm1137, %v1035
      %1193 = vst.msk [vmem:[%s1154 + $0x24] sm:$0xff] %vm648, %v1184
      %1194 = vst.msk [vmem:[%s1154 + $0x2c] sm:$0xff] %vm648, %v1186
      %1195 = vst.msk [vmem:[%s1154 + $0x34] sm:$0xff] %vm648, %v1188
      %1196 = vrot.lane.b32.xlu0 %v483, 112
      %v1197 = vpop.permute.xlu0 %1196
      %1198 = vrot.lane.b32.xlu0 %v484, 112
      %v1199 = vpop.permute.xlu0 %1198
      %1202 = vst.msk [vmem:[%s1131 + $0x19] sm:$0xe0] %vm1132, %v1048
      %1203 = vst.msk [vmem:[%s1131 + $0x21] sm:$0xff] %vm648, %v1197
      %1204 = vst.msk [vmem:[%s1131 + $0x29] sm:$0xf] %vm810, %v1199
      %1205 = vrot.lane.b32.xlu0 %v635, 112
      %v1206 = vpop.permute.xlu0 %1205
      %1207 = vrot.lane.b32.xlu0 %v640, 112
      %v1208 = vpop.permute.xlu0 %1207
      %1209 = vrot.lane.b32.xlu0 %v645, 112
      %v1210 = vpop.permute.xlu0 %1209
      %1214 = vst.msk [vmem:[%s1136 + $0x3a] sm:$0xfc] %vm1137, %v1061
      %1215 = vst.msk [vmem:[%s1136 + $0x42] sm:$0xff] %vm648, %v1206
      %1216 = vst.msk [vmem:[%s1136 + $0x4a] sm:$0xff] %vm648, %v1208
      %1217 = vst.msk [vmem:[%s1136 + $0x52] sm:$0xff] %vm648, %v1210
      %1218 = vrot.lane.b32.xlu0 %v635, 80
      %v1219 = vpop.permute.xlu0 %1218
      %1220 = vrot.lane.b32.xlu0 %v640, 80
      %v1221 = vpop.permute.xlu0 %1220
      %1222 = vrot.lane.b32.xlu0 %v645, 80
      %v1223 = vpop.permute.xlu0 %1222
      %1227 = vst.msk [vmem:[%s1154 + $0x3a] sm:$0xfc] %vm1137, %v1078
      %1228 = vst.msk [vmem:[%s1154 + $0x42] sm:$0xff] %vm648, %v1219
      %1229 = vst.msk [vmem:[%s1154 + $0x4a] sm:$0xff] %vm648, %v1221
      %1230 = vst.msk [vmem:[%s1154 + $0x52] sm:$0xff] %vm648, %v1223
      %1231 = vrot.lane.b32.xlu0 %v483, 104
      %v1232 = vpop.permute.xlu0 %1231
      %1233 = vrot.lane.b32.xlu0 %v484, 104
      %v1234 = vpop.permute.xlu0 %1233
      %1237 = vst.msk [vmem:[%s1131 + $0x28] sm:$0xe0] %vm1132, %v1091
      %1238 = vst.msk [vmem:[%s1131 + $0x30] sm:$0xff] %vm648, %v1232
      %1239 = vst.msk [vmem:[%s1131 + $0x38] sm:$0xf] %vm810, %v1234
      %1240 = vrot.lane.b32.xlu0 %v635, 104
      %v1241 = vpop.permute.xlu0 %1240
      %1242 = vrot.lane.b32.xlu0 %v640, 104
      %v1243 = vpop.permute.xlu0 %1242
      %1244 = vrot.lane.b32.xlu0 %v645, 104
      %v1245 = vpop.permute.xlu0 %1244
      %1249 = vst.msk [vmem:[%s1136 + $0x58] sm:$0xfc] %vm1137, %v1104
      %1250 = vst.msk [vmem:[%s1136 + $0x60] sm:$0xff] %vm648, %v1241
      %1251 = vst.msk [vmem:[%s1136 + $0x68] sm:$0xff] %vm648, %v1243
      %1252 = vst.msk [vmem:[%s1136 + $0x70] sm:$0xff] %vm648, %v1245
      %1253 = vrot.lane.b32.xlu0 %v635, 72
      %v1254 = vpop.permute.xlu0 %1253
      %1255 = vrot.lane.b32.xlu0 %v640, 72
      %v1256 = vpop.permute.xlu0 %1255
      %1257 = vrot.lane.b32.xlu0 %v645, 72
      %v1258 = vpop.permute.xlu0 %1257
      %1262 = vst.msk [vmem:[%s1154 + $0x58] sm:$0xfc] %vm1137, %v1121
      %1263 = vst.msk [vmem:[%s1154 + $0x60] sm:$0xff] %vm648, %v1254
      %1264 = vst.msk [vmem:[%s1154 + $0x68] sm:$0xff] %vm648, %v1256
      %1265 = vst.msk [vmem:[%s1154 + $0x70] sm:$0xff] %vm648, %v1258
      %v1266 = vld [vmem:[#allocation2] sm:$0xff]
      %v1267 = vld [vmem:[#allocation2 + $0x8] sm:$0xff]
      %v1268 = vld [vmem:[#allocation2 + $0x10] sm:$0xff]
      %v1269 = vld [vmem:[#allocation2 + $0x18] sm:$0xff]
      %v1270 = vld [vmem:[#allocation2 + $0x20] sm:$0xff]
      %v1271 = vld [vmem:[#allocation2 + $0x28] sm:$0xff]
      %v1272 = vld [vmem:[#allocation2 + $0x30] sm:$0xff]
      %v1273 = vld [vmem:[#allocation2 + $0x38] sm:$0xf]
      %v1274 = vld [vmem:[#allocation2 + $0x40] sm:$0xff]
      %v1275 = vld [vmem:[#allocation2 + $0x48] sm:$0xff]
      %v1276 = vld [vmem:[#allocation2 + $0x50] sm:$0xff]
      %v1277 = vld [vmem:[#allocation2 + $0x58] sm:$0xff]
      %v1278 = vld [vmem:[#allocation2 + $0x60] sm:$0xff]
      %v1279 = vld [vmem:[#allocation2 + $0x68] sm:$0xff]
      %v1280 = vld [vmem:[#allocation2 + $0x70] sm:$0xff]
      %v1281 = vld [vmem:[#allocation2 + $0x78] sm:$0xf]
      %v1282 = vld [vmem:[#allocation2 + $0x80] sm:$0xff]
      %v1283 = vld [vmem:[#allocation2 + $0x88] sm:$0xff]
      %v1284 = vld [vmem:[#allocation2 + $0x90] sm:$0xff]
      %v1285 = vld [vmem:[#allocation2 + $0x98] sm:$0xff]
      %v1286 = vld [vmem:[#allocation2 + $0xa0] sm:$0xff]
      %v1287 = vld [vmem:[#allocation2 + $0xa8] sm:$0xff]
      %v1288 = vld [vmem:[#allocation2 + $0xb0] sm:$0xff]
      %v1289 = vld [vmem:[#allocation2 + $0xb8] sm:$0xf]
      %v1290 = vld [vmem:[#allocation2 + $0xc0] sm:$0xff]
      %v1291 = vld [vmem:[#allocation2 + $0xc8] sm:$0xff]
      %v1292 = vld [vmem:[#allocation2 + $0xd0] sm:$0xff]
      %v1293 = vld [vmem:[#allocation2 + $0xd8] sm:$0xff]
      %v1294 = vld [vmem:[#allocation2 + $0xe0] sm:$0xff]
      %v1295 = vld [vmem:[#allocation2 + $0xe8] sm:$0xff]
      %v1296 = vld [vmem:[#allocation2 + $0xf0] sm:$0xff]
      %v1297 = vld [vmem:[#allocation2 + $0xf8] sm:$0xf]
      %v1298 = vld [vmem:[#allocation3] sm:$0xff]
      %v1299 = vld [vmem:[#allocation3 + $0x8] sm:$0xff]
      %v1300 = vld [vmem:[#allocation3 + $0x10] sm:$0xff]
      %v1301 = vld [vmem:[#allocation3 + $0x18] sm:$0xff]
      %v1302 = vld [vmem:[#allocation3 + $0x20] sm:$0xff]
      %v1303 = vld [vmem:[#allocation3 + $0x28] sm:$0xff]
      %v1304 = vld [vmem:[#allocation3 + $0x30] sm:$0xff]
      %v1305 = vld [vmem:[#allocation3 + $0x38] sm:$0xff]
      %v1306 = vld [vmem:[#allocation3 + $0x40] sm:$0xff]
      %v1307 = vld [vmem:[#allocation3 + $0x48] sm:$0xff]
      %v1308 = vld [vmem:[#allocation3 + $0x50] sm:$0xff]
      %v1309 = vld [vmem:[#allocation3 + $0x58] sm:$0xff]
      %v1310 = vld [vmem:[#allocation3 + $0x60] sm:$0xff]
      %v1311 = vld [vmem:[#allocation3 + $0x68] sm:$0xff]
      %v1312 = vld [vmem:[#allocation3 + $0x70] sm:$0xff]
      %v1313 = vld [vmem:[#allocation3 + $0x78] sm:$0xff]
      %v1314 = vld [vmem:[#allocation3 + $0x80] sm:$0xff]
      %v1315 = vld [vmem:[#allocation3 + $0x88] sm:$0xff]
      %v1316 = vld [vmem:[#allocation3 + $0x90] sm:$0xff]
      %v1317 = vld [vmem:[#allocation3 + $0x98] sm:$0xff]
      %v1318 = vld [vmem:[#allocation3 + $0xa0] sm:$0xff]
      %v1319 = vld [vmem:[#allocation3 + $0xa8] sm:$0xff]
      %v1320 = vld [vmem:[#allocation3 + $0xb0] sm:$0xff]
      %v1321 = vld [vmem:[#allocation3 + $0xb8] sm:$0xff]
      %v1322 = vld [vmem:[#allocation3 + $0xc0] sm:$0xff]
      %v1323 = vld [vmem:[#allocation3 + $0xc8] sm:$0xff]
      %v1324 = vld [vmem:[#allocation3 + $0xd0] sm:$0xff]
      %v1325 = vld [vmem:[#allocation3 + $0xd8] sm:$0xff]
      %v1326 = vld [vmem:[#allocation3 + $0xe0] sm:$0xff]
      %v1327 = vld [vmem:[#allocation3 + $0xe8] sm:$0xff]
      %v1328 = vld [vmem:[#allocation3 + $0xf0] sm:$0xff]
      %v1329 = vld [vmem:[#allocation3 + $0xf8] sm:$0xff]
      %v1330 = vld [vmem:[#allocation3 + $0x100] sm:$0xff]
      %v1331 = vld [vmem:[#allocation3 + $0x108] sm:$0xff]
      %v1332 = vld [vmem:[#allocation3 + $0x110] sm:$0xff]
      %v1333 = vld [vmem:[#allocation3 + $0x118] sm:$0xff]
      %v1334 = vld [vmem:[#allocation3 + $0x120] sm:$0xff]
      %v1335 = vld [vmem:[#allocation3 + $0x128] sm:$0xff]
      %v1336 = vld [vmem:[#allocation3 + $0x130] sm:$0xff]
      %v1337 = vld [vmem:[#allocation3 + $0x138] sm:$0xff]
      %v1338 = vld [vmem:[#allocation3 + $0x140] sm:$0xff]
      %v1339 = vld [vmem:[#allocation3 + $0x148] sm:$0xff]
      %v1340 = vld [vmem:[#allocation3 + $0x150] sm:$0xff]
      %v1341 = vld [vmem:[#allocation3 + $0x158] sm:$0xff]
      %v1342 = vld [vmem:[#allocation3 + $0x160] sm:$0xff]
      %v1343 = vld [vmem:[#allocation3 + $0x168] sm:$0xff]
      %v1344 = vld [vmem:[#allocation3 + $0x170] sm:$0xff]
      %v1345 = vld [vmem:[#allocation3 + $0x178] sm:$0xff]
      %v1346 = vld [vmem:[#allocation3 + $0x180] sm:$0xff]
      %v1347 = vld [vmem:[#allocation3 + $0x188] sm:$0xff]
      %v1348 = vld [vmem:[#allocation3 + $0x190] sm:$0xff]
      %v1349 = vld [vmem:[#allocation3 + $0x198] sm:$0xff]
      %v1350 = vld [vmem:[#allocation3 + $0x1a0] sm:$0xff]
      %v1351 = vld [vmem:[#allocation3 + $0x1a8] sm:$0xff]
      %v1352 = vld [vmem:[#allocation3 + $0x1b0] sm:$0xff]
      %v1353 = vld [vmem:[#allocation3 + $0x1b8] sm:$0xff]
      %v1354 = vld [vmem:[#allocation3 + $0x1c0] sm:$0xff]
      %v1355 = vld [vmem:[#allocation3 + $0x1c8] sm:$0xff]
      %v1356 = vld [vmem:[#allocation3 + $0x1d0] sm:$0xff]
      %v1357 = vld [vmem:[#allocation3 + $0x1d8] sm:$0xff]
      %v1358 = vld [vmem:[#allocation4] sm:$0xff]
      %v1359 = vld [vmem:[#allocation4 + $0x8] sm:$0xff]
      %v1360 = vld [vmem:[#allocation4 + $0x10] sm:$0xff]
      %v1361 = vld [vmem:[#allocation4 + $0x18] sm:$0xff]
      %v1362 = vld [vmem:[#allocation4 + $0x20] sm:$0xff]
      %v1363 = vld [vmem:[#allocation4 + $0x28] sm:$0xff]
      %v1364 = vld [vmem:[#allocation4 + $0x30] sm:$0xff]
      %v1365 = vld [vmem:[#allocation4 + $0x38] sm:$0xff]
      %v1366 = vld [vmem:[#allocation4 + $0x40] sm:$0xff]
      %v1367 = vld [vmem:[#allocation4 + $0x48] sm:$0xff]
      %v1368 = vld [vmem:[#allocation4 + $0x50] sm:$0xff]
      %v1369 = vld [vmem:[#allocation4 + $0x58] sm:$0xff]
      %v1370 = vld [vmem:[#allocation4 + $0x60] sm:$0xff]
      %v1371 = vld [vmem:[#allocation4 + $0x68] sm:$0xff]
      %v1372 = vld [vmem:[#allocation4 + $0x70] sm:$0xff]
      %v1373 = vld [vmem:[#allocation4 + $0x78] sm:$0xff]
      %v1374 = vld [vmem:[#allocation4 + $0x80] sm:$0xff]
      %v1375 = vld [vmem:[#allocation4 + $0x88] sm:$0xff]
      %v1376 = vld [vmem:[#allocation4 + $0x90] sm:$0xff]
      %v1377 = vld [vmem:[#allocation4 + $0x98] sm:$0xff]
      %v1378 = vld [vmem:[#allocation4 + $0xa0] sm:$0xff]
      %v1379 = vld [vmem:[#allocation4 + $0xa8] sm:$0xff]
      %v1380 = vld [vmem:[#allocation4 + $0xb0] sm:$0xff]
      %v1381 = vld [vmem:[#allocation4 + $0xb8] sm:$0xff]
      %v1382 = vld [vmem:[#allocation4 + $0xc0] sm:$0xff]
      %v1383 = vld [vmem:[#allocation4 + $0xc8] sm:$0xff]
      %v1384 = vld [vmem:[#allocation4 + $0xd0] sm:$0xff]
      %v1385 = vld [vmem:[#allocation4 + $0xd8] sm:$0xff]
      %v1386 = vld [vmem:[#allocation4 + $0xe0] sm:$0xff]
      %v1387 = vld [vmem:[#allocation4 + $0xe8] sm:$0xff]
      %v1388 = vld [vmem:[#allocation4 + $0xf0] sm:$0xff]
      %v1389 = vld [vmem:[#allocation4 + $0xf8] sm:$0xff]
      %v1390 = vld [vmem:[#allocation4 + $0x100] sm:$0xff]
      %v1391 = vld [vmem:[#allocation4 + $0x108] sm:$0xff]
      %v1392 = vld [vmem:[#allocation4 + $0x110] sm:$0xff]
      %v1393 = vld [vmem:[#allocation4 + $0x118] sm:$0xff]
      %v1394 = vld [vmem:[#allocation4 + $0x120] sm:$0xff]
      %v1395 = vld [vmem:[#allocation4 + $0x128] sm:$0xff]
      %v1396 = vld [vmem:[#allocation4 + $0x130] sm:$0xff]
      %v1397 = vld [vmem:[#allocation4 + $0x138] sm:$0xff]
      %v1398 = vld [vmem:[#allocation4 + $0x140] sm:$0xff]
      %v1399 = vld [vmem:[#allocation4 + $0x148] sm:$0xff]
      %v1400 = vld [vmem:[#allocation4 + $0x150] sm:$0xff]
      %v1401 = vld [vmem:[#allocation4 + $0x158] sm:$0xff]
      %v1402 = vld [vmem:[#allocation4 + $0x160] sm:$0xff]
      %v1403 = vld [vmem:[#allocation4 + $0x168] sm:$0xff]
      %v1404 = vld [vmem:[#allocation4 + $0x170] sm:$0xff]
      %v1405 = vld [vmem:[#allocation4 + $0x178] sm:$0xff]
      %v1406 = vld [vmem:[#allocation4 + $0x180] sm:$0xff]
      %v1407 = vld [vmem:[#allocation4 + $0x188] sm:$0xff]
      %v1408 = vld [vmem:[#allocation4 + $0x190] sm:$0xff]
      %v1409 = vld [vmem:[#allocation4 + $0x198] sm:$0xff]
      %v1410 = vld [vmem:[#allocation4 + $0x1a0] sm:$0xff]
      %v1411 = vld [vmem:[#allocation4 + $0x1a8] sm:$0xff]
      %v1412 = vld [vmem:[#allocation4 + $0x1b0] sm:$0xff]
      %v1413 = vld [vmem:[#allocation4 + $0x1b8] sm:$0xff]
      %v1414 = vld [vmem:[#allocation4 + $0x1c0] sm:$0xff]
      %v1415 = vld [vmem:[#allocation4 + $0x1c8] sm:$0xff]
      %v1416 = vld [vmem:[#allocation4 + $0x1d0] sm:$0xff]
      %v1417 = vld [vmem:[#allocation4 + $0x1d8] sm:$0xff]
      %v1419 = vsel %vm648, %v1266, 0
      %v1422 = vsel %vm648, %v1267, 0
      %v1425 = vsel %vm648, %v1268, 0
      %v1428 = vsel %vm648, %v1269, 0
      %v1431 = vsel %vm648, %v1270, 0
      %v1434 = vsel %vm648, %v1271, 0
      %v1437 = vsel %vm648, %v1272, 0
      %v1440 = vsel %vm648, %v1273, 0
      %v1443 = vsel %vm648, %v1298, 0
      %v1446 = vsel %vm648, %v1299, 0
      %v1449 = vsel %vm648, %v1300, 0
      %v1452 = vsel %vm648, %v1301, 0
      %v1455 = vsel %vm648, %v1302, 0
      %v1458 = vsel %vm648, %v1303, 0
      %v1461 = vsel %vm648, %v1304, 0
      %v1464 = vsel %vm648, %v1305, 0
      %v1467 = vsel %vm648, %v1306, 0
      %v1470 = vsel %vm648, %v1307, 0
      %v1473 = vsel %vm648, %v1308, 0
      %v1476 = vsel %vm648, %v1309, 0
      %v1479 = vsel %vm648, %v1310, 0
      %v1482 = vsel %vm648, %v1311, 0
      %v1485 = vsel %vm648, %v1312, 0
      %1487 = vmatprep.subr.mxu0 0.0
      %1488 = vmatpush1.xpose.msra.mxu0 %v1443
      %1489 = vmatprep.subr.mxu0 0.0
      %1490 = vmatpush1.xpose.msra.mxu0 %v1446
      %1491 = vmatprep.subr.mxu0 0.0
      %1492 = vmatpush1.xpose.msra.mxu0 %v1449
      %1493 = vmatprep.subr.mxu0 0.0
      %1494 = vmatpush1.xpose.msra.mxu0 %v1452
      %1495 = vmatprep.subr.mxu0 0.0
      %1496 = vmatpush1.xpose.msra.mxu0 %v1455
      %1497 = vmatprep.subr.mxu0 0.0
      %1498 = vmatpush1.xpose.msra.mxu0 %v1458
      %1499 = vmatprep.subr.mxu0 0.0
      %1500 = vmatpush1.xpose.msra.mxu0 %v1461
      %1501 = vmatprep.subr.mxu0 0.0
      %1502 = vmatpush1.xpose.msra.mxu0 %v1464
      %1503 = vmatprep.subr.mxu0 0.0
      %1504 = vmatpush1.xpose.msra.mxu0 %v1467
      %1505 = vmatprep.subr.mxu0 0.0
      %1506 = vmatpush1.xpose.msra.mxu0 %v1470
      %1507 = vmatprep.subr.mxu0 0.0
      %1508 = vmatpush1.xpose.msra.mxu0 %v1473
      %1509 = vmatprep.subr.mxu0 0.0
      %1510 = vmatpush1.xpose.msra.mxu0 %v1476
      %1511 = vmatprep.subr.mxu0 0.0
      %1512 = vmatpush1.xpose.msra.mxu0 %v1479
      %1513 = vmatprep.subr.mxu0 0.0
      %1514 = vmatpush1.xpose.msra.mxu0 %v1482
      %1515 = vmatprep.subr.mxu0 0.0
      %1516 = vmatpush1.xpose.msra.mxu0 %v1485
      %1517 = vmatprep.subr.mxu0 0.0
      %1518 = vmatpush1.xpose.msra.mxu0 0.0
      %1519 = vmatprep.subr.mxu0 0.0
      %1520 = vmatpush1.xpose.msra.mxu0 0.0
      %1521 = vmatprep.subr.mxu0 0.0
      %1522 = vmatpush1.xpose.msra.mxu0 0.0
      %1523 = vmatprep.subr.mxu0 0.0
      %1524 = vmatpush1.xpose.msra.mxu0 0.0
      %1525 = vmatprep.subr.mxu0 0.0
      %1526 = vmatpush1.xpose.msra.mxu0 0.0
      %1527 = vmatprep.subr.mxu0 0.0
      %1528 = vmatpush1.xpose.msra.mxu0 0.0
      %1529 = vmatprep.subr.mxu0 0.0
      %1530 = vmatpush1.xpose.msra.mxu0 0.0
      %1531 = vmatprep.subr.mxu0 0.0
      %1532 = vmatpush1.xpose.msra.mxu0 0.0
      %1533 = vmatprep.subr.mxu0 0.0
      %1534 = vmatpush1.xpose.msra.mxu0 0.0
      %1535 = vmatprep.subr.mxu0 0.0
      %1536 = vmatpush1.xpose.msra.mxu0 0.0
      %1537 = vmatprep.subr.mxu0 0.0
      %1538 = vmatpush1.xpose.msra.mxu0 0.0
      %1539 = vmatprep.subr.mxu0 0.0
      %1540 = vmatpush1.xpose.msra.mxu0 0.0
      %1541 = vmatprep.subr.mxu0 0.0
      %1542 = vmatpush1.xpose.msra.mxu0 0.0
      %1543 = vmatprep.subr.mxu0 0.0
      %1544 = vmatpush1.xpose.msra.mxu0 0.0
      %1545 = vmatprep.subr.mxu0 0.0
      %1546 = vmatpush1.xpose.msra.mxu0 0.0
      %1547 = vmatprep.subr.mxu0 0.0
      %1548 = vmatpush1.xpose.msra.mxu0 0.0
      %1549 = vmatprep.subr.mxu0 0.0
      %1550 = vmatpush1.xpose.msra.mxu0 0.0
      %1551 = vmatprep.mubr.f32.mxu0 0.0
      %1552 = vmatmul.mubr.f32.gmra.mrb[0].mxu0 %v1419
      %v1553 = vpop.f32.mrb[0].mxu0
      %v1554 = vadd.f32 0.0, %v1553
      %v1555 = vpop.f32.mrb[0].mxu0
      %1556 = vmatprep.mubr.f32.mxu0 0.0
      %1557 = vmatmul.mubr.f32.gmra.mrb[0].mxu0 %v1422
      %v1558 = vpop.f32.mrb[0].mxu0
      %v1559 = vadd.f32 0.0, %v1558
      %v1560 = vpop.f32.mrb[0].mxu0
      %1561 = vmatprep.mubr.f32.mxu0 0.0
      %1562 = vmatmul.mubr.f32.gmra.mrb[0].mxu0 %v1425
      %v1563 = vpop.f32.mrb[0].mxu0
      %v1564 = vadd.f32 0.0, %v1563
      %v1565 = vpop.f32.mrb[0].mxu0
      %1566 = vmatprep.mubr.f32.mxu0 0.0
      %1567 = vmatmul.mubr.f32.gmra.mrb[0].mxu0 %v1428
      %v1568 = vpop.f32.mrb[0].mxu0
      %v1569 = vadd.f32 0.0, %v1568
      %v1570 = vpop.f32.mrb[0].mxu0
      %1571 = vmatprep.mubr.f32.mxu0 0.0
      %1572 = vmatmul.mubr.f32.gmra.mrb[0].mxu0 %v1431
      %v1573 = vpop.f32.mrb[0].mxu0
      %v1574 = vadd.f32 0.0, %v1573
      %v1575 = vpop.f32.mrb[0].mxu0
      %1576 = vmatprep.mubr.f32.mxu0 0.0
      %1577 = vmatmul.mubr.f32.gmra.mrb[0].mxu0 %v1434
      %v1578 = vpop.f32.mrb[0].mxu0
      %v1579 = vadd.f32 0.0, %v1578
      %v1580 = vpop.f32.mrb[0].mxu0
      %1581 = vmatprep.mubr.f32.mxu0 0.0
      %1582 = vmatmul.mubr.f32.gmra.mrb[0].mxu0 %v1437
      %v1583 = vpop.f32.mrb[0].mxu0
      %v1584 = vadd.f32 0.0, %v1583
      %v1585 = vpop.f32.mrb[0].mxu0
      %1586 = vmatprep.mubr.f32.mxu0 0.0
      %1587 = vmatmul.mubr.f32.gmra.mrb[0].mxu0 %v1440
      %v1588 = vpop.f32.mrb[0].mxu0
      %v1589 = vadd.f32 0.0, %v1588
      %v1590 = vpop.f32.mrb[0].mxu0
      %1591 = vdwg.mxu0
      %v1593 = vsel %vm648, %v1274, 0
      %v1596 = vsel %vm648, %v1275, 0
      %v1599 = vsel %vm648, %v1276, 0
      %v1602 = vsel %vm648, %v1277, 0
      %v1605 = vsel %vm648, %v1278, 0
      %v1608 = vsel %vm648, %v1279, 0
      %v1611 = vsel %vm648, %v1280, 0
      %v1614 = vsel %vm648, %v1281, 0
      %v1617 = vsel %vm648, %v1313, 0
      %v1620 = vsel %vm648, %v1314, 0
      %v1623 = vsel %vm648, %v1315, 0
      %v1626 = vsel %vm648, %v1316, 0
      %v1629 = vsel %vm648, %v1317, 0
      %v1632 = vsel %vm648, %v1318, 0
      %v1635 = vsel %vm648, %v1319, 0
      %v1638 = vsel %vm648, %v1320, 0
      %v1641 = vsel %vm648, %v1321, 0
      %v1644 = vsel %vm648, %v1322, 0
      %v1647 = vsel %vm648, %v1323, 0
      %v1650 = vsel %vm648, %v1324, 0
      %v1653 = vsel %vm648, %v1325, 0
      %v1656 = vsel %vm648, %v1326, 0
      %v1659 = vsel %vm648, %v1327, 0
      %1661 = vmatprep.subr.mxu0 0.0
      %1662 = vmatpush1.xpose.msra.mxu0 %v1617
      %1663 = vmatprep.subr.mxu0 0.0
      %1664 = vmatpush1.xpose.msra.mxu0 %v1620
      %1665 = vmatprep.subr.mxu0 0.0
      %1666 = vmatpush1.xpose.msra.mxu0 %v1623
      %1667 = vmatprep.subr.mxu0 0.0
      %1668 = vmatpush1.xpose.msra.mxu0 %v1626
      %1669 = vmatprep.subr.mxu0 0.0
      %1670 = vmatpush1.xpose.msra.mxu0 %v1629
      %1671 = vmatprep.subr.mxu0 0.0
      %1672 = vmatpush1.xpose.msra.mxu0 %v1632
      %1673 = vmatprep.subr.mxu0 0.0
      %1674 = vmatpush1.xpose.msra.mxu0 %v1635
      %1675 = vmatprep.subr.mxu0 0.0
      %1676 = vmatpush1.xpose.msra.mxu0 %v1638
      %1677 = vmatprep.subr.mxu0 0.0
      %1678 = vmatpush1.xpose.msra.mxu0 %v1641
      %1679 = vmatprep.subr.mxu0 0.0
      %1680 = vmatpush1.xpose.msra.mxu0 %v1644
      %1681 = vmatprep.subr.mxu0 0.0
      %1682 = vmatpush1.xpose.msra.mxu0 %v1647
      %1683 = vmatprep.subr.mxu0 0.0
      %1684 = vmatpush1.xpose.msra.mxu0 %v1650
      %1685 = vmatprep.subr.mxu0 0.0
      %1686 = vmatpush1.xpose.msra.mxu0 %v1653
      %1687 = vmatprep.subr.mxu0 0.0
      %1688 = vmatpush1.xpose.msra.mxu0 %v1656
      %1689 = vmatprep.subr.mxu0 0.0
      %1690 = vmatpush1.xpose.msra.mxu0 %v1659
      %1691 = vmatprep.subr.mxu0 0.0
      %1692 = vmatpush1.xpose.msra.mxu0 0.0
      %1693 = vmatprep.subr.mxu0 0.0
      %1694 = vmatpush1.xpose.msra.mxu0 0.0
      %1695 = vmatprep.subr.mxu0 0.0
      %1696 = vmatpush1.xpose.msra.mxu0 0.0
      %1697 = vmatprep.subr.mxu0 0.0
      %1698 = vmatpush1.xpose.msra.mxu0 0.0
      %1699 = vmatprep.subr.mxu0 0.0
      %1700 = vmatpush1.xpose.msra.mxu0 0.0
      %1701 = vmatprep.subr.mxu0 0.0
      %1702 = vmatpush1.xpose.msra.mxu0 0.0
      %1703 = vmatprep.subr.mxu0 0.0
      %1704 = vmatpush1.xpose.msra.mxu0 0.0
      %1705 = vmatprep.subr.mxu0 0.0
      %1706 = vmatpush1.xpose.msra.mxu0 0.0
      %1707 = vmatprep.subr.mxu0 0.0
      %1708 = vmatpush1.xpose.msra.mxu0 0.0
      %1709 = vmatprep.subr.mxu0 0.0
      %1710 = vmatpush1.xpose.msra.mxu0 0.0
      %1711 = vmatprep.subr.mxu0 0.0
      %1712 = vmatpush1.xpose.msra.mxu0 0.0
      %1713 = vmatprep.subr.mxu0 0.0
      %1714 = vmatpush1.xpose.msra.mxu0 0.0
      %1715 = vmatprep.subr.mxu0 0.0
      %1716 = vmatpush1.xpose.msra.mxu0 0.0
      %1717 = vmatprep.subr.mxu0 0.0
      %1718 = vmatpush1.xpose.msra.mxu0 0.0
      %1719 = vmatprep.subr.mxu0 0.0
      %1720 = vmatpush1.xpose.msra.mxu0 0.0
      %1721 = vmatprep.subr.mxu0 0.0
      %1722 = vmatpush1.xpose.msra.mxu0 0.0
      %1723 = vmatprep.subr.mxu0 0.0
      %1724 = vmatpush1.xpose.msra.mxu0 0.0
      %1725 = vmatprep.mubr.f32.mxu0 0.0
      %1726 = vmatmul.mubr.f32.gmra.mrb[0].mxu0 %v1593
      %v1727 = vpop.f32.mrb[0].mxu0
      %v1728 = vadd.f32 0.0, %v1727
      %v1729 = vpop.f32.mrb[0].mxu0
      %1730 = vmatprep.mubr.f32.mxu0 0.0
      %1731 = vmatmul.mubr.f32.gmra.mrb[0].mxu0 %v1596
      %v1732 = vpop.f32.mrb[0].mxu0
      %v1733 = vadd.f32 0.0, %v1732
      %v1734 = vpop.f32.mrb[0].mxu0
      %1735 = vmatprep.mubr.f32.mxu0 0.0
      %1736 = vmatmul.mubr.f32.gmra.mrb[0].mxu0 %v1599
      %v1737 = vpop.f32.mrb[0].mxu0
      %v1738 = vadd.f32 0.0, %v1737
      %v1739 = vpop.f32.mrb[0].mxu0
      %1740 = vmatprep.mubr.f32.mxu0 0.0
      %1741 = vmatmul.mubr.f32.gmra.mrb[0].mxu0 %v1602
      %v1742 = vpop.f32.mrb[0].mxu0
      %v1743 = vadd.f32 0.0, %v1742
      %v1744 = vpop.f32.mrb[0].mxu0
      %1745 = vmatprep.mubr.f32.mxu0 0.0
      %1746 = vmatmul.mubr.f32.gmra.mrb[0].mxu0 %v1605
      %v1747 = vpop.f32.mrb[0].mxu0
      %v1748 = vadd.f32 0.0, %v1747
      %v1749 = vpop.f32.mrb[0].mxu0
      %1750 = vmatprep.mubr.f32.mxu0 0.0
      %1751 = vmatmul.mubr.f32.gmra.mrb[0].mxu0 %v1608
      %v1752 = vpop.f32.mrb[0].mxu0
      %v1753 = vadd.f32 0.0, %v1752
      %v1754 = vpop.f32.mrb[0].mxu0
      %1755 = vmatprep.mubr.f32.mxu0 0.0
      %1756 = vmatmul.mubr.f32.gmra.mrb[0].mxu0 %v1611
      %v1757 = vpop.f32.mrb[0].mxu0
      %v1758 = vadd.f32 0.0, %v1757
      %v1759 = vpop.f32.mrb[0].mxu0
      %1760 = vmatprep.mubr.f32.mxu0 0.0
      %1761 = vmatmul.mubr.f32.gmra.mrb[0].mxu0 %v1614
      %v1762 = vpop.f32.mrb[0].mxu0
      %v1763 = vadd.f32 0.0, %v1762
      %v1764 = vpop.f32.mrb[0].mxu0
      %1765 = vdwg.mxu0
      %v1767 = vsel %vm648, %v1282, 0
      %v1770 = vsel %vm648, %v1283, 0
      %v1773 = vsel %vm648, %v1284, 0
      %v1776 = vsel %vm648, %v1285, 0
      %v1779 = vsel %vm648, %v1286, 0
      %v1782 = vsel %vm648, %v1287, 0
      %v1785 = vsel %vm648, %v1288, 0
      %v1788 = vsel %vm648, %v1289, 0
      %v1791 = vsel %vm648, %v1328, 0
      %v1794 = vsel %vm648, %v1329, 0
      %v1797 = vsel %vm648, %v1330, 0
      %v1800 = vsel %vm648, %v1331, 0
      %v1803 = vsel %vm648, %v1332, 0
      %v1806 = vsel %vm648, %v1333, 0
      %v1809 = vsel %vm648, %v1334, 0
      %v1812 = vsel %vm648, %v1335, 0
      %v1815 = vsel %vm648, %v1336, 0
      %v1818 = vsel %vm648, %v1337, 0
      %v1821 = vsel %vm648, %v1338, 0
      %v1824 = vsel %vm648, %v1339, 0
      %v1827 = vsel %vm648, %v1340, 0
      %v1830 = vsel %vm648, %v1341, 0
      %v1833 = vsel %vm648, %v1342, 0
      %1835 = vmatprep.subr.mxu0 0.0
      %1836 = vmatpush1.xpose.msra.mxu0 %v1791
      %1837 = vmatprep.subr.mxu0 0.0
      %1838 = vmatpush1.xpose.msra.mxu0 %v1794
      %1839 = vmatprep.subr.mxu0 0.0
      %1840 = vmatpush1.xpose.msra.mxu0 %v1797
      %1841 = vmatprep.subr.mxu0 0.0
      %1842 = vmatpush1.xpose.msra.mxu0 %v1800
      %1843 = vmatprep.subr.mxu0 0.0
      %1844 = vmatpush1.xpose.msra.mxu0 %v1803
      %1845 = vmatprep.subr.mxu0 0.0
      %1846 = vmatpush1.xpose.msra.mxu0 %v1806
      %1847 = vmatprep.subr.mxu0 0.0
      %1848 = vmatpush1.xpose.msra.mxu0 %v1809
      %1849 = vmatprep.subr.mxu0 0.0
      %1850 = vmatpush1.xpose.msra.mxu0 %v1812
      %1851 = vmatprep.subr.mxu0 0.0
      %1852 = vmatpush1.xpose.msra.mxu0 %v1815
      %1853 = vmatprep.subr.mxu0 0.0
      %1854 = vmatpush1.xpose.msra.mxu0 %v1818
      %1855 = vmatprep.subr.mxu0 0.0
      %1856 = vmatpush1.xpose.msra.mxu0 %v1821
      %1857 = vmatprep.subr.mxu0 0.0
      %1858 = vmatpush1.xpose.msra.mxu0 %v1824
      %1859 = vmatprep.subr.mxu0 0.0
      %1860 = vmatpush1.xpose.msra.mxu0 %v1827
      %1861 = vmatprep.subr.mxu0 0.0
      %1862 = vmatpush1.xpose.msra.mxu0 %v1830
      %1863 = vmatprep.subr.mxu0 0.0
      %1864 = vmatpush1.xpose.msra.mxu0 %v1833
      %1865 = vmatprep.subr.mxu0 0.0
      %1866 = vmatpush1.xpose.msra.mxu0 0.0
      %1867 = vmatprep.subr.mxu0 0.0
      %1868 = vmatpush1.xpose.msra.mxu0 0.0
      %1869 = vmatprep.subr.mxu0 0.0
      %1870 = vmatpush1.xpose.msra.mxu0 0.0
      %1871 = vmatprep.subr.mxu0 0.0
      %1872 = vmatpush1.xpose.msra.mxu0 0.0
      %1873 = vmatprep.subr.mxu0 0.0
      %1874 = vmatpush1.xpose.msra.mxu0 0.0
      %1875 = vmatprep.subr.mxu0 0.0
      %1876 = vmatpush1.xpose.msra.mxu0 0.0
      %1877 = vmatprep.subr.mxu0 0.0
      %1878 = vmatpush1.xpose.msra.mxu0 0.0
      %1879 = vmatprep.subr.mxu0 0.0
      %1880 = vmatpush1.xpose.msra.mxu0 0.0
      %1881 = vmatprep.subr.mxu0 0.0
      %1882 = vmatpush1.xpose.msra.mxu0 0.0
      %1883 = vmatprep.subr.mxu0 0.0
      %1884 = vmatpush1.xpose.msra.mxu0 0.0
      %1885 = vmatprep.subr.mxu0 0.0
      %1886 = vmatpush1.xpose.msra.mxu0 0.0
      %1887 = vmatprep.subr.mxu0 0.0
      %1888 = vmatpush1.xpose.msra.mxu0 0.0
      %1889 = vmatprep.subr.mxu0 0.0
      %1890 = vmatpush1.xpose.msra.mxu0 0.0
      %1891 = vmatprep.subr.mxu0 0.0
      %1892 = vmatpush1.xpose.msra.mxu0 0.0
      %1893 = vmatprep.subr.mxu0 0.0
      %1894 = vmatpush1.xpose.msra.mxu0 0.0
      %1895 = vmatprep.subr.mxu0 0.0
      %1896 = vmatpush1.xpose.msra.mxu0 0.0
      %1897 = vmatprep.subr.mxu0 0.0
      %1898 = vmatpush1.xpose.msra.mxu0 0.0
      %1899 = vmatprep.mubr.f32.mxu0 0.0
      %1900 = vmatmul.mubr.f32.gmra.mrb[0].mxu0 %v1767
      %v1901 = vpop.f32.mrb[0].mxu0
      %v1902 = vadd.f32 0.0, %v1901
      %v1903 = vpop.f32.mrb[0].mxu0
      %1904 = vmatprep.mubr.f32.mxu0 0.0
      %1905 = vmatmul.mubr.f32.gmra.mrb[0].mxu0 %v1770
      %v1906 = vpop.f32.mrb[0].mxu0
      %v1907 = vadd.f32 0.0, %v1906
      %v1908 = vpop.f32.mrb[0].mxu0
      %1909 = vmatprep.mubr.f32.mxu0 0.0
      %1910 = vmatmul.mubr.f32.gmra.mrb[0].mxu0 %v1773
      %v1911 = vpop.f32.mrb[0].mxu0
      %v1912 = vadd.f32 0.0, %v1911
      %v1913 = vpop.f32.mrb[0].mxu0
      %1914 = vmatprep.mubr.f32.mxu0 0.0
      %1915 = vmatmul.mubr.f32.gmra.mrb[0].mxu0 %v1776
      %v1916 = vpop.f32.mrb[0].mxu0
      %v1917 = vadd.f32 0.0, %v1916
      %v1918 = vpop.f32.mrb[0].mxu0
      %1919 = vmatprep.mubr.f32.mxu0 0.0
      %1920 = vmatmul.mubr.f32.gmra.mrb[0].mxu0 %v1779
      %v1921 = vpop.f32.mrb[0].mxu0
      %v1922 = vadd.f32 0.0, %v1921
      %v1923 = vpop.f32.mrb[0].mxu0
      %1924 = vmatprep.mubr.f32.mxu0 0.0
      %1925 = vmatmul.mubr.f32.gmra.mrb[0].mxu0 %v1782
      %v1926 = vpop.f32.mrb[0].mxu0
      %v1927 = vadd.f32 0.0, %v1926
      %v1928 = vpop.f32.mrb[0].mxu0
      %1929 = vmatprep.mubr.f32.mxu0 0.0
      %1930 = vmatmul.mubr.f32.gmra.mrb[0].mxu0 %v1785
      %v1931 = vpop.f32.mrb[0].mxu0
      %v1932 = vadd.f32 0.0, %v1931
      %v1933 = vpop.f32.mrb[0].mxu0
      %1934 = vmatprep.mubr.f32.mxu0 0.0
      %1935 = vmatmul.mubr.f32.gmra.mrb[0].mxu0 %v1788
      %v1936 = vpop.f32.mrb[0].mxu0
      %v1937 = vadd.f32 0.0, %v1936
      %v1938 = vpop.f32.mrb[0].mxu0
      %1939 = vdwg.mxu0
      %v1941 = vsel %vm648, %v1290, 0
      %v1944 = vsel %vm648, %v1291, 0
      %v1947 = vsel %vm648, %v1292, 0
      %v1950 = vsel %vm648, %v1293, 0
      %v1953 = vsel %vm648, %v1294, 0
      %v1956 = vsel %vm648, %v1295, 0
      %v1959 = vsel %vm648, %v1296, 0
      %v1962 = vsel %vm648, %v1297, 0
      %v1965 = vsel %vm648, %v1343, 0
      %v1968 = vsel %vm648, %v1344, 0
      %v1971 = vsel %vm648, %v1345, 0
      %v1974 = vsel %vm648, %v1346, 0
      %v1977 = vsel %vm648, %v1347, 0
      %v1980 = vsel %vm648, %v1348, 0
      %v1983 = vsel %vm648, %v1349, 0
      %v1986 = vsel %vm648, %v1350, 0
      %v1989 = vsel %vm648, %v1351, 0
      %v1992 = vsel %vm648, %v1352, 0
      %v1995 = vsel %vm648, %v1353, 0
      %v1998 = vsel %vm648, %v1354, 0
      %v2001 = vsel %vm648, %v1355, 0
      %v2004 = vsel %vm648, %v1356, 0
      %v2007 = vsel %vm648, %v1357, 0
      %2009 = vmatprep.subr.mxu0 0.0
      %2010 = vmatpush1.xpose.msra.mxu0 %v1965
      %2011 = vmatprep.subr.mxu0 0.0
      %2012 = vmatpush1.xpose.msra.mxu0 %v1968
      %2013 = vmatprep.subr.mxu0 0.0
      %2014 = vmatpush1.xpose.msra.mxu0 %v1971
      %2015 = vmatprep.subr.mxu0 0.0
      %2016 = vmatpush1.xpose.msra.mxu0 %v1974
      %2017 = vmatprep.subr.mxu0 0.0
      %2018 = vmatpush1.xpose.msra.mxu0 %v1977
      %2019 = vmatprep.subr.mxu0 0.0
      %2020 = vmatpush1.xpose.msra.mxu0 %v1980
      %2021 = vmatprep.subr.mxu0 0.0
      %2022 = vmatpush1.xpose.msra.mxu0 %v1983
      %2023 = vmatprep.subr.mxu0 0.0
      %2024 = vmatpush1.xpose.msra.mxu0 %v1986
      %2025 = vmatprep.subr.mxu0 0.0
      %2026 = vmatpush1.xpose.msra.mxu0 %v1989
      %2027 = vmatprep.subr.mxu0 0.0
      %2028 = vmatpush1.xpose.msra.mxu0 %v1992
      %2029 = vmatprep.subr.mxu0 0.0
      %2030 = vmatpush1.xpose.msra.mxu0 %v1995
      %2031 = vmatprep.subr.mxu0 0.0
      %2032 = vmatpush1.xpose.msra.mxu0 %v1998
      %2033 = vmatprep.subr.mxu0 0.0
      %2034 = vmatpush1.xpose.msra.mxu0 %v2001
      %2035 = vmatprep.subr.mxu0 0.0
      %2036 = vmatpush1.xpose.msra.mxu0 %v2004
      %2037 = vmatprep.subr.mxu0 0.0
      %2038 = vmatpush1.xpose.msra.mxu0 %v2007
      %2039 = vmatprep.subr.mxu0 0.0
      %2040 = vmatpush1.xpose.msra.mxu0 0.0
      %2041 = vmatprep.subr.mxu0 0.0
      %2042 = vmatpush1.xpose.msra.mxu0 0.0
      %2043 = vmatprep.subr.mxu0 0.0
      %2044 = vmatpush1.xpose.msra.mxu0 0.0
      %2045 = vmatprep.subr.mxu0 0.0
      %2046 = vmatpush1.xpose.msra.mxu0 0.0
      %2047 = vmatprep.subr.mxu0 0.0
      %2048 = vmatpush1.xpose.msra.mxu0 0.0
      %2049 = vmatprep.subr.mxu0 0.0
      %2050 = vmatpush1.xpose.msra.mxu0 0.0
      %2051 = vmatprep.subr.mxu0 0.0
      %2052 = vmatpush1.xpose.msra.mxu0 0.0
      %2053 = vmatprep.subr.mxu0 0.0
      %2054 = vmatpush1.xpose.msra.mxu0 0.0
      %2055 = vmatprep.subr.mxu0 0.0
      %2056 = vmatpush1.xpose.msra.mxu0 0.0
      %2057 = vmatprep.subr.mxu0 0.0
      %2058 = vmatpush1.xpose.msra.mxu0 0.0
      %2059 = vmatprep.subr.mxu0 0.0
      %2060 = vmatpush1.xpose.msra.mxu0 0.0
      %2061 = vmatprep.subr.mxu0 0.0
      %2062 = vmatpush1.xpose.msra.mxu0 0.0
      %2063 = vmatprep.subr.mxu0 0.0
      %2064 = vmatpush1.xpose.msra.mxu0 0.0
      %2065 = vmatprep.subr.mxu0 0.0
      %2066 = vmatpush1.xpose.msra.mxu0 0.0
      %2067 = vmatprep.subr.mxu0 0.0
      %2068 = vmatpush1.xpose.msra.mxu0 0.0
      %2069 = vmatprep.subr.mxu0 0.0
      %2070 = vmatpush1.xpose.msra.mxu0 0.0
      %2071 = vmatprep.subr.mxu0 0.0
      %2072 = vmatpush1.xpose.msra.mxu0 0.0
      %2073 = vmatprep.mubr.f32.mxu0 0.0
      %2074 = vmatmul.mubr.f32.gmra.mrb[0].mxu0 %v1941
      %v2075 = vpop.f32.mrb[0].mxu0
      %v2076 = vadd.f32 0.0, %v2075
      %v2077 = vpop.f32.mrb[0].mxu0
      %2078 = vmatprep.mubr.f32.mxu0 0.0
      %2079 = vmatmul.mubr.f32.gmra.mrb[0].mxu0 %v1944
      %v2080 = vpop.f32.mrb[0].mxu0
      %v2081 = vadd.f32 0.0, %v2080
      %v2082 = vpop.f32.mrb[0].mxu0
      %2083 = vmatprep.mubr.f32.mxu0 0.0
      %2084 = vmatmul.mubr.f32.gmra.mrb[0].mxu0 %v1947
      %v2085 = vpop.f32.mrb[0].mxu0
      %v2086 = vadd.f32 0.0, %v2085
      %v2087 = vpop.f32.mrb[0].mxu0
      %2088 = vmatprep.mubr.f32.mxu0 0.0
      %2089 = vmatmul.mubr.f32.gmra.mrb[0].mxu0 %v1950
      %v2090 = vpop.f32.mrb[0].mxu0
      %v2091 = vadd.f32 0.0, %v2090
      %v2092 = vpop.f32.mrb[0].mxu0
      %2093 = vmatprep.mubr.f32.mxu0 0.0
      %2094 = vmatmul.mubr.f32.gmra.mrb[0].mxu0 %v1953
      %v2095 = vpop.f32.mrb[0].mxu0
      %v2096 = vadd.f32 0.0, %v2095
      %v2097 = vpop.f32.mrb[0].mxu0
      %2098 = vmatprep.mubr.f32.mxu0 0.0
      %2099 = vmatmul.mubr.f32.gmra.mrb[0].mxu0 %v1956
      %v2100 = vpop.f32.mrb[0].mxu0
      %v2101 = vadd.f32 0.0, %v2100
      %v2102 = vpop.f32.mrb[0].mxu0
      %2103 = vmatprep.mubr.f32.mxu0 0.0
      %2104 = vmatmul.mubr.f32.gmra.mrb[0].mxu0 %v1959
      %v2105 = vpop.f32.mrb[0].mxu0
      %v2106 = vadd.f32 0.0, %v2105
      %v2107 = vpop.f32.mrb[0].mxu0
      %2108 = vmatprep.mubr.f32.mxu0 0.0
      %2109 = vmatmul.mubr.f32.gmra.mrb[0].mxu0 %v1962
      %v2110 = vpop.f32.mrb[0].mxu0
      %v2111 = vadd.f32 0.0, %v2110
      %v2112 = vpop.f32.mrb[0].mxu0
      %2113 = vdwg.mxu0
      %vm2114 = vcmask 982016
      %v2115 = vsel %vm2114, %v1554, -inf
      %2116 = vmax.xlane.f32.xlu0 %v2115
      %v2117 = vpop.xlane.xlu0 %2116
      %v2118 = vsel %vm2114, %v1559, -inf
      %2119 = vmax.xlane.f32.xlu0 %v2118
      %v2120 = vpop.xlane.xlu0 %2119
      %v2121 = vsel %vm2114, %v1564, -inf
      %2122 = vmax.xlane.f32.xlu0 %v2121
      %v2123 = vpop.xlane.xlu0 %2122
      %v2124 = vsel %vm2114, %v1569, -inf
      %2125 = vmax.xlane.f32.xlu0 %v2124
      %v2126 = vpop.xlane.xlu0 %2125
      %v2127 = vsel %vm2114, %v1574, -inf
      %2128 = vmax.xlane.f32.xlu0 %v2127
      %v2129 = vpop.xlane.xlu0 %2128
      %v2130 = vsel %vm2114, %v1579, -inf
      %2131 = vmax.xlane.f32.xlu0 %v2130
      %v2132 = vpop.xlane.xlu0 %2131
      %v2133 = vsel %vm2114, %v1584, -inf
      %2134 = vmax.xlane.f32.xlu0 %v2133
      %v2135 = vpop.xlane.xlu0 %2134
      %vm2136 = vcmask 977920
      %v2137 = vsel %vm2136, %v1589, -inf
      %2138 = vmax.xlane.f32.xlu0 %v2137
      %v2139 = vpop.xlane.xlu0 %2138
      %v2140 = vsel %vm2114, %v1728, -inf
      %2141 = vmax.xlane.f32.xlu0 %v2140
      %v2142 = vpop.xlane.xlu0 %2141
      %v2143 = vsel %vm2114, %v1733, -inf
      %2144 = vmax.xlane.f32.xlu0 %v2143
      %v2145 = vpop.xlane.xlu0 %2144
      %v2146 = vsel %vm2114, %v1738, -inf
      %2147 = vmax.xlane.f32.xlu0 %v2146
      %v2148 = vpop.xlane.xlu0 %2147
      %v2149 = vsel %vm2114, %v1743, -inf
      %2150 = vmax.xlane.f32.xlu0 %v2149
      %v2151 = vpop.xlane.xlu0 %2150
      %v2152 = vsel %vm2114, %v1748, -inf
      %2153 = vmax.xlane.f32.xlu0 %v2152
      %v2154 = vpop.xlane.xlu0 %2153
      %v2155 = vsel %vm2114, %v1753, -inf
      %2156 = vmax.xlane.f32.xlu0 %v2155
      %v2157 = vpop.xlane.xlu0 %2156
      %v2158 = vsel %vm2114, %v1758, -inf
      %2159 = vmax.xlane.f32.xlu0 %v2158
      %v2160 = vpop.xlane.xlu0 %2159
      %v2161 = vsel %vm2136, %v1763, -inf
      %2162 = vmax.xlane.f32.xlu0 %v2161
      %v2163 = vpop.xlane.xlu0 %2162
      %v2164 = vsel %vm2114, %v1902, -inf
      %2165 = vmax.xlane.f32.xlu0 %v2164
      %v2166 = vpop.xlane.xlu0 %2165
      %v2167 = vsel %vm2114, %v1907, -inf
      %2168 = vmax.xlane.f32.xlu0 %v2167
      %v2169 = vpop.xlane.xlu0 %2168
      %v2170 = vsel %vm2114, %v1912, -inf
      %2171 = vmax.xlane.f32.xlu0 %v2170
      %v2172 = vpop.xlane.xlu0 %2171
      %v2173 = vsel %vm2114, %v1917, -inf
      %2174 = vmax.xlane.f32.xlu0 %v2173
      %v2175 = vpop.xlane.xlu0 %2174
      %v2176 = vsel %vm2114, %v1922, -inf
      %2177 = vmax.xlane.f32.xlu0 %v2176
      %v2178 = vpop.xlane.xlu0 %2177
      %v2179 = vsel %vm2114, %v1927, -inf
      %2180 = vmax.xlane.f32.xlu0 %v2179
      %v2181 = vpop.xlane.xlu0 %2180
      %v2182 = vsel %vm2114, %v1932, -inf
      %2183 = vmax.xlane.f32.xlu0 %v2182
      %v2184 = vpop.xlane.xlu0 %2183
      %v2185 = vsel %vm2136, %v1937, -inf
      %2186 = vmax.xlane.f32.xlu0 %v2185
      %v2187 = vpop.xlane.xlu0 %2186
      %v2188 = vsel %vm2114, %v2076, -inf
      %2189 = vmax.xlane.f32.xlu0 %v2188
      %v2190 = vpop.xlane.xlu0 %2189
      %v2191 = vsel %vm2114, %v2081, -inf
      %2192 = vmax.xlane.f32.xlu0 %v2191
      %v2193 = vpop.xlane.xlu0 %2192
      %v2194 = vsel %vm2114, %v2086, -inf
      %2195 = vmax.xlane.f32.xlu0 %v2194
      %v2196 = vpop.xlane.xlu0 %2195
      %v2197 = vsel %vm2114, %v2091, -inf
      %2198 = vmax.xlane.f32.xlu0 %v2197
      %v2199 = vpop.xlane.xlu0 %2198
      %v2200 = vsel %vm2114, %v2096, -inf
      %2201 = vmax.xlane.f32.xlu0 %v2200
      %v2202 = vpop.xlane.xlu0 %2201
      %v2203 = vsel %vm2114, %v2101, -inf
      %2204 = vmax.xlane.f32.xlu0 %v2203
      %v2205 = vpop.xlane.xlu0 %2204
      %v2206 = vsel %vm2114, %v2106, -inf
      %2207 = vmax.xlane.f32.xlu0 %v2206
      %v2208 = vpop.xlane.xlu0 %2207
      %v2209 = vsel %vm2136, %v2111, -inf
      %2210 = vmax.xlane.f32.xlu0 %v2209
      %v2211 = vpop.xlane.xlu0 %2210
      %v2212 = vsub.f32 %v1554, %v2117
      %v2213 = vsub.f32 %v1559, %v2120
      %v2214 = vsub.f32 %v1564, %v2123
      %v2215 = vsub.f32 %v1569, %v2126
      %v2216 = vsub.f32 %v1574, %v2129
      %v2217 = vsub.f32 %v1579, %v2132
      %v2218 = vsub.f32 %v1584, %v2135
      %v2219 = vsub.f32 %v1589, %v2139
      %v2220 = vsub.f32 %v1728, %v2142
      %v2221 = vsub.f32 %v1733, %v2145
      %v2222 = vsub.f32 %v1738, %v2148
      %v2223 = vsub.f32 %v1743, %v2151
      %v2224 = vsub.f32 %v1748, %v2154
      %v2225 = vsub.f32 %v1753, %v2157
      %v2226 = vsub.f32 %v1758, %v2160
      %v2227 = vsub.f32 %v1763, %v2163
      %v2228 = vsub.f32 %v1902, %v2166
      %v2229 = vsub.f32 %v1907, %v2169
      %v2230 = vsub.f32 %v1912, %v2172
      %v2231 = vsub.f32 %v1917, %v2175
      %v2232 = vsub.f32 %v1922, %v2178
      %v2233 = vsub.f32 %v1927, %v2181
      %v2234 = vsub.f32 %v1932, %v2184
      %v2235 = vsub.f32 %v1937, %v2187
      %v2236 = vsub.f32 %v2076, %v2190
      %v2237 = vsub.f32 %v2081, %v2193
      %v2238 = vsub.f32 %v2086, %v2196
      %v2239 = vsub.f32 %v2091, %v2199
      %v2240 = vsub.f32 %v2096, %v2202
      %v2241 = vsub.f32 %v2101, %v2205
      %v2242 = vsub.f32 %v2106, %v2208
      %v2243 = vsub.f32 %v2111, %v2211
      %v2244 = vmul.f32 %v2212, 1.442695
      %v2245 = vpow.pop %v2244
      %v2246 = vmul.f32 %v2213, 1.442695
      %v2247 = vpow.pop %v2246
      %v2248 = vmul.f32 %v2214, 1.442695
      %v2249 = vpow.pop %v2248
      %v2250 = vmul.f32 %v2215, 1.442695
      %v2251 = vpow.pop %v2250
      %v2252 = vmul.f32 %v2216, 1.442695
      %v2253 = vpow.pop %v2252
      %v2254 = vmul.f32 %v2217, 1.442695
      %v2255 = vpow.pop %v2254
      %v2256 = vmul.f32 %v2218, 1.442695
      %v2257 = vpow.pop %v2256
      %v2258 = vmul.f32 %v2219, 1.442695
      %v2259 = vpow.pop %v2258
      %v2260 = vmul.f32 %v2220, 1.442695
      %v2261 = vpow.pop %v2260
      %v2262 = vmul.f32 %v2221, 1.442695
      %v2263 = vpow.pop %v2262
      %v2264 = vmul.f32 %v2222, 1.442695
      %v2265 = vpow.pop %v2264
      %v2266 = vmul.f32 %v2223, 1.442695
      %v2267 = vpow.pop %v2266
      %v2268 = vmul.f32 %v2224, 1.442695
      %v2269 = vpow.pop %v2268
      %v2270 = vmul.f32 %v2225, 1.442695
      %v2271 = vpow.pop %v2270
      %v2272 = vmul.f32 %v2226, 1.442695
      %v2273 = vpow.pop %v2272
      %v2274 = vmul.f32 %v2227, 1.442695
      %v2275 = vpow.pop %v2274
      %v2276 = vmul.f32 %v2228, 1.442695
      %v2277 = vpow.pop %v2276
      %v2278 = vmul.f32 %v2229, 1.442695
      %v2279 = vpow.pop %v2278
      %v2280 = vmul.f32 %v2230, 1.442695
      %v2281 = vpow.pop %v2280
      %v2282 = vmul.f32 %v2231, 1.442695
      %v2283 = vpow.pop %v2282
      %v2284 = vmul.f32 %v2232, 1.442695
      %v2285 = vpow.pop %v2284
      %v2286 = vmul.f32 %v2233, 1.442695
      %v2287 = vpow.pop %v2286
      %v2288 = vmul.f32 %v2234, 1.442695
      %v2289 = vpow.pop %v2288
      %v2290 = vmul.f32 %v2235, 1.442695
      %v2291 = vpow.pop %v2290
      %v2292 = vmul.f32 %v2236, 1.442695
      %v2293 = vpow.pop %v2292
      %v2294 = vmul.f32 %v2237, 1.442695
      %v2295 = vpow.pop %v2294
      %v2296 = vmul.f32 %v2238, 1.442695
      %v2297 = vpow.pop %v2296
      %v2298 = vmul.f32 %v2239, 1.442695
      %v2299 = vpow.pop %v2298
      %v2300 = vmul.f32 %v2240, 1.442695
      %v2301 = vpow.pop %v2300
      %v2302 = vmul.f32 %v2241, 1.442695
      %v2303 = vpow.pop %v2302
      %v2304 = vmul.f32 %v2242, 1.442695
      %v2305 = vpow.pop %v2304
      %v2306 = vmul.f32 %v2243, 1.442695
      %v2307 = vpow.pop %v2306
      %v2308 = vsel %vm2114, %v2245, 0.0
      %2309 = vadd.xlane.f32.xlu0 %v2308
      %v2310 = vpop.xlane.xlu0 %2309
      %v2311 = vsel %vm2114, %v2247, 0.0
      %2312 = vadd.xlane.f32.xlu0 %v2311
      %v2313 = vpop.xlane.xlu0 %2312
      %v2314 = vsel %vm2114, %v2249, 0.0
      %2315 = vadd.xlane.f32.xlu0 %v2314
      %v2316 = vpop.xlane.xlu0 %2315
      %v2317 = vsel %vm2114, %v2251, 0.0
      %2318 = vadd.xlane.f32.xlu0 %v2317
      %v2319 = vpop.xlane.xlu0 %2318
      %v2320 = vsel %vm2114, %v2253, 0.0
      %2321 = vadd.xlane.f32.xlu0 %v2320
      %v2322 = vpop.xlane.xlu0 %2321
      %v2323 = vsel %vm2114, %v2255, 0.0
      %2324 = vadd.xlane.f32.xlu0 %v2323
      %v2325 = vpop.xlane.xlu0 %2324
      %v2326 = vsel %vm2114, %v2257, 0.0
      %2327 = vadd.xlane.f32.xlu0 %v2326
      %v2328 = vpop.xlane.xlu0 %2327
      %v2329 = vsel %vm2136, %v2259, 0.0
      %2330 = vadd.xlane.f32.xlu0 %v2329
      %v2331 = vpop.xlane.xlu0 %2330
      %v2332 = vsel %vm2114, %v2261, 0.0
      %2333 = vadd.xlane.f32.xlu0 %v2332
      %v2334 = vpop.xlane.xlu0 %2333
      %v2335 = vsel %vm2114, %v2263, 0.0
      %2336 = vadd.xlane.f32.xlu0 %v2335
      %v2337 = vpop.xlane.xlu0 %2336
      %v2338 = vsel %vm2114, %v2265, 0.0
      %2339 = vadd.xlane.f32.xlu0 %v2338
      %v2340 = vpop.xlane.xlu0 %2339
      %v2341 = vsel %vm2114, %v2267, 0.0
      %2342 = vadd.xlane.f32.xlu0 %v2341
      %v2343 = vpop.xlane.xlu0 %2342
      %v2344 = vsel %vm2114, %v2269, 0.0
      %2345 = vadd.xlane.f32.xlu0 %v2344
      %v2346 = vpop.xlane.xlu0 %2345
      %v2347 = vsel %vm2114, %v2271, 0.0
      %2348 = vadd.xlane.f32.xlu0 %v2347
      %v2349 = vpop.xlane.xlu0 %2348
      %v2350 = vsel %vm2114, %v2273, 0.0
      %2351 = vadd.xlane.f32.xlu0 %v2350
      %v2352 = vpop.xlane.xlu0 %2351
      %v2353 = vsel %vm2136, %v2275, 0.0
      %2354 = vadd.xlane.f32.xlu0 %v2353
      %v2355 = vpop.xlane.xlu0 %2354
      %v2356 = vsel %vm2114, %v2277, 0.0
      %2357 = vadd.xlane.f32.xlu0 %v2356
      %v2358 = vpop.xlane.xlu0 %2357
      %v2359 = vsel %vm2114, %v2279, 0.0
      %2360 = vadd.xlane.f32.xlu0 %v2359
      %v2361 = vpop.xlane.xlu0 %2360
      %v2362 = vsel %vm2114, %v2281, 0.0
      %2363 = vadd.xlane.f32.xlu0 %v2362
      %v2364 = vpop.xlane.xlu0 %2363
      %v2365 = vsel %vm2114, %v2283, 0.0
      %2366 = vadd.xlane.f32.xlu0 %v2365
      %v2367 = vpop.xlane.xlu0 %2366
      %v2368 = vsel %vm2114, %v2285, 0.0
      %2369 = vadd.xlane.f32.xlu0 %v2368
      %v2370 = vpop.xlane.xlu0 %2369
      %v2371 = vsel %vm2114, %v2287, 0.0
      %2372 = vadd.xlane.f32.xlu0 %v2371
      %v2373 = vpop.xlane.xlu0 %2372
      %v2374 = vsel %vm2114, %v2289, 0.0
      %2375 = vadd.xlane.f32.xlu0 %v2374
      %v2376 = vpop.xlane.xlu0 %2375
      %v2377 = vsel %vm2136, %v2291, 0.0
      %2378 = vadd.xlane.f32.xlu0 %v2377
      %v2379 = vpop.xlane.xlu0 %2378
      %v2380 = vsel %vm2114, %v2293, 0.0
      %2381 = vadd.xlane.f32.xlu0 %v2380
      %v2382 = vpop.xlane.xlu0 %2381
      %v2383 = vsel %vm2114, %v2295, 0.0
      %2384 = vadd.xlane.f32.xlu0 %v2383
      %v2385 = vpop.xlane.xlu0 %2384
      %v2386 = vsel %vm2114, %v2297, 0.0
      %2387 = vadd.xlane.f32.xlu0 %v2386
      %v2388 = vpop.xlane.xlu0 %2387
      %v2389 = vsel %vm2114, %v2299, 0.0
      %2390 = vadd.xlane.f32.xlu0 %v2389
      %v2391 = vpop.xlane.xlu0 %2390
      %v2392 = vsel %vm2114, %v2301, 0.0
      %2393 = vadd.xlane.f32.xlu0 %v2392
      %v2394 = vpop.xlane.xlu0 %2393
      %v2395 = vsel %vm2114, %v2303, 0.0
      %2396 = vadd.xlane.f32.xlu0 %v2395
      %v2397 = vpop.xlane.xlu0 %2396
      %v2398 = vsel %vm2114, %v2305, 0.0
      %2399 = vadd.xlane.f32.xlu0 %v2398
      %v2400 = vpop.xlane.xlu0 %2399
      %v2401 = vsel %vm2136, %v2307, 0.0
      %2402 = vadd.xlane.f32.xlu0 %v2401
      %v2403 = vpop.xlane.xlu0 %2402
      %v2405 = vsel %vm2114, %v2245, 0
      %v2408 = vsel %vm2114, %v2247, 0
      %v2411 = vsel %vm2114, %v2249, 0
      %v2414 = vsel %vm2114, %v2251, 0
      %v2417 = vsel %vm2114, %v2253, 0
      %v2420 = vsel %vm2114, %v2255, 0
      %v2423 = vsel %vm2114, %v2257, 0
      %v2426 = vsel %vm2114, %v2259, 0
      %2428 = vmatprep.subr.mxu0 0.0
      %2429 = vmatpush1.msra.mxu0 %v1358
      %2430 = vmatprep.subr.mxu0 0.0
      %2431 = vmatpush1.msra.mxu0 %v1359
      %2432 = vmatprep.subr.mxu0 0.0
      %2433 = vmatpush1.msra.mxu0 %v1360
      %2434 = vmatprep.subr.mxu0 0.0
      %2435 = vmatpush1.msra.mxu0 %v1361
      %2436 = vmatprep.subr.mxu0 0.0
      %2437 = vmatpush1.msra.mxu0 %v1362
      %2438 = vmatprep.subr.mxu0 0.0
      %2439 = vmatpush1.msra.mxu0 %v1363
      %2440 = vmatprep.subr.mxu0 0.0
      %2441 = vmatpush1.msra.mxu0 %v1364
      %2442 = vmatprep.subr.mxu0 0.0
      %2443 = vmatpush1.msra.mxu0 %v1365
      %2444 = vmatprep.subr.mxu0 0.0
      %2445 = vmatpush1.msra.mxu0 %v1366
      %2446 = vmatprep.subr.mxu0 0.0
      %2447 = vmatpush1.msra.mxu0 %v1367
      %2448 = vmatprep.subr.mxu0 0.0
      %2449 = vmatpush1.msra.mxu0 %v1368
      %2450 = vmatprep.subr.mxu0 0.0
      %2451 = vmatpush1.msra.mxu0 %v1369
      %2452 = vmatprep.subr.mxu0 0.0
      %2453 = vmatpush1.msra.mxu0 %v1370
      %2454 = vmatprep.subr.mxu0 0.0
      %2455 = vmatpush1.msra.mxu0 %v1371
      %2456 = vmatprep.subr.mxu0 0.0
      %2457 = vmatpush1.msra.mxu0 %v1372
      %2458 = vmatprep.subr.mxu0 0.0
      %2459 = vmatpush1.msra.mxu0 0.0
      %2460 = vmatprep.subr.mxu0 0.0
      %2461 = vmatpush1.msra.mxu0 0.0
      %2462 = vmatprep.subr.mxu0 0.0
      %2463 = vmatpush1.msra.mxu0 0.0
      %2464 = vmatprep.subr.mxu0 0.0
      %2465 = vmatpush1.msra.mxu0 0.0
      %2466 = vmatprep.subr.mxu0 0.0
      %2467 = vmatpush1.msra.mxu0 0.0
      %2468 = vmatprep.subr.mxu0 0.0
      %2469 = vmatpush1.msra.mxu0 0.0
      %2470 = vmatprep.subr.mxu0 0.0
      %2471 = vmatpush1.msra.mxu0 0.0
      %2472 = vmatprep.subr.mxu0 0.0
      %2473 = vmatpush1.msra.mxu0 0.0
      %2474 = vmatprep.subr.mxu0 0.0
      %2475 = vmatpush1.msra.mxu0 0.0
      %2476 = vmatprep.subr.mxu0 0.0
      %2477 = vmatpush1.msra.mxu0 0.0
      %2478 = vmatprep.subr.mxu0 0.0
      %2479 = vmatpush1.msra.mxu0 0.0
      %2480 = vmatprep.subr.mxu0 0.0
      %2481 = vmatpush1.msra.mxu0 0.0
      %2482 = vmatprep.subr.mxu0 0.0
      %2483 = vmatpush1.msra.mxu0 0.0
      %2484 = vmatprep.subr.mxu0 0.0
      %2485 = vmatpush1.msra.mxu0 0.0
      %2486 = vmatprep.subr.mxu0 0.0
      %2487 = vmatpush1.msra.mxu0 0.0
      %2488 = vmatprep.subr.mxu0 0.0
      %2489 = vmatpush1.msra.mxu0 0.0
      %2490 = vmatprep.subr.mxu0 0.0
      %2491 = vmatpush1.msra.mxu0 0.0
      %2492 = vmatprep.mubr.f32.mxu0 0.0
      %2493 = vmatmul.mubr.f32.gmra.mrb[0].mxu0 %v2405
      %v2494 = vpop.f32.mrb[0].mxu0
      %v2495 = vadd.f32 0.0, %v2494
      %v2496 = vpop.f32.mrb[0].mxu0
      %2497 = vmatprep.mubr.f32.mxu0 0.0
      %2498 = vmatmul.mubr.f32.gmra.mrb[0].mxu0 %v2408
      %v2499 = vpop.f32.mrb[0].mxu0
      %v2500 = vadd.f32 0.0, %v2499
      %v2501 = vpop.f32.mrb[0].mxu0
      %2502 = vmatprep.mubr.f32.mxu0 0.0
      %2503 = vmatmul.mubr.f32.gmra.mrb[0].mxu0 %v2411
      %v2504 = vpop.f32.mrb[0].mxu0
      %v2505 = vadd.f32 0.0, %v2504
      %v2506 = vpop.f32.mrb[0].mxu0
      %2507 = vmatprep.mubr.f32.mxu0 0.0
      %2508 = vmatmul.mubr.f32.gmra.mrb[0].mxu0 %v2414
      %v2509 = vpop.f32.mrb[0].mxu0
      %v2510 = vadd.f32 0.0, %v2509
      %v2511 = vpop.f32.mrb[0].mxu0
      %2512 = vmatprep.mubr.f32.mxu0 0.0
      %2513 = vmatmul.mubr.f32.gmra.mrb[0].mxu0 %v2417
      %v2514 = vpop.f32.mrb[0].mxu0
      %v2515 = vadd.f32 0.0, %v2514
      %v2516 = vpop.f32.mrb[0].mxu0
      %2517 = vmatprep.mubr.f32.mxu0 0.0
      %2518 = vmatmul.mubr.f32.gmra.mrb[0].mxu0 %v2420
      %v2519 = vpop.f32.mrb[0].mxu0
      %v2520 = vadd.f32 0.0, %v2519
      %v2521 = vpop.f32.mrb[0].mxu0
      %2522 = vmatprep.mubr.f32.mxu0 0.0
      %2523 = vmatmul.mubr.f32.gmra.mrb[0].mxu0 %v2423
      %v2524 = vpop.f32.mrb[0].mxu0
      %v2525 = vadd.f32 0.0, %v2524
      %v2526 = vpop.f32.mrb[0].mxu0
      %2527 = vmatprep.mubr.f32.mxu0 0.0
      %2528 = vmatmul.mubr.f32.gmra.mrb[0].mxu0 %v2426
      %v2529 = vpop.f32.mrb[0].mxu0
      %v2530 = vadd.f32 0.0, %v2529
      %v2531 = vpop.f32.mrb[0].mxu0
      %2532 = vdwg.mxu0
      %v2534 = vsel %vm2114, %v2261, 0
      %v2537 = vsel %vm2114, %v2263, 0
      %v2540 = vsel %vm2114, %v2265, 0
      %v2543 = vsel %vm2114, %v2267, 0
      %v2546 = vsel %vm2114, %v2269, 0
      %v2549 = vsel %vm2114, %v2271, 0
      %v2552 = vsel %vm2114, %v2273, 0
      %v2555 = vsel %vm2114, %v2275, 0
      %2557 = vmatprep.subr.mxu0 0.0
      %2558 = vmatpush1.msra.mxu0 %v1373
      %2559 = vmatprep.subr.mxu0 0.0
      %2560 = vmatpush1.msra.mxu0 %v1374
      %2561 = vmatprep.subr.mxu0 0.0
      %2562 = vmatpush1.msra.mxu0 %v1375
      %2563 = vmatprep.subr.mxu0 0.0
      %2564 = vmatpush1.msra.mxu0 %v1376
      %2565 = vmatprep.subr.mxu0 0.0
      %2566 = vmatpush1.msra.mxu0 %v1377
      %2567 = vmatprep.subr.mxu0 0.0
      %2568 = vmatpush1.msra.mxu0 %v1378
      %2569 = vmatprep.subr.mxu0 0.0
      %2570 = vmatpush1.msra.mxu0 %v1379
      %2571 = vmatprep.subr.mxu0 0.0
      %2572 = vmatpush1.msra.mxu0 %v1380
      %2573 = vmatprep.subr.mxu0 0.0
      %2574 = vmatpush1.msra.mxu0 %v1381
      %2575 = vmatprep.subr.mxu0 0.0
      %2576 = vmatpush1.msra.mxu0 %v1382
      %2577 = vmatprep.subr.mxu0 0.0
      %2578 = vmatpush1.msra.mxu0 %v1383
      %2579 = vmatprep.subr.mxu0 0.0
      %2580 = vmatpush1.msra.mxu0 %v1384
      %2581 = vmatprep.subr.mxu0 0.0
      %2582 = vmatpush1.msra.mxu0 %v1385
      %2583 = vmatprep.subr.mxu0 0.0
      %2584 = vmatpush1.msra.mxu0 %v1386
      %2585 = vmatprep.subr.mxu0 0.0
      %2586 = vmatpush1.msra.mxu0 %v1387
      %2587 = vmatprep.subr.mxu0 0.0
      %2588 = vmatpush1.msra.mxu0 0.0
      %2589 = vmatprep.subr.mxu0 0.0
      %2590 = vmatpush1.msra.mxu0 0.0
      %2591 = vmatprep.subr.mxu0 0.0
      %2592 = vmatpush1.msra.mxu0 0.0
      %2593 = vmatprep.subr.mxu0 0.0
      %2594 = vmatpush1.msra.mxu0 0.0
      %2595 = vmatprep.subr.mxu0 0.0
      %2596 = vmatpush1.msra.mxu0 0.0
      %2597 = vmatprep.subr.mxu0 0.0
      %2598 = vmatpush1.msra.mxu0 0.0
      %2599 = vmatprep.subr.mxu0 0.0
      %2600 = vmatpush1.msra.mxu0 0.0
      %2601 = vmatprep.subr.mxu0 0.0
      %2602 = vmatpush1.msra.mxu0 0.0
      %2603 = vmatprep.subr.mxu0 0.0
      %2604 = vmatpush1.msra.mxu0 0.0
      %2605 = vmatprep.subr.mxu0 0.0
      %2606 = vmatpush1.msra.mxu0 0.0
      %2607 = vmatprep.subr.mxu0 0.0
      %2608 = vmatpush1.msra.mxu0 0.0
      %2609 = vmatprep.subr.mxu0 0.0
      %2610 = vmatpush1.msra.mxu0 0.0
      %2611 = vmatprep.subr.mxu0 0.0
      %2612 = vmatpush1.msra.mxu0 0.0
      %2613 = vmatprep.subr.mxu0 0.0
      %2614 = vmatpush1.msra.mxu0 0.0
      %2615 = vmatprep.subr.mxu0 0.0
      %2616 = vmatpush1.msra.mxu0 0.0
      %2617 = vmatprep.subr.mxu0 0.0
      %2618 = vmatpush1.msra.mxu0 0.0
      %2619 = vmatprep.subr.mxu0 0.0
      %2620 = vmatpush1.msra.mxu0 0.0
      %2621 = vmatprep.mubr.f32.mxu0 0.0
      %2622 = vmatmul.mubr.f32.gmra.mrb[0].mxu0 %v2534
      %v2623 = vpop.f32.mrb[0].mxu0
      %v2624 = vadd.f32 0.0, %v2623
      %v2625 = vpop.f32.mrb[0].mxu0
      %2626 = vmatprep.mubr.f32.mxu0 0.0
      %2627 = vmatmul.mubr.f32.gmra.mrb[0].mxu0 %v2537
      %v2628 = vpop.f32.mrb[0].mxu0
      %v2629 = vadd.f32 0.0, %v2628
      %v2630 = vpop.f32.mrb[0].mxu0
      %2631 = vmatprep.mubr.f32.mxu0 0.0
      %2632 = vmatmul.mubr.f32.gmra.mrb[0].mxu0 %v2540
      %v2633 = vpop.f32.mrb[0].mxu0
      %v2634 = vadd.f32 0.0, %v2633
      %v2635 = vpop.f32.mrb[0].mxu0
      %2636 = vmatprep.mubr.f32.mxu0 0.0
      %2637 = vmatmul.mubr.f32.gmra.mrb[0].mxu0 %v2543
      %v2638 = vpop.f32.mrb[0].mxu0
      %v2639 = vadd.f32 0.0, %v2638
      %v2640 = vpop.f32.mrb[0].mxu0
      %2641 = vmatprep.mubr.f32.mxu0 0.0
      %2642 = vmatmul.mubr.f32.gmra.mrb[0].mxu0 %v2546
      %v2643 = vpop.f32.mrb[0].mxu0
      %v2644 = vadd.f32 0.0, %v2643
      %v2645 = vpop.f32.mrb[0].mxu0
      %2646 = vmatprep.mubr.f32.mxu0 0.0
      %2647 = vmatmul.mubr.f32.gmra.mrb[0].mxu0 %v2549
      %v2648 = vpop.f32.mrb[0].mxu0
      %v2649 = vadd.f32 0.0, %v2648
      %v2650 = vpop.f32.mrb[0].mxu0
      %2651 = vmatprep.mubr.f32.mxu0 0.0
      %2652 = vmatmul.mubr.f32.gmra.mrb[0].mxu0 %v2552
      %v2653 = vpop.f32.mrb[0].mxu0
      %v2654 = vadd.f32 0.0, %v2653
      %v2655 = vpop.f32.mrb[0].mxu0
      %2656 = vmatprep.mubr.f32.mxu0 0.0
      %2657 = vmatmul.mubr.f32.gmra.mrb[0].mxu0 %v2555
      %v2658 = vpop.f32.mrb[0].mxu0
      %v2659 = vadd.f32 0.0, %v2658
      %v2660 = vpop.f32.mrb[0].mxu0
      %2661 = vdwg.mxu0
      %v2663 = vsel %vm2114, %v2277, 0
      %v2666 = vsel %vm2114, %v2279, 0
      %v2669 = vsel %vm2114, %v2281, 0
      %v2672 = vsel %vm2114, %v2283, 0
      %v2675 = vsel %vm2114, %v2285, 0
      %v2678 = vsel %vm2114, %v2287, 0
      %v2681 = vsel %vm2114, %v2289, 0
      %v2684 = vsel %vm2114, %v2291, 0
      %2686 = vmatprep.subr.mxu0 0.0
      %2687 = vmatpush1.msra.mxu0 %v1388
      %2688 = vmatprep.subr.mxu0 0.0
      %2689 = vmatpush1.msra.mxu0 %v1389
      %2690 = vmatprep.subr.mxu0 0.0
      %2691 = vmatpush1.msra.mxu0 %v1390
      %2692 = vmatprep.subr.mxu0 0.0
      %2693 = vmatpush1.msra.mxu0 %v1391
      %2694 = vmatprep.subr.mxu0 0.0
      %2695 = vmatpush1.msra.mxu0 %v1392
      %2696 = vmatprep.subr.mxu0 0.0
      %2697 = vmatpush1.msra.mxu0 %v1393
      %2698 = vmatprep.subr.mxu0 0.0
      %2699 = vmatpush1.msra.mxu0 %v1394
      %2700 = vmatprep.subr.mxu0 0.0
      %2701 = vmatpush1.msra.mxu0 %v1395
      %2702 = vmatprep.subr.mxu0 0.0
      %2703 = vmatpush1.msra.mxu0 %v1396
      %2704 = vmatprep.subr.mxu0 0.0
      %2705 = vmatpush1.msra.mxu0 %v1397
      %2706 = vmatprep.subr.mxu0 0.0
      %2707 = vmatpush1.msra.mxu0 %v1398
      %2708 = vmatprep.subr.mxu0 0.0
      %2709 = vmatpush1.msra.mxu0 %v1399
      %2710 = vmatprep.subr.mxu0 0.0
      %2711 = vmatpush1.msra.mxu0 %v1400
      %2712 = vmatprep.subr.mxu0 0.0
      %2713 = vmatpush1.msra.mxu0 %v1401
      %2714 = vmatprep.subr.mxu0 0.0
      %2715 = vmatpush1.msra.mxu0 %v1402
      %2716 = vmatprep.subr.mxu0 0.0
      %2717 = vmatpush1.msra.mxu0 0.0
      %2718 = vmatprep.subr.mxu0 0.0
      %2719 = vmatpush1.msra.mxu0 0.0
      %2720 = vmatprep.subr.mxu0 0.0
      %2721 = vmatpush1.msra.mxu0 0.0
      %2722 = vmatprep.subr.mxu0 0.0
      %2723 = vmatpush1.msra.mxu0 0.0
      %2724 = vmatprep.subr.mxu0 0.0
      %2725 = vmatpush1.msra.mxu0 0.0
      %2726 = vmatprep.subr.mxu0 0.0
      %2727 = vmatpush1.msra.mxu0 0.0
      %2728 = vmatprep.subr.mxu0 0.0
      %2729 = vmatpush1.msra.mxu0 0.0
      %2730 = vmatprep.subr.mxu0 0.0
      %2731 = vmatpush1.msra.mxu0 0.0
      %2732 = vmatprep.subr.mxu0 0.0
      %2733 = vmatpush1.msra.mxu0 0.0
      %2734 = vmatprep.subr.mxu0 0.0
      %2735 = vmatpush1.msra.mxu0 0.0
      %2736 = vmatprep.subr.mxu0 0.0
      %2737 = vmatpush1.msra.mxu0 0.0
      %2738 = vmatprep.subr.mxu0 0.0
      %2739 = vmatpush1.msra.mxu0 0.0
      %2740 = vmatprep.subr.mxu0 0.0
      %2741 = vmatpush1.msra.mxu0 0.0
      %2742 = vmatprep.subr.mxu0 0.0
      %2743 = vmatpush1.msra.mxu0 0.0
      %2744 = vmatprep.subr.mxu0 0.0
      %2745 = vmatpush1.msra.mxu0 0.0
      %2746 = vmatprep.subr.mxu0 0.0
      %2747 = vmatpush1.msra.mxu0 0.0
      %2748 = vmatprep.subr.mxu0 0.0
      %2749 = vmatpush1.msra.mxu0 0.0
      %2750 = vmatprep.mubr.f32.mxu0 0.0
      %2751 = vmatmul.mubr.f32.gmra.mrb[0].mxu0 %v2663
      %v2752 = vpop.f32.mrb[0].mxu0
      %v2753 = vadd.f32 0.0, %v2752
      %v2754 = vpop.f32.mrb[0].mxu0
      %2755 = vmatprep.mubr.f32.mxu0 0.0
      %2756 = vmatmul.mubr.f32.gmra.mrb[0].mxu0 %v2666
      %v2757 = vpop.f32.mrb[0].mxu0
      %v2758 = vadd.f32 0.0, %v2757
      %v2759 = vpop.f32.mrb[0].mxu0
      %2760 = vmatprep.mubr.f32.mxu0 0.0
      %2761 = vmatmul.mubr.f32.gmra.mrb[0].mxu0 %v2669
      %v2762 = vpop.f32.mrb[0].mxu0
      %v2763 = vadd.f32 0.0, %v2762
      %v2764 = vpop.f32.mrb[0].mxu0
      %2765 = vmatprep.mubr.f32.mxu0 0.0
      %2766 = vmatmul.mubr.f32.gmra.mrb[0].mxu0 %v2672
      %v2767 = vpop.f32.mrb[0].mxu0
      %v2768 = vadd.f32 0.0, %v2767
      %v2769 = vpop.f32.mrb[0].mxu0
      %2770 = vmatprep.mubr.f32.mxu0 0.0
      %2771 = vmatmul.mubr.f32.gmra.mrb[0].mxu0 %v2675
      %v2772 = vpop.f32.mrb[0].mxu0
      %v2773 = vadd.f32 0.0, %v2772
      %v2774 = vpop.f32.mrb[0].mxu0
      %2775 = vmatprep.mubr.f32.mxu0 0.0
      %2776 = vmatmul.mubr.f32.gmra.mrb[0].mxu0 %v2678
      %v2777 = vpop.f32.mrb[0].mxu0
      %v2778 = vadd.f32 0.0, %v2777
      %v2779 = vpop.f32.mrb[0].mxu0
      %2780 = vmatprep.mubr.f32.mxu0 0.0
      %2781 = vmatmul.mubr.f32.gmra.mrb[0].mxu0 %v2681
      %v2782 = vpop.f32.mrb[0].mxu0
      %v2783 = vadd.f32 0.0, %v2782
      %v2784 = vpop.f32.mrb[0].mxu0
      %2785 = vmatprep.mubr.f32.mxu0 0.0
      %2786 = vmatmul.mubr.f32.gmra.mrb[0].mxu0 %v2684
      %v2787 = vpop.f32.mrb[0].mxu0
      %v2788 = vadd.f32 0.0, %v2787
      %v2789 = vpop.f32.mrb[0].mxu0
      %2790 = vdwg.mxu0
      %v2792 = vsel %vm2114, %v2293, 0
      %v2795 = vsel %vm2114, %v2295, 0
      %v2798 = vsel %vm2114, %v2297, 0
      %v2801 = vsel %vm2114, %v2299, 0
      %v2804 = vsel %vm2114, %v2301, 0
      %v2807 = vsel %vm2114, %v2303, 0
      %v2810 = vsel %vm2114, %v2305, 0
      %v2813 = vsel %vm2114, %v2307, 0
      %2815 = vmatprep.subr.mxu0 0.0
      %2816 = vmatpush1.msra.mxu0 %v1403
      %2817 = vmatprep.subr.mxu0 0.0
      %2818 = vmatpush1.msra.mxu0 %v1404
      %2819 = vmatprep.subr.mxu0 0.0
      %2820 = vmatpush1.msra.mxu0 %v1405
      %2821 = vmatprep.subr.mxu0 0.0
      %2822 = vmatpush1.msra.mxu0 %v1406
      %2823 = vmatprep.subr.mxu0 0.0
      %2824 = vmatpush1.msra.mxu0 %v1407
      %2825 = vmatprep.subr.mxu0 0.0
      %2826 = vmatpush1.msra.mxu0 %v1408
      %2827 = vmatprep.subr.mxu0 0.0
      %2828 = vmatpush1.msra.mxu0 %v1409
      %2829 = vmatprep.subr.mxu0 0.0
      %2830 = vmatpush1.msra.mxu0 %v1410
      %2831 = vmatprep.subr.mxu0 0.0
      %2832 = vmatpush1.msra.mxu0 %v1411
      %2833 = vmatprep.subr.mxu0 0.0
      %2834 = vmatpush1.msra.mxu0 %v1412
      %2835 = vmatprep.subr.mxu0 0.0
      %2836 = vmatpush1.msra.mxu0 %v1413
      %2837 = vmatprep.subr.mxu0 0.0
      %2838 = vmatpush1.msra.mxu0 %v1414
      %2839 = vmatprep.subr.mxu0 0.0
      %2840 = vmatpush1.msra.mxu0 %v1415
      %2841 = vmatprep.subr.mxu0 0.0
      %2842 = vmatpush1.msra.mxu0 %v1416
      %2843 = vmatprep.subr.mxu0 0.0
      %2844 = vmatpush1.msra.mxu0 %v1417
      %2845 = vmatprep.subr.mxu0 0.0
      %2846 = vmatpush1.msra.mxu0 0.0
      %2847 = vmatprep.subr.mxu0 0.0
      %2848 = vmatpush1.msra.mxu0 0.0
      %2849 = vmatprep.subr.mxu0 0.0
      %2850 = vmatpush1.msra.mxu0 0.0
      %2851 = vmatprep.subr.mxu0 0.0
      %2852 = vmatpush1.msra.mxu0 0.0
      %2853 = vmatprep.subr.mxu0 0.0
      %2854 = vmatpush1.msra.mxu0 0.0
      %2855 = vmatprep.subr.mxu0 0.0
      %2856 = vmatpush1.msra.mxu0 0.0
      %2857 = vmatprep.subr.mxu0 0.0
      %2858 = vmatpush1.msra.mxu0 0.0
      %2859 = vmatprep.subr.mxu0 0.0
      %2860 = vmatpush1.msra.mxu0 0.0
      %2861 = vmatprep.subr.mxu0 0.0
      %2862 = vmatpush1.msra.mxu0 0.0
      %2863 = vmatprep.subr.mxu0 0.0
      %2864 = vmatpush1.msra.mxu0 0.0
      %2865 = vmatprep.subr.mxu0 0.0
      %2866 = vmatpush1.msra.mxu0 0.0
      %2867 = vmatprep.subr.mxu0 0.0
      %2868 = vmatpush1.msra.mxu0 0.0
      %2869 = vmatprep.subr.mxu0 0.0
      %2870 = vmatpush1.msra.mxu0 0.0
      %2871 = vmatprep.subr.mxu0 0.0
      %2872 = vmatpush1.msra.mxu0 0.0
      %2873 = vmatprep.subr.mxu0 0.0
      %2874 = vmatpush1.msra.mxu0 0.0
      %2875 = vmatprep.subr.mxu0 0.0
      %2876 = vmatpush1.msra.mxu0 0.0
      %2877 = vmatprep.subr.mxu0 0.0
      %2878 = vmatpush1.msra.mxu0 0.0
      %2879 = vmatprep.mubr.f32.mxu0 0.0
      %2880 = vmatmul.mubr.f32.gmra.mrb[0].mxu0 %v2792
      %v2881 = vpop.f32.mrb[0].mxu0
      %v2882 = vadd.f32 0.0, %v2881
      %v2883 = vpop.f32.mrb[0].mxu0
      %2884 = vmatprep.mubr.f32.mxu0 0.0
      %2885 = vmatmul.mubr.f32.gmra.mrb[0].mxu0 %v2795
      %v2886 = vpop.f32.mrb[0].mxu0
      %v2887 = vadd.f32 0.0, %v2886
      %v2888 = vpop.f32.mrb[0].mxu0
      %2889 = vmatprep.mubr.f32.mxu0 0.0
      %2890 = vmatmul.mubr.f32.gmra.mrb[0].mxu0 %v2798
      %v2891 = vpop.f32.mrb[0].mxu0
      %v2892 = vadd.f32 0.0, %v2891
      %v2893 = vpop.f32.mrb[0].mxu0
      %2894 = vmatprep.mubr.f32.mxu0 0.0
      %2895 = vmatmul.mubr.f32.gmra.mrb[0].mxu0 %v2801
      %v2896 = vpop.f32.mrb[0].mxu0
      %v2897 = vadd.f32 0.0, %v2896
      %v2898 = vpop.f32.mrb[0].mxu0
      %2899 = vmatprep.mubr.f32.mxu0 0.0
      %2900 = vmatmul.mubr.f32.gmra.mrb[0].mxu0 %v2804
      %v2901 = vpop.f32.mrb[0].mxu0
      %v2902 = vadd.f32 0.0, %v2901
      %v2903 = vpop.f32.mrb[0].mxu0
      %2904 = vmatprep.mubr.f32.mxu0 0.0
      %2905 = vmatmul.mubr.f32.gmra.mrb[0].mxu0 %v2807
      %v2906 = vpop.f32.mrb[0].mxu0
      %v2907 = vadd.f32 0.0, %v2906
      %v2908 = vpop.f32.mrb[0].mxu0
      %2909 = vmatprep.mubr.f32.mxu0 0.0
      %2910 = vmatmul.mubr.f32.gmra.mrb[0].mxu0 %v2810
      %v2911 = vpop.f32.mrb[0].mxu0
      %v2912 = vadd.f32 0.0, %v2911
      %v2913 = vpop.f32.mrb[0].mxu0
      %2914 = vmatprep.mubr.f32.mxu0 0.0
      %2915 = vmatmul.mubr.f32.gmra.mrb[0].mxu0 %v2813
      %v2916 = vpop.f32.mrb[0].mxu0
      %v2917 = vadd.f32 0.0, %v2916
      %v2918 = vpop.f32.mrb[0].mxu0
      %2919 = vdwg.mxu0
      %v2920 = vrcp.pop %v2310
      %v2921 = vmul.f32 %v2495, %v2920
      %v2922 = vrcp.pop %v2313
      %v2923 = vmul.f32 %v2500, %v2922
      %v2924 = vrcp.pop %v2316
      %v2925 = vmul.f32 %v2505, %v2924
      %v2926 = vrcp.pop %v2319
      %v2927 = vmul.f32 %v2510, %v2926
      %v2928 = vrcp.pop %v2322
      %v2929 = vmul.f32 %v2515, %v2928
      %v2930 = vrcp.pop %v2325
      %v2931 = vmul.f32 %v2520, %v2930
      %v2932 = vrcp.pop %v2328
      %v2933 = vmul.f32 %v2525, %v2932
      %v2934 = vrcp.pop %v2331
      %v2935 = vmul.f32 %v2530, %v2934
      %v2936 = vrcp.pop %v2334
      %v2937 = vmul.f32 %v2624, %v2936
      %v2938 = vrcp.pop %v2337
      %v2939 = vmul.f32 %v2629, %v2938
      %v2940 = vrcp.pop %v2340
      %v2941 = vmul.f32 %v2634, %v2940
      %v2942 = vrcp.pop %v2343
      %v2943 = vmul.f32 %v2639, %v2942
      %v2944 = vrcp.pop %v2346
      %v2945 = vmul.f32 %v2644, %v2944
      %v2946 = vrcp.pop %v2349
      %v2947 = vmul.f32 %v2649, %v2946
      %v2948 = vrcp.pop %v2352
      %v2949 = vmul.f32 %v2654, %v2948
      %v2950 = vrcp.pop %v2355
      %v2951 = vmul.f32 %v2659, %v2950
      %v2952 = vrcp.pop %v2358
      %v2953 = vmul.f32 %v2753, %v2952
      %v2954 = vrcp.pop %v2361
      %v2955 = vmul.f32 %v2758, %v2954
      %v2956 = vrcp.pop %v2364
      %v2957 = vmul.f32 %v2763, %v2956
      %v2958 = vrcp.pop %v2367
      %v2959 = vmul.f32 %v2768, %v2958
      %v2960 = vrcp.pop %v2370
      %v2961 = vmul.f32 %v2773, %v2960
      %v2962 = vrcp.pop %v2373
      %v2963 = vmul.f32 %v2778, %v2962
      %v2964 = vrcp.pop %v2376
      %v2965 = vmul.f32 %v2783, %v2964
      %v2966 = vrcp.pop %v2379
      %v2967 = vmul.f32 %v2788, %v2966
      %v2968 = vrcp.pop %v2382
      %v2969 = vmul.f32 %v2882, %v2968
      %v2970 = vrcp.pop %v2385
      %v2971 = vmul.f32 %v2887, %v2970
      %v2972 = vrcp.pop %v2388
      %v2973 = vmul.f32 %v2892, %v2972
      %v2974 = vrcp.pop %v2391
      %v2975 = vmul.f32 %v2897, %v2974
      %v2976 = vrcp.pop %v2394
      %v2977 = vmul.f32 %v2902, %v2976
      %v2978 = vrcp.pop %v2397
      %v2979 = vmul.f32 %v2907, %v2978
      %v2980 = vrcp.pop %v2400
      %v2981 = vmul.f32 %v2912, %v2980
      %v2982 = vrcp.pop %v2403
      %v2983 = vmul.f32 %v2917, %v2982
      %2984 = vst.msk [vmem:[#allocation5] sm:$0xff] %vm648, %v2921
      %2985 = vst.msk [vmem:[#allocation5 + $0x8] sm:$0x7f] %vm650, %v2923
      %2989 = vrot.lane.b32.xlu0 %v2923, 8
      %v2990 = vpop.permute.xlu0 %2989
      %2991 = vrot.lane.b32.xlu0 %v2925, 8
      %v2992 = vpop.permute.xlu0 %2991
      %2993 = vrot.lane.b32.xlu0 %v2927, 8
      %v2994 = vpop.permute.xlu0 %2993
      %vm2998 = vcmask 130119
      %2999 = vst.msk [vmem:[#allocation5 - $0x7] sm:$0x80] %vm2998, %v2990
      %vm3000 = vcmask 130112
      %3001 = vst.msk [vmem:[#allocation5 + $0x1] sm:$0xff] %vm3000, %v2992
      %vm3002 = vcmask 128064
      %3003 = vst.msk [vmem:[#allocation5 + $0x9] sm:$0x3f] %vm3002, %v2994
      %3006 = vrot.lane.b32.xlu0 %v2927, 16
      %v3007 = vpop.permute.xlu0 %3006
      %3008 = vrot.lane.b32.xlu0 %v2929, 16
      %v3009 = vpop.permute.xlu0 %3008
      %3010 = vrot.lane.b32.xlu0 %v2931, 16
      %v3011 = vpop.permute.xlu0 %3010
      %vm3015 = vcmask 195718
      %3016 = vst.msk [vmem:[#allocation5 - $0x6] sm:$0xc0] %vm3015, %v3007
      %vm3017 = vcmask 195712
      %3018 = vst.msk [vmem:[#allocation5 + $0x2] sm:$0xff] %vm3017, %v3009
      %vm3019 = vcmask 192640
      %3020 = vst.msk [vmem:[#allocation5 + $0xa] sm:$0x1f] %vm3019, %v3011
      %3023 = vrot.lane.b32.xlu0 %v2931, 24
      %v3024 = vpop.permute.xlu0 %3023
      %3025 = vrot.lane.b32.xlu0 %v2933, 24
      %v3026 = vpop.permute.xlu0 %3025
      %3027 = vrot.lane.b32.xlu0 %v2935, 24
      %v3028 = vpop.permute.xlu0 %3027
      %vm3032 = vcmask 261317
      %3033 = vst.msk [vmem:[#allocation5 - $0x5] sm:$0xe0] %vm3032, %v3024
      %vm3034 = vcmask 261312
      %3035 = vst.msk [vmem:[#allocation5 + $0x3] sm:$0xff] %vm3034, %v3026
      %vm3036 = vcmask 257216
      %3037 = vst.msk [vmem:[#allocation5 + $0xb] sm:$0xf] %vm3036, %v3028
      %3038 = vst.msk [vmem:[#allocation5 + $0xf] sm:$0xff] %vm648, %v2937
      %3039 = vst.msk [vmem:[#allocation5 + $0x17] sm:$0x7f] %vm650, %v2939
      %3043 = vrot.lane.b32.xlu0 %v2939, 8
      %v3044 = vpop.permute.xlu0 %3043
      %3045 = vrot.lane.b32.xlu0 %v2941, 8
      %v3046 = vpop.permute.xlu0 %3045
      %3047 = vrot.lane.b32.xlu0 %v2943, 8
      %v3048 = vpop.permute.xlu0 %3047
      %3052 = vst.msk [vmem:[#allocation5 + $0x8] sm:$0x80] %vm2998, %v3044
      %3053 = vst.msk [vmem:[#allocation5 + $0x10] sm:$0xff] %vm3000, %v3046
      %3054 = vst.msk [vmem:[#allocation5 + $0x18] sm:$0x3f] %vm3002, %v3048
      %3057 = vrot.lane.b32.xlu0 %v2943, 16
      %v3058 = vpop.permute.xlu0 %3057
      %3059 = vrot.lane.b32.xlu0 %v2945, 16
      %v3060 = vpop.permute.xlu0 %3059
      %3061 = vrot.lane.b32.xlu0 %v2947, 16
      %v3062 = vpop.permute.xlu0 %3061
      %3066 = vst.msk [vmem:[#allocation5 + $0x9] sm:$0xc0] %vm3015, %v3058
      %3067 = vst.msk [vmem:[#allocation5 + $0x11] sm:$0xff] %vm3017, %v3060
      %3068 = vst.msk [vmem:[#allocation5 + $0x19] sm:$0x1f] %vm3019, %v3062
      %3071 = vrot.lane.b32.xlu0 %v2947, 24
      %v3072 = vpop.permute.xlu0 %3071
      %3073 = vrot.lane.b32.xlu0 %v2949, 24
      %v3074 = vpop.permute.xlu0 %3073
      %3075 = vrot.lane.b32.xlu0 %v2951, 24
      %v3076 = vpop.permute.xlu0 %3075
      %3080 = vst.msk [vmem:[#allocation5 + $0xa] sm:$0xe0] %vm3032, %v3072
      %3081 = vst.msk [vmem:[#allocation5 + $0x12] sm:$0xff] %vm3034, %v3074
      %3082 = vst.msk [vmem:[#allocation5 + $0x1a] sm:$0xf] %vm3036, %v3076
      %3083 = vst.msk [vmem:[#allocation5 + $0x1e] sm:$0xff] %vm648, %v2953
      %3084 = vst.msk [vmem:[#allocation5 + $0x26] sm:$0x7f] %vm650, %v2955
      %3088 = vrot.lane.b32.xlu0 %v2955, 8
      %v3089 = vpop.permute.xlu0 %3088
      %3090 = vrot.lane.b32.xlu0 %v2957, 8
      %v3091 = vpop.permute.xlu0 %3090
      %3092 = vrot.lane.b32.xlu0 %v2959, 8
      %v3093 = vpop.permute.xlu0 %3092
      %3097 = vst.msk [vmem:[#allocation5 + $0x17] sm:$0x80] %vm2998, %v3089
      %3098 = vst.msk [vmem:[#allocation5 + $0x1f] sm:$0xff] %vm3000, %v3091
      %3099 = vst.msk [vmem:[#allocation5 + $0x27] sm:$0x3f] %vm3002, %v3093
      %3102 = vrot.lane.b32.xlu0 %v2959, 16
      %v3103 = vpop.permute.xlu0 %3102
      %3104 = vrot.lane.b32.xlu0 %v2961, 16
      %v3105 = vpop.permute.xlu0 %3104
      %3106 = vrot.lane.b32.xlu0 %v2963, 16
      %v3107 = vpop.permute.xlu0 %3106
      %3111 = vst.msk [vmem:[#allocation5 + $0x18] sm:$0xc0] %vm3015, %v3103
      %3112 = vst.msk [vmem:[#allocation5 + $0x20] sm:$0xff] %vm3017, %v3105
      %3113 = vst.msk [vmem:[#allocation5 + $0x28] sm:$0x1f] %vm3019, %v3107
      %3116 = vrot.lane.b32.xlu0 %v2963, 24
      %v3117 = vpop.permute.xlu0 %3116
      %3118 = vrot.lane.b32.xlu0 %v2965, 24
      %v3119 = vpop.permute.xlu0 %3118
      %3120 = vrot.lane.b32.xlu0 %v2967, 24
      %v3121 = vpop.permute.xlu0 %3120
      %3125 = vst.msk [vmem:[#allocation5 + $0x19] sm:$0xe0] %vm3032, %v3117
      %3126 = vst.msk [vmem:[#allocation5 + $0x21] sm:$0xff] %vm3034, %v3119
      %3127 = vst.msk [vmem:[#allocation5 + $0x29] sm:$0xf] %vm3036, %v3121
      %3128 = vst.msk [vmem:[#allocation5 + $0x2d] sm:$0xff] %vm648, %v2969
      %3129 = vst.msk [vmem:[#allocation5 + $0x35] sm:$0x7f] %vm650, %v2971
      %3133 = vrot.lane.b32.xlu0 %v2971, 8
      %v3134 = vpop.permute.xlu0 %3133
      %3135 = vrot.lane.b32.xlu0 %v2973, 8
      %v3136 = vpop.permute.xlu0 %3135
      %3137 = vrot.lane.b32.xlu0 %v2975, 8
      %v3138 = vpop.permute.xlu0 %3137
      %3142 = vst.msk [vmem:[#allocation5 + $0x26] sm:$0x80] %vm2998, %v3134
      %3143 = vst.msk [vmem:[#allocation5 + $0x2e] sm:$0xff] %vm3000, %v3136
      %3144 = vst.msk [vmem:[#allocation5 + $0x36] sm:$0x3f] %vm3002, %v3138
      %3147 = vrot.lane.b32.xlu0 %v2975, 16
      %v3148 = vpop.permute.xlu0 %3147
      %3149 = vrot.lane.b32.xlu0 %v2977, 16
      %v3150 = vpop.permute.xlu0 %3149
      %3151 = vrot.lane.b32.xlu0 %v2979, 16
      %v3152 = vpop.permute.xlu0 %3151
      %3156 = vst.msk [vmem:[#allocation5 + $0x27] sm:$0xc0] %vm3015, %v3148
      %3157 = vst.msk [vmem:[#allocation5 + $0x2f] sm:$0xff] %vm3017, %v3150
      %3158 = vst.msk [vmem:[#allocation5 + $0x37] sm:$0x1f] %vm3019, %v3152
      %3161 = vrot.lane.b32.xlu0 %v2979, 24
      %v3162 = vpop.permute.xlu0 %3161
      %3163 = vrot.lane.b32.xlu0 %v2981, 24
      %v3164 = vpop.permute.xlu0 %3163
      %3165 = vrot.lane.b32.xlu0 %v2983, 24
      %v3166 = vpop.permute.xlu0 %3165
      %3170 = vst.msk [vmem:[#allocation5 + $0x28] sm:$0xe0] %vm3032, %v3162
      %3171 = vst.msk [vmem:[#allocation5 + $0x30] sm:$0xff] %vm3034, %v3164
      %3172 = vst.msk [vmem:[#allocation5 + $0x38] sm:$0xf] %vm3036, %v3166
      %v3173 = vld [vmem:[#allocation5] sm:$0xff]
      %v3174 = vld [vmem:[#allocation5 + $0x8] sm:$0xff]
      %v3175 = vld [vmem:[#allocation5 + $0x10] sm:$0xff]
      %v3176 = vld [vmem:[#allocation5 + $0x18] sm:$0xff]
      %v3177 = vld [vmem:[#allocation5 + $0x20] sm:$0xff]
      %v3178 = vld [vmem:[#allocation5 + $0x28] sm:$0xff]
      %v3179 = vld [vmem:[#allocation5 + $0x30] sm:$0xff]
      %v3180 = vld [vmem:[#allocation5 + $0x38] sm:$0xf]
      %v3181 = vld [vmem:[%s6] sm:$0xff]
      %v3182 = vld [vmem:[%s6 + $0x8] sm:$0xff]
      %v3183 = vld [vmem:[%s6 + $0x10] sm:$0xff]
      %v3184 = vld [vmem:[%s6 + $0x18] sm:$0xff]
      %v3185 = vld [vmem:[%s7] sm:$0x1]
      %v3187 = vlaneseq
      %v3188 = vshrl.u32 %v3187, 7
      %v3189 = vsub.s32 0, %v3188
      %v3190 = vrot.slane %v3185, %v3189
      %vm3192 = vcmask 261120
      %v3194 = vsel %vm3192, %v3173, 0
      %v3197 = vsel %vm3192, %v3174, 0
      %v3200 = vsel %vm3192, %v3175, 0
      %v3203 = vsel %vm3192, %v3176, 0
      %v3206 = vsel %vm3192, %v3177, 0
      %v3209 = vsel %vm3192, %v3178, 0
      %v3212 = vsel %vm3192, %v3179, 0
      %v3215 = vsel %vm3192, %v3180, 0
      %3217 = vmatprep.subr.mxu0 0.0
      %3218 = vmatpush1.msra.mxu0 %v3181
      %3219 = vmatprep.subr.mxu0 0.0
      %3220 = vmatpush1.msra.mxu0 %v3182
      %3221 = vmatprep.subr.mxu0 0.0
      %3222 = vmatpush1.msra.mxu0 %v3183
      %3223 = vmatprep.subr.mxu0 0.0
      %3224 = vmatpush1.msra.mxu0 %v3184
      %3225 = vmatprep.subr.mxu0 0.0
      %3226 = vmatpush1.msra.mxu0 0.0
      %3227 = vmatprep.subr.mxu0 0.0
      %3228 = vmatpush1.msra.mxu0 0.0
      %3229 = vmatprep.subr.mxu0 0.0
      %3230 = vmatpush1.msra.mxu0 0.0
      %3231 = vmatprep.subr.mxu0 0.0
      %3232 = vmatpush1.msra.mxu0 0.0
      %3233 = vmatprep.subr.mxu0 0.0
      %3234 = vmatpush1.msra.mxu0 0.0
      %3235 = vmatprep.subr.mxu0 0.0
      %3236 = vmatpush1.msra.mxu0 0.0
      %3237 = vmatprep.subr.mxu0 0.0
      %3238 = vmatpush1.msra.mxu0 0.0
      %3239 = vmatprep.subr.mxu0 0.0
      %3240 = vmatpush1.msra.mxu0 0.0
      %3241 = vmatprep.subr.mxu0 0.0
      %3242 = vmatpush1.msra.mxu0 0.0
      %3243 = vmatprep.subr.mxu0 0.0
      %3244 = vmatpush1.msra.mxu0 0.0
      %3245 = vmatprep.subr.mxu0 0.0
      %3246 = vmatpush1.msra.mxu0 0.0
      %3247 = vmatprep.subr.mxu0 0.0
      %3248 = vmatpush1.msra.mxu0 0.0
      %3249 = vmatprep.subr.mxu0 0.0
      %3250 = vmatpush1.msra.mxu0 0.0
      %3251 = vmatprep.subr.mxu0 0.0
      %3252 = vmatpush1.msra.mxu0 0.0
      %3253 = vmatprep.subr.mxu0 0.0
      %3254 = vmatpush1.msra.mxu0 0.0
      %3255 = vmatprep.subr.mxu0 0.0
      %3256 = vmatpush1.msra.mxu0 0.0
      %3257 = vmatprep.subr.mxu0 0.0
      %3258 = vmatpush1.msra.mxu0 0.0
      %3259 = vmatprep.subr.mxu0 0.0
      %3260 = vmatpush1.msra.mxu0 0.0
      %3261 = vmatprep.subr.mxu0 0.0
      %3262 = vmatpush1.msra.mxu0 0.0
      %3263 = vmatprep.subr.mxu0 0.0
      %3264 = vmatpush1.msra.mxu0 0.0
      %3265 = vmatprep.subr.mxu0 0.0
      %3266 = vmatpush1.msra.mxu0 0.0
      %3267 = vmatprep.subr.mxu0 0.0
      %3268 = vmatpush1.msra.mxu0 0.0
      %3269 = vmatprep.subr.mxu0 0.0
      %3270 = vmatpush1.msra.mxu0 0.0
      %3271 = vmatprep.subr.mxu0 0.0
      %3272 = vmatpush1.msra.mxu0 0.0
      %3273 = vmatprep.subr.mxu0 0.0
      %3274 = vmatpush1.msra.mxu0 0.0
      %3275 = vmatprep.subr.mxu0 0.0
      %3276 = vmatpush1.msra.mxu0 0.0
      %3277 = vmatprep.subr.mxu0 0.0
      %3278 = vmatpush1.msra.mxu0 0.0
      %3279 = vmatprep.subr.mxu0 0.0
      %3280 = vmatpush1.msra.mxu0 0.0
      %3281 = vmatprep.mubr.f32.mxu0 0.0
      %3282 = vmatmul.mubr.f32.gmra.mrb[0].mxu0 %v3194
      %v3283 = vpop.f32.mrb[0].mxu0
      %v3284 = vadd.f32 %v3190, %v3283
      %v3285 = vpop.f32.mrb[0].mxu0
      %3286 = vmatprep.mubr.f32.mxu0 0.0
      %3287 = vmatmul.mubr.f32.gmra.mrb[0].mxu0 %v3197
      %v3288 = vpop.f32.mrb[0].mxu0
      %v3289 = vadd.f32 %v3190, %v3288
      %v3290 = vpop.f32.mrb[0].mxu0
      %3291 = vmatprep.mubr.f32.mxu0 0.0
      %3292 = vmatmul.mubr.f32.gmra.mrb[0].mxu0 %v3200
      %v3293 = vpop.f32.mrb[0].mxu0
      %v3294 = vadd.f32 %v3190, %v3293
      %v3295 = vpop.f32.mrb[0].mxu0
      %3296 = vmatprep.mubr.f32.mxu0 0.0
      %3297 = vmatmul.mubr.f32.gmra.mrb[0].mxu0 %v3203
      %v3298 = vpop.f32.mrb[0].mxu0
      %v3299 = vadd.f32 %v3190, %v3298
      %v3300 = vpop.f32.mrb[0].mxu0
      %3301 = vmatprep.mubr.f32.mxu0 0.0
      %3302 = vmatmul.mubr.f32.gmra.mrb[0].mxu0 %v3206
      %v3303 = vpop.f32.mrb[0].mxu0
      %v3304 = vadd.f32 %v3190, %v3303
      %v3305 = vpop.f32.mrb[0].mxu0
      %3306 = vmatprep.mubr.f32.mxu0 0.0
      %3307 = vmatmul.mubr.f32.gmra.mrb[0].mxu0 %v3209
      %v3308 = vpop.f32.mrb[0].mxu0
      %v3309 = vadd.f32 %v3190, %v3308
      %v3310 = vpop.f32.mrb[0].mxu0
      %3311 = vmatprep.mubr.f32.mxu0 0.0
      %3312 = vmatmul.mubr.f32.gmra.mrb[0].mxu0 %v3212
      %v3313 = vpop.f32.mrb[0].mxu0
      %v3314 = vadd.f32 %v3190, %v3313
      %v3315 = vpop.f32.mrb[0].mxu0
      %3316 = vmatprep.mubr.f32.mxu0 0.0
      %3317 = vmatmul.mubr.f32.gmra.mrb[0].mxu0 %v3215
      %v3318 = vpop.f32.mrb[0].mxu0
      %v3319 = vadd.f32 %v3190, %v3318
      %v3320 = vpop.f32.mrb[0].mxu0
      %3321 = vdwg.mxu0
      %v3322 = vadd.f32 %v326, %v3284
      %v3323 = vadd.f32 %v327, %v3289
      %v3324 = vadd.f32 %v328, %v3294
      %v3325 = vadd.f32 %v329, %v3299
      %v3326 = vadd.f32 %v330, %v3304
      %v3327 = vadd.f32 %v331, %v3309
      %v3328 = vadd.f32 %v332, %v3314
      %v3329 = vadd.f32 %v333, %v3319
      %v3330 = vadd.f32 %v3322, %v3323
      %v3331 = vadd.f32 %v3330, %v3324
      %v3332 = vadd.f32 %v3331, %v3325
      %v3333 = vadd.f32 %v3332, %v3326
      %v3334 = vadd.f32 %v3333, %v3327
      %v3335 = vadd.f32 %v3334, %v3328
      %vm3336 = vcmask 1043456
      %v3337 = vsel %vm3336, %v3329, 0.0
      %v3338 = vadd.f32 %v3335, %v3337
      %3339 = vadd.xlane.f32.xlu0 %v3338
      %v3340 = vpop.xlane.xlu0 %3339
      %v3341 = vrot.slane %v3340, 4
      %v3342 = vadd.f32 %v3340, %v3341
      %v3343 = vrot.slane %v3342, 2
      %v3344 = vadd.f32 %v3342, %v3343
      %v3345 = vrot.slane %v3344, 1
      %v3346 = vadd.f32 %v3344, %v3345
      %s3347 = vtos %v3346
      %v3348 = vstv %s3347
      %v3349 = vmul.f32 %v3322, %v3322
      %v3350 = vmul.f32 %v3323, %v3323
      %v3351 = vmul.f32 %v3324, %v3324
      %v3352 = vmul.f32 %v3325, %v3325
      %v3353 = vmul.f32 %v3326, %v3326
      %v3354 = vmul.f32 %v3327, %v3327
      %v3355 = vmul.f32 %v3328, %v3328
      %v3356 = vmul.f32 %v3329, %v3329
      %v3357 = vadd.f32 %v3349, %v3350
      %v3358 = vadd.f32 %v3357, %v3351
      %v3359 = vadd.f32 %v3358, %v3352
      %v3360 = vadd.f32 %v3359, %v3353
      %v3361 = vadd.f32 %v3360, %v3354
      %v3362 = vadd.f32 %v3361, %v3355
      %v3363 = vsel %vm3336, %v3356, 0.0
      %v3364 = vadd.f32 %v3362, %v3363
      %3365 = vadd.xlane.f32.xlu0 %v3364
      %v3366 = vpop.xlane.xlu0 %3365
      %v3367 = vrot.slane %v3366, 4
      %v3368 = vadd.f32 %v3366, %v3367
      %v3369 = vrot.slane %v3368, 2
      %v3370 = vadd.f32 %v3368, %v3369
      %v3371 = vrot.slane %v3370, 1
      %v3372 = vadd.f32 %v3370, %v3371
      %s3373 = vtos %v3372
      %v3374 = vstv %s3373
      %v3375 = vmul.f32 %v3348, 0.00013020834
      %v3376 = vmul.f32 %v3374, 0.00013020834
      %v3377 = vmul.f32 %v3375, %v3375
      %v3378 = vsub.f32 %v3376, %v3377
      %v3379 = vsub.f32 %v3322, %v3375
      %v3380 = vsub.f32 %v3323, %v3375
      %v3381 = vsub.f32 %v3324, %v3375
      %v3382 = vsub.f32 %v3325, %v3375
      %v3383 = vsub.f32 %v3326, %v3375
      %v3384 = vsub.f32 %v3327, %v3375
      %v3385 = vsub.f32 %v3328, %v3375
      %v3386 = vsub.f32 %v3329, %v3375
      %v3387 = vadd.f32 %v3378, 1e-05
      %v3388 = vrsqrt.pop %v3387
      %v3389 = vmul.f32 %v3379, %v3388
      %v3390 = vmul.f32 %v3380, %v3388
      %v3391 = vmul.f32 %v3381, %v3388
      %v3392 = vmul.f32 %v3382, %v3388
      %v3393 = vmul.f32 %v3383, %v3388
      %v3394 = vmul.f32 %v3384, %v3388
      %v3395 = vmul.f32 %v3385, %v3388
      %v3396 = vmul.f32 %v3386, %v3388
      %v3397 = vadd.f32 %v3389, %v326
      %v3398 = vadd.f32 %v3390, %v327
      %v3399 = vadd.f32 %v3391, %v328
      %v3400 = vadd.f32 %v3392, %v329
      %v3401 = vadd.f32 %v3393, %v330
      %v3402 = vadd.f32 %v3394, %v331
      %v3403 = vadd.f32 %v3395, %v332
      %v3404 = vadd.f32 %v3396, %v333
      %3405 = vst [vmem:[%s325] sm:$0xff] %v3397
      %3406 = vst [vmem:[%s325 + $0x8] sm:$0xff] %v3398
      %3407 = vst [vmem:[%s325 + $0x10] sm:$0xff] %v3399
      %3408 = vst [vmem:[%s325 + $0x18] sm:$0xff] %v3400
      %3409 = vst [vmem:[%s325 + $0x20] sm:$0xff] %v3401
      %3410 = vst [vmem:[%s325 + $0x28] sm:$0xff] %v3402
      %3411 = vst [vmem:[%s325 + $0x30] sm:$0xff] %v3403
      %3412 = vst [vmem:[%s325 + $0x38] sm:$0xf] %v3404
      %p3413 = scmp.lt.s32.totalorder %s19, 1
      %s3414 = scalar_select %p3413, %s19, 1
      %s3415 = smul.addr %s3414, 8
      %s3416 = smul.addr %s3415, 8
      %s3417 = scalar_lea.vmem %s8, %s3416
      // Predicated region
      $region53: #{cross_modalto_forward.1} parent=51 // pred_check
        %p3418 = pneg %p215
      $region54: #{cross_modalto_forward.1} parent=51 // pred_check_branch
        %3420 = sbr.rel (%p3418) target = $region56
      $region55: #{cross_modalto_forward.1} parent=51 // pred_region
        _
      $region56: #{cross_modalto_forward.1} parent=51 // pred_fallthru
        _
    $region52: #{cross_modalto_forward.1} parent=5 // pred_fallthru
      _
    %p3421 = scmp.le.s32.totalorder 2, %s14
    // Predicated region
    $region57: #{cross_modalto_forward.1} parent=5 // pred_check
      %p3422 = pneg %p3421
    $region58: #{cross_modalto_forward.1} parent=5 // pred_check_branch
      %3424 = sbr.rel (%p3422) target = $region60
    $region59: #{cross_modalto_forward.1} parent=5 // pred_region
      %s3425 = ssub.s32 %s14, 2
      // Predicated region
      $region61: #{cross_modalto_forward.1} parent=59 // pred_check
        %p3426 = pneg %p221
      $region62: #{cross_modalto_forward.1} parent=59 // pred_check_branch
        %3428 = sbr.rel (%p3426) target = $region64
      $region63: #{cross_modalto_forward.1} parent=59 // pred_region
        %p3429 = scmp.lt.s32.totalorder %s20, 1
        %s3430 = scalar_select %p3429, %s20, 1
        %s3431 = smul.addr %s3430, 8
        %s3432 = smul.addr %s3431, 8
        %s3433 = scalar_lea.vmem %s8, %s3432
      $region64: #{cross_modalto_forward.1} parent=59 // pred_fallthru
        _
    $region60: #{cross_modalto_forward.1} parent=5 // pred_fallthru
      _
  $region6: #{cross_modalto_forward.1} parent=0 // loop_footer
    %s18 = sadd.s32 1, %s14
  $region7: #{cross_modalto_forward.1} parent=0 // loop_footer_branch
    %13 = sbr.rel target = $region3
  $region8: #{cross_modalto_forward.1} parent=0 // loop_exit
    _

</llo_original>
